<compile_context>
chip_gen: v5e
topology: v5e:2x2
jax: 0.10.0
libtpu: 0.0.40
codegen_flags: <defaults>
</compile_context>

<pallas_src>
import functools

import jax
import jax.numpy as jnp
from jax.experimental import pallas as pl
from jax.experimental.pallas import tpu as pltpu


def _round_up(n, m):
    return (n + m - 1) // m * m


def _cdiv(a, b):
    return (a + b - 1) // b


def _vmem_block_bytes(shape, dtype):
    """VMEM footprint of one block, including (sublane, lane) tile padding."""
    it = jnp.dtype(dtype).itemsize
    if len(shape) == 1:
        shape = (1,) + tuple(shape)
    lead = 1
    for d in shape[:-2]:
        lead *= d
    sub = _round_up(shape[-2], 8 * (4 // it))      # 8 sublanes (f32) / 16 (bf16) / 32 (int8)
    lane = _round_up(shape[-1], 128)
    return lead * sub * lane * it


def _conv_window_kernel(win_ref, w_ref, b_ref, o_ref, acc_ref, *, k, w_padded, tile_rows):
    """One (batch, row-tile, n-tile) grid step of the stride-1 'same' conv.

    win_ref: (1, 1, L, Cin)         operand dtype; flattened padded row-window, row = h*Wp + w
    w_ref:   (k*k, Cin, TILE_N)     operand dtype; tap-major conv weight (resident over row tiles)
    b_ref:   (1, TILE_N)            f32 bias
    o_ref:   (1, 1, M_blk, TILE_N)  out dtype; M_blk = tile_rows*Wp (2p garbage cols/row)
    acc_ref: (M_blk, TILE_N)        f32 VMEM accumulator scratch
    """
    m_blk = tile_rows * w_padded
    for t in range(k * k):
        ky, kx = divmod(t, k)
        # In-kernel im2col tap: output position m = r*Wp + w needs padded-input element at
        # flattened row m + ky*Wp + kx -> a single contiguous, statically-offset VMEM slice.
        tap = win_ref[0, 0, pl.ds(ky * w_padded + kx, m_blk), :]        # (M_blk, Cin)
        d = jnp.dot(tap, w_ref[t], preferred_element_type=jnp.float32)  # MXU, f32 accumulate
        if t == 0:
            acc_ref[...] = d
        else:
            acc_ref[...] += d
    o_ref[0, 0] = (acc_ref[...] + b_ref[...]).astype(o_ref.dtype)


def conv2d_same(x, weight, bias, kernel_size, *, tile_rows=None,
                operand_dtype=jnp.bfloat16, out_dtype=jnp.float32):
    """x: (B, Cin, H, W) NCHW. weight: (Cout, Cin, k, k). bias: (Cout,).
    Returns conv2d(x) with stride=1, padding=(k-1)//2 -> (B, Cout, H, W) (module semantics)."""
    B, Cin, H, W = x.shape
    Cout = weight.shape[0]
    k = int(kernel_size)
    assert k % 2 == 1, "padding=(k-1)//2 matches PyTorch only for odd kernel sizes"
    p = (k - 1) // 2
    Wp = W + 2 * p

    # ---- output-channel (N) tiling: lane-dense stores; 256-wide tiles once Cout > 128 ----
    if Cout > 128:
        tile_n = 256
        n_pad = _round_up(Cout, tile_n)
    else:
        tile_n = n_pad = 128
    n_n = n_pad // tile_n

    # ---- row (M) tiling: aim for >= ~1024 GEMM rows per grid step ----
    if tile_rows is None:
        tile_rows = max(8, _cdiv(1024, Wp))
    tile_rows = min(int(tile_rows), H)
    n_t = _cdiv(H, tile_rows)
    h_tiles = n_t * tile_rows
    m_blk = tile_rows * Wp                  # GEMM rows per step (incl. 2p garbage cols/row)
    win_rows = tile_rows + 2 * p + 1        # halo rows + 1 spare padded row so taps stay in-bounds
    L = win_rows * Wp

    # ---- glue (single pass over the input): NHWC, cast, zero-pad, row-window halo copy ----
    x_nhwc = jnp.transpose(x, (0, 2, 3, 1)).astype(operand_dtype)               # (B,H,W,Cin)
    x_pad = jnp.pad(x_nhwc, ((0, 0), (p, h_tiles - H + p + 1), (p, p), (0, 0)))
    windows = jnp.stack([x_pad[:, i * tile_rows:i * tile_rows + win_rows]
                         for i in range(n_t)], axis=1)                          # (B,nT,win_rows,Wp,Cin)
    windows = windows.reshape(B, n_t, L, Cin)

    # weight -> (k*k, Cin, n_pad) in (ky, kx, cin) tap order; bias -> (1, n_pad) f32
    w_mat = jnp.transpose(weight, (2, 3, 1, 0)).reshape(k * k, Cin, Cout)
    w_mat = jnp.pad(w_mat, ((0, 0), (0, 0), (0, n_pad - Cout))).astype(operand_dtype)
    b_mat = jnp.pad(bias.astype(jnp.float32).reshape(1, Cout), ((0, 0), (0, n_pad - Cout)))

    # ---- VMEM budget: 2x (double-buffered) blocks + scratch + headroom; capped for v7x 64 MiB ----
    need = (2 * (_vmem_block_bytes((1, 1, L, Cin), operand_dtype)
                 + _vmem_block_bytes((k * k, Cin, tile_n), operand_dtype)
                 + _vmem_block_bytes((1, tile_n), jnp.float32)
                 + _vmem_block_bytes((1, 1, m_blk, tile_n), out_dtype))
            + _vmem_block_bytes((m_blk, tile_n), jnp.float32) + (4 << 20))
    vmem_limit = int(min(max(need, 32 << 20), 48 << 20))

    cost = pl.CostEstimate(
        flops=2 * B * n_t * m_blk * k * k * Cin * n_pad,
        transcendentals=0,
        bytes_accessed=int(windows.size * windows.dtype.itemsize
                           + w_mat.size * w_mat.dtype.itemsize
                           + b_mat.size * 4
                           + B * n_t * m_blk * n_pad * jnp.dtype(out_dtype).itemsize),
    )

    kernel = functools.partial(_conv_window_kernel, k=k, w_padded=Wp, tile_rows=tile_rows)

    out = pl.pallas_call(
        kernel,
        out_shape=jax.ShapeDtypeStruct((B, n_t, m_blk, n_pad), out_dtype),
        grid=(B, n_t, n_n),
        in_specs=[
            pl.BlockSpec((1, 1, L, Cin), lambda b, i, j: (b, i, 0, 0)),     # row window (+halo)
            pl.BlockSpec((k * k, Cin, tile_n), lambda b, i, j: (0, 0, j)),  # weight N-slice
            pl.BlockSpec((1, tile_n), lambda b, i, j: (0, j)),              # bias N-slice
        ],
        out_specs=pl.BlockSpec((1, 1, m_blk, tile_n), lambda b, i, j: (b, i, 0, j)),
        scratch_shapes=[pltpu.VMEM((m_blk, tile_n), jnp.float32)],
        compiler_params=pltpu.CompilerParams(
            dimension_semantics=("parallel", "parallel", "parallel"),
            vmem_limit_bytes=vmem_limit,
        ),
        cost_estimate=cost,
    )(windows, w_mat, b_mat)

    # ---- strip row/col/channel padding, back to NCHW in one fused slice+reshape+transpose ----
    out = out.reshape(B, h_tiles, Wp, n_pad)[:, :H, :W, :Cout]
    # TODO(synk): consumers that accept NHWC (and/or bf16) can skip this transpose entirely.
    return jnp.transpose(out, (0, 3, 1, 2))                                 # (B, Cout, H, W)


def _reference(x, weight, bias, k):
    p = (k - 1) // 2
    conv = jax.lax.conv_general_dilated(
        x, weight, window_strides=(1, 1), padding=((p, p), (p, p)),
        dimension_numbers=("NCHW", "OIHW", "NCHW"))
    return conv + bias[None, :, None, None]


if __name__ == "__main__":
    B, Cin, Cout, H, W, k = 2, 4, 8, 16, 16, 3

    key = jax.random.PRNGKey(0)
    kx_, kw_, kb_ = jax.random.split(key, 3)
    x = jax.random.normal(kx_, (B, Cin, H, W), dtype=jnp.float32)
    # deterministic synthetic parameters (shapes from nn.Conv2d(Cin, Cout, k))
    weight = jax.random.normal(kw_, (Cout, Cin, k, k), dtype=jnp.float32) * 0.1
    bias = jax.random.normal(kb_, (Cout,), dtype=jnp.float32) * 0.1

    run = jax.jit(functools.partial(conv2d_same, kernel_size=k))
    out = jax.block_until_ready(run(x, weight, bias))

    ref = _reference(x, weight, bias, k)
    assert out.shape == (B, Cout, H, W), out.shape
    max_err = float(jnp.max(jnp.abs(out - ref)))
    # bf16 MXU operands with f32 accumulation -> loosened tolerance vs pure-f32 reference.
    assert max_err < 5e-2, max_err
    print("KERNEL_OK")
</pallas_src>

<mosaic_0001>
module attributes {stable_mosaic.version = 11 : i64} {
  func.func @_conv_window_kernel(%arg0: i32, %arg1: i32, %arg2: i32, %arg3: memref<1x1x342x4xbf16, #tpu.memory_space<vmem>>, %arg4: memref<9x4x128xbf16, #tpu.memory_space<vmem>>, %arg5: memref<1x128xf32, #tpu.memory_space<vmem>>, %arg6: memref<1x1x288x128xf32, #tpu.memory_space<vmem>>, %arg7: memref<288x128xf32, #tpu.memory_space<vmem>>) attributes {dimension_semantics = [#tpu.dimension_semantics<parallel>, #tpu.dimension_semantics<parallel>, #tpu.dimension_semantics<parallel>], iteration_bounds = array<i64: 2, 1, 1>, scalar_prefetch = 0 : i64, scratch_operands = 1 : i64, tpu.core_type = #tpu.core_type<tc>, window_params = [{transform_indices = @transform_0, window_bounds = array<i64: 1, 1, 342, 4>}, {transform_indices = @transform_1, window_bounds = array<i64: 9, 4, 128>}, {transform_indices = @transform_2, window_bounds = array<i64: 1, 128>}, {transform_indices = @transform_3, window_bounds = array<i64: 1, 1, 288, 128>}]} {
    %c0 = arith.constant 0 : index
    %c0_0 = arith.constant 0 : index
    %c0_1 = arith.constant 0 : index
    %c0_2 = arith.constant 0 : index
    %0 = vector.load %arg3[%c0, %c0_0, %c0_1, %c0_2] : memref<1x1x342x4xbf16, #tpu.memory_space<vmem>>, vector<1x1x288x4xbf16>
    %1 = vector.shape_cast %0 : vector<1x1x288x4xbf16> to vector<288x4xbf16>
    %c0_3 = arith.constant 0 : index
    %c0_4 = arith.constant 0 : index
    %c0_5 = arith.constant 0 : index
    %2 = vector.load %arg4[%c0_3, %c0_4, %c0_5] : memref<9x4x128xbf16, #tpu.memory_space<vmem>>, vector<1x4x128xbf16>
    %3 = vector.shape_cast %2 : vector<1x4x128xbf16> to vector<4x128xbf16>
    %cst = arith.constant dense<0.000000e+00> : vector<288x128xf32>
    %4 = tpu.matmul %1, %3, %cst {dimension_numbers = #tpu.dot_dimension_numbers<[1], [0], [0], [1], [0, 0, 1, 1], [], []>} : vector<288x4xbf16>, vector<4x128xbf16>, vector<288x128xf32> -> vector<288x128xf32>
    %c0_6 = arith.constant 0 : index
    %c0_7 = arith.constant 0 : index
    %5 = vector.load %arg7[%c0_6, %c0_7] : memref<288x128xf32, #tpu.memory_space<vmem>>, vector<288x128xf32>
    tpu.vector_store %arg7[%c0_6, %c0_7], %4 {strides = array<i32>} : memref<288x128xf32, #tpu.memory_space<vmem>>, vector<288x128xf32>,
    %c0_8 = arith.constant 0 : index
    %c0_9 = arith.constant 0 : index
    %c1 = arith.constant 1 : index
    %c0_10 = arith.constant 0 : index
    %6 = vector.load %arg3[%c0_8, %c0_9, %c1, %c0_10] : memref<1x1x342x4xbf16, #tpu.memory_space<vmem>>, vector<1x1x288x4xbf16>
    %7 = vector.shape_cast %6 : vector<1x1x288x4xbf16> to vector<288x4xbf16>
    %c1_11 = arith.constant 1 : index
    %c0_12 = arith.constant 0 : index
    %c0_13 = arith.constant 0 : index
    %8 = vector.load %arg4[%c1_11, %c0_12, %c0_13] : memref<9x4x128xbf16, #tpu.memory_space<vmem>>, vector<1x4x128xbf16>
    %9 = vector.shape_cast %8 : vector<1x4x128xbf16> to vector<4x128xbf16>
    %cst_14 = arith.constant dense<0.000000e+00> : vector<288x128xf32>
    %10 = tpu.matmul %7, %9, %cst_14 {dimension_numbers = #tpu.dot_dimension_numbers<[1], [0], [0], [1], [0, 0, 1, 1], [], []>} : vector<288x4xbf16>, vector<4x128xbf16>, vector<288x128xf32> -> vector<288x128xf32>
    %c0_15 = arith.constant 0 : index
    %c0_16 = arith.constant 0 : index
    %11 = vector.load %arg7[%c0_15, %c0_16] : memref<288x128xf32, #tpu.memory_space<vmem>>, vector<288x128xf32>
    %12 = arith.addf %11, %10 : vector<288x128xf32>
    %c0_17 = arith.constant 0 : index
    %c0_18 = arith.constant 0 : index
    %13 = vector.load %arg7[%c0_17, %c0_18] : memref<288x128xf32, #tpu.memory_space<vmem>>, vector<288x128xf32>
    tpu.vector_store %arg7[%c0_17, %c0_18], %12 {strides = array<i32>} : memref<288x128xf32, #tpu.memory_space<vmem>>, vector<288x128xf32>,
    %c0_19 = arith.constant 0 : index
    %c0_20 = arith.constant 0 : index
    %c2 = arith.constant 2 : index
    %c0_21 = arith.constant 0 : index
    %14 = vector.load %arg3[%c0_19, %c0_20, %c2, %c0_21] : memref<1x1x342x4xbf16, #tpu.memory_space<vmem>>, vector<1x1x288x4xbf16>
    %15 = vector.shape_cast %14 : vector<1x1x288x4xbf16> to vector<288x4xbf16>
    %c2_22 = arith.constant 2 : index
    %c0_23 = arith.constant 0 : index
    %c0_24 = arith.constant 0 : index
    %16 = vector.load %arg4[%c2_22, %c0_23, %c0_24] : memref<9x4x128xbf16, #tpu.memory_space<vmem>>, vector<1x4x128xbf16>
    %17 = vector.shape_cast %16 : vector<1x4x128xbf16> to vector<4x128xbf16>
    %cst_25 = arith.constant dense<0.000000e+00> : vector<288x128xf32>
    %18 = tpu.matmul %15, %17, %cst_25 {dimension_numbers = #tpu.dot_dimension_numbers<[1], [0], [0], [1], [0, 0, 1, 1], [], []>} : vector<288x4xbf16>, vector<4x128xbf16>, vector<288x128xf32> -> vector<288x128xf32>
    %c0_26 = arith.constant 0 : index
    %c0_27 = arith.constant 0 : index
    %19 = vector.load %arg7[%c0_26, %c0_27] : memref<288x128xf32, #tpu.memory_space<vmem>>, vector<288x128xf32>
    %20 = arith.addf %19, %18 : vector<288x128xf32>
    %c0_28 = arith.constant 0 : index
    %c0_29 = arith.constant 0 : index
    %21 = vector.load %arg7[%c0_28, %c0_29] : memref<288x128xf32, #tpu.memory_space<vmem>>, vector<288x128xf32>
    tpu.vector_store %arg7[%c0_28, %c0_29], %20 {strides = array<i32>} : memref<288x128xf32, #tpu.memory_space<vmem>>, vector<288x128xf32>,
    %c0_30 = arith.constant 0 : index
    %c0_31 = arith.constant 0 : index
    %c18 = arith.constant 18 : index
    %c0_32 = arith.constant 0 : index
    %22 = vector.load %arg3[%c0_30, %c0_31, %c18, %c0_32] : memref<1x1x342x4xbf16, #tpu.memory_space<vmem>>, vector<1x1x288x4xbf16>
    %23 = vector.shape_cast %22 : vector<1x1x288x4xbf16> to vector<288x4xbf16>
    %c3 = arith.constant 3 : index
    %c0_33 = arith.constant 0 : index
    %c0_34 = arith.constant 0 : index
    %24 = vector.load %arg4[%c3, %c0_33, %c0_34] : memref<9x4x128xbf16, #tpu.memory_space<vmem>>, vector<1x4x128xbf16>
    %25 = vector.shape_cast %24 : vector<1x4x128xbf16> to vector<4x128xbf16>
    %cst_35 = arith.constant dense<0.000000e+00> : vector<288x128xf32>
    %26 = tpu.matmul %23, %25, %cst_35 {dimension_numbers = #tpu.dot_dimension_numbers<[1], [0], [0], [1], [0, 0, 1, 1], [], []>} : vector<288x4xbf16>, vector<4x128xbf16>, vector<288x128xf32> -> vector<288x128xf32>
    %c0_36 = arith.constant 0 : index
    %c0_37 = arith.constant 0 : index
    %27 = vector.load %arg7[%c0_36, %c0_37] : memref<288x128xf32, #tpu.memory_space<vmem>>, vector<288x128xf32>
    %28 = arith.addf %27, %26 : vector<288x128xf32>
    %c0_38 = arith.constant 0 : index
    %c0_39 = arith.constant 0 : index
    %29 = vector.load %arg7[%c0_38, %c0_39] : memref<288x128xf32, #tpu.memory_space<vmem>>, vector<288x128xf32>
    tpu.vector_store %arg7[%c0_38, %c0_39], %28 {strides = array<i32>} : memref<288x128xf32, #tpu.memory_space<vmem>>, vector<288x128xf32>,
    %c0_40 = arith.constant 0 : index
    %c0_41 = arith.constant 0 : index
    %c19 = arith.constant 19 : index
    %c0_42 = arith.constant 0 : index
    %30 = vector.load %arg3[%c0_40, %c0_41, %c19, %c0_42] : memref<1x1x342x4xbf16, #tpu.memory_space<vmem>>, vector<1x1x288x4xbf16>
    %31 = vector.shape_cast %30 : vector<1x1x288x4xbf16> to vector<288x4xbf16>
    %c4 = arith.constant 4 : index
    %c0_43 = arith.constant 0 : index
    %c0_44 = arith.constant 0 : index
    %32 = vector.load %arg4[%c4, %c0_43, %c0_44] : memref<9x4x128xbf16, #tpu.memory_space<vmem>>, vector<1x4x128xbf16>
    %33 = vector.shape_cast %32 : vector<1x4x128xbf16> to vector<4x128xbf16>
    %cst_45 = arith.constant dense<0.000000e+00> : vector<288x128xf32>
    %34 = tpu.matmul %31, %33, %cst_45 {dimension_numbers = #tpu.dot_dimension_numbers<[1], [0], [0], [1], [0, 0, 1, 1], [], []>} : vector<288x4xbf16>, vector<4x128xbf16>, vector<288x128xf32> -> vector<288x128xf32>
    %c0_46 = arith.constant 0 : index
    %c0_47 = arith.constant 0 : index
    %35 = vector.load %arg7[%c0_46, %c0_47] : memref<288x128xf32, #tpu.memory_space<vmem>>, vector<288x128xf32>
    %36 = arith.addf %35, %34 : vector<288x128xf32>
    %c0_48 = arith.constant 0 : index
    %c0_49 = arith.constant 0 : index
    %37 = vector.load %arg7[%c0_48, %c0_49] : memref<288x128xf32, #tpu.memory_space<vmem>>, vector<288x128xf32>
    tpu.vector_store %arg7[%c0_48, %c0_49], %36 {strides = array<i32>} : memref<288x128xf32, #tpu.memory_space<vmem>>, vector<288x128xf32>,
    %c0_50 = arith.constant 0 : index
    %c0_51 = arith.constant 0 : index
    %c20 = arith.constant 20 : index
    %c0_52 = arith.constant 0 : index
    %38 = vector.load %arg3[%c0_50, %c0_51, %c20, %c0_52] : memref<1x1x342x4xbf16, #tpu.memory_space<vmem>>, vector<1x1x288x4xbf16>
    %39 = vector.shape_cast %38 : vector<1x1x288x4xbf16> to vector<288x4xbf16>
    %c5 = arith.constant 5 : index
    %c0_53 = arith.constant 0 : index
    %c0_54 = arith.constant 0 : index
    %40 = vector.load %arg4[%c5, %c0_53, %c0_54] : memref<9x4x128xbf16, #tpu.memory_space<vmem>>, vector<1x4x128xbf16>
    %41 = vector.shape_cast %40 : vector<1x4x128xbf16> to vector<4x128xbf16>
    %cst_55 = arith.constant dense<0.000000e+00> : vector<288x128xf32>
    %42 = tpu.matmul %39, %41, %cst_55 {dimension_numbers = #tpu.dot_dimension_numbers<[1], [0], [0], [1], [0, 0, 1, 1], [], []>} : vector<288x4xbf16>, vector<4x128xbf16>, vector<288x128xf32> -> vector<288x128xf32>
    %c0_56 = arith.constant 0 : index
    %c0_57 = arith.constant 0 : index
    %43 = vector.load %arg7[%c0_56, %c0_57] : memref<288x128xf32, #tpu.memory_space<vmem>>, vector<288x128xf32>
    %44 = arith.addf %43, %42 : vector<288x128xf32>
    %c0_58 = arith.constant 0 : index
    %c0_59 = arith.constant 0 : index
    %45 = vector.load %arg7[%c0_58, %c0_59] : memref<288x128xf32, #tpu.memory_space<vmem>>, vector<288x128xf32>
    tpu.vector_store %arg7[%c0_58, %c0_59], %44 {strides = array<i32>} : memref<288x128xf32, #tpu.memory_space<vmem>>, vector<288x128xf32>,
    %c0_60 = arith.constant 0 : index
    %c0_61 = arith.constant 0 : index
    %c36 = arith.constant 36 : index
    %c0_62 = arith.constant 0 : index
    %46 = vector.load %arg3[%c0_60, %c0_61, %c36, %c0_62] : memref<1x1x342x4xbf16, #tpu.memory_space<vmem>>, vector<1x1x288x4xbf16>
    %47 = vector.shape_cast %46 : vector<1x1x288x4xbf16> to vector<288x4xbf16>
    %c6 = arith.constant 6 : index
    %c0_63 = arith.constant 0 : index
    %c0_64 = arith.constant 0 : index
    %48 = vector.load %arg4[%c6, %c0_63, %c0_64] : memref<9x4x128xbf16, #tpu.memory_space<vmem>>, vector<1x4x128xbf16>
    %49 = vector.shape_cast %48 : vector<1x4x128xbf16> to vector<4x128xbf16>
    %cst_65 = arith.constant dense<0.000000e+00> : vector<288x128xf32>
    %50 = tpu.matmul %47, %49, %cst_65 {dimension_numbers = #tpu.dot_dimension_numbers<[1], [0], [0], [1], [0, 0, 1, 1], [], []>} : vector<288x4xbf16>, vector<4x128xbf16>, vector<288x128xf32> -> vector<288x128xf32>
    %c0_66 = arith.constant 0 : index
    %c0_67 = arith.constant 0 : index
    %51 = vector.load %arg7[%c0_66, %c0_67] : memref<288x128xf32, #tpu.memory_space<vmem>>, vector<288x128xf32>
    %52 = arith.addf %51, %50 : vector<288x128xf32>
    %c0_68 = arith.constant 0 : index
    %c0_69 = arith.constant 0 : index
    %53 = vector.load %arg7[%c0_68, %c0_69] : memref<288x128xf32, #tpu.memory_space<vmem>>, vector<288x128xf32>
    tpu.vector_store %arg7[%c0_68, %c0_69], %52 {strides = array<i32>} : memref<288x128xf32, #tpu.memory_space<vmem>>, vector<288x128xf32>,
    %c0_70 = arith.constant 0 : index
    %c0_71 = arith.constant 0 : index
    %c37 = arith.constant 37 : index
    %c0_72 = arith.constant 0 : index
    %54 = vector.load %arg3[%c0_70, %c0_71, %c37, %c0_72] : memref<1x1x342x4xbf16, #tpu.memory_space<vmem>>, vector<1x1x288x4xbf16>
    %55 = vector.shape_cast %54 : vector<1x1x288x4xbf16> to vector<288x4xbf16>
    %c7 = arith.constant 7 : index
    %c0_73 = arith.constant 0 : index
    %c0_74 = arith.constant 0 : index
    %56 = vector.load %arg4[%c7, %c0_73, %c0_74] : memref<9x4x128xbf16, #tpu.memory_space<vmem>>, vector<1x4x128xbf16>
    %57 = vector.shape_cast %56 : vector<1x4x128xbf16> to vector<4x128xbf16>
    %cst_75 = arith.constant dense<0.000000e+00> : vector<288x128xf32>
    %58 = tpu.matmul %55, %57, %cst_75 {dimension_numbers = #tpu.dot_dimension_numbers<[1], [0], [0], [1], [0, 0, 1, 1], [], []>} : vector<288x4xbf16>, vector<4x128xbf16>, vector<288x128xf32> -> vector<288x128xf32>
    %c0_76 = arith.constant 0 : index
    %c0_77 = arith.constant 0 : index
    %59 = vector.load %arg7[%c0_76, %c0_77] : memref<288x128xf32, #tpu.memory_space<vmem>>, vector<288x128xf32>
    %60 = arith.addf %59, %58 : vector<288x128xf32>
    %c0_78 = arith.constant 0 : index
    %c0_79 = arith.constant 0 : index
    %61 = vector.load %arg7[%c0_78, %c0_79] : memref<288x128xf32, #tpu.memory_space<vmem>>, vector<288x128xf32>
    tpu.vector_store %arg7[%c0_78, %c0_79], %60 {strides = array<i32>} : memref<288x128xf32, #tpu.memory_space<vmem>>, vector<288x128xf32>,
    %c0_80 = arith.constant 0 : index
    %c0_81 = arith.constant 0 : index
    %c38 = arith.constant 38 : index
    %c0_82 = arith.constant 0 : index
    %62 = vector.load %arg3[%c0_80, %c0_81, %c38, %c0_82] : memref<1x1x342x4xbf16, #tpu.memory_space<vmem>>, vector<1x1x288x4xbf16>
    %63 = vector.shape_cast %62 : vector<1x1x288x4xbf16> to vector<288x4xbf16>
    %c8 = arith.constant 8 : index
    %c0_83 = arith.constant 0 : index
    %c0_84 = arith.constant 0 : index
    %64 = vector.load %arg4[%c8, %c0_83, %c0_84] : memref<9x4x128xbf16, #tpu.memory_space<vmem>>, vector<1x4x128xbf16>
    %65 = vector.shape_cast %64 : vector<1x4x128xbf16> to vector<4x128xbf16>
    %cst_85 = arith.constant dense<0.000000e+00> : vector<288x128xf32>
    %66 = tpu.matmul %63, %65, %cst_85 {dimension_numbers = #tpu.dot_dimension_numbers<[1], [0], [0], [1], [0, 0, 1, 1], [], []>} : vector<288x4xbf16>, vector<4x128xbf16>, vector<288x128xf32> -> vector<288x128xf32>
    %c0_86 = arith.constant 0 : index
    %c0_87 = arith.constant 0 : index
    %67 = vector.load %arg7[%c0_86, %c0_87] : memref<288x128xf32, #tpu.memory_space<vmem>>, vector<288x128xf32>
    %68 = arith.addf %67, %66 : vector<288x128xf32>
    %c0_88 = arith.constant 0 : index
    %c0_89 = arith.constant 0 : index
    %69 = vector.load %arg7[%c0_88, %c0_89] : memref<288x128xf32, #tpu.memory_space<vmem>>, vector<288x128xf32>
    tpu.vector_store %arg7[%c0_88, %c0_89], %68 {strides = array<i32>} : memref<288x128xf32, #tpu.memory_space<vmem>>, vector<288x128xf32>,
    %c0_90 = arith.constant 0 : index
    %c0_91 = arith.constant 0 : index
    %70 = vector.load %arg7[%c0_90, %c0_91] : memref<288x128xf32, #tpu.memory_space<vmem>>, vector<288x128xf32>
    %c0_92 = arith.constant 0 : index
    %c0_93 = arith.constant 0 : index
    %71 = vector.load %arg5[%c0_92, %c0_93] : memref<1x128xf32, #tpu.memory_space<vmem>>, vector<1x128xf32>
    %72 = vector.broadcast %71 : vector<1x128xf32> to vector<288x128xf32>
    %73 = arith.addf %70, %72 : vector<288x128xf32>
    %c0_94 = arith.constant 0 : index
    %c0_95 = arith.constant 0 : index
    %c0_96 = arith.constant 0 : index
    %c0_97 = arith.constant 0 : index
    %74 = vector.load %arg6[%c0_94, %c0_95, %c0_96, %c0_97] : memref<1x1x288x128xf32, #tpu.memory_space<vmem>>, vector<1x1x288x128xf32>
    %75 = vector.shape_cast %74 : vector<1x1x288x128xf32> to vector<288x128xf32>
    %76 = vector.shape_cast %73 : vector<288x128xf32> to vector<1x1x288x128xf32>
    tpu.vector_store %arg6[%c0_94, %c0_95, %c0_96, %c0_97], %76 {strides = array<i32>} : memref<1x1x288x128xf32, #tpu.memory_space<vmem>>, vector<1x1x288x128xf32>,
    return
  }
  func.func @transform_0(%arg0: i32, %arg1: i32, %arg2: i32) -> (i32, i32, i32, i32) {
    %c0_i32 = arith.constant 0 : i32
    %c0_i32_0 = arith.constant 0 : i32
    %c0_i32_1 = arith.constant 0 : i32
    return %arg0, %arg1, %c0_i32, %c0_i32_0 : i32, i32, i32, i32
  }
  func.func @transform_1(%arg0: i32, %arg1: i32, %arg2: i32) -> (i32, i32, i32) {
    %c0_i32 = arith.constant 0 : i32
    %c0_i32_0 = arith.constant 0 : i32
    %c0_i32_1 = arith.constant 0 : i32
    return %c0_i32, %c0_i32_0, %arg2 : i32, i32, i32
  }
  func.func @transform_2(%arg0: i32, %arg1: i32, %arg2: i32) -> (i32, i32) {
    %c0_i32 = arith.constant 0 : i32
    %c0_i32_0 = arith.constant 0 : i32
    return %c0_i32, %arg2 : i32, i32
  }
  func.func @transform_3(%arg0: i32, %arg1: i32, %arg2: i32) -> (i32, i32, i32, i32) {
    %c0_i32 = arith.constant 0 : i32
    %c0_i32_0 = arith.constant 0 : i32
    return %arg0, %arg1, %c0_i32, %arg2 : i32, i32, i32, i32
  }
}

</mosaic_0001>

<llo_original>
// kernel: conv2d_same.1
$region0: #{conv2d_same.1}
  #allocation0 [shape = 'u32[]', space=smem, size = 0x4, offset = 0x4, fixed_abs, tag = 'smem constant byte address 0x4 - core index']
  #allocation1 [shape = 'u32[72,128]{1,0:T(1,128)}', space=vmem, size = 0x9000, scoped, tag = 'internal scratch']
  #allocation2 [shape = 'f32[288,128]{1,0:T(8,128)}', space=vmem, size = 0x24000, scoped, tag = 'scratch operand']
  %s0 = inlined_call_operand.vmem [shape: bf16[2,1,342,4], index: 0, kind: input, shape index: {}]
  %s1 = inlined_call_operand.vmem [shape: bf16[9,4,128], index: 1, kind: input, shape index: {}]
  %s2 = inlined_call_operand.vmem [shape: f32[1,128], index: 2, kind: input, shape index: {}]
  %s3 = inlined_call_operand.vmem [shape: f32[2,1,288,128], index: 3, kind: output, shape index: {}]
  %s4 = sld [smem:[#allocation0]]
  $region45: #{conv2d_same.1} parent=0
    _
  %s6 = ssub.s32 1, %s4
  %s7 = scalar_select 0, %s6, %s4
  loop: start=0, step=1, limit=4
  $region2: #{conv2d_same.1} parent=0 // loop_pre_header
    _
  $region3: #{conv2d_same.1} parent=0 // loop_header
    %s9 = sphi 0, %s13
    %p10 = scmp.ge.s32.totalorder %s9, 4
    %s16 = sphi 0, %s35
    %s17 = sphi 0, %s31
    %s18 = sphi 0, %s27
    %s19 = sphi 0, %s16
    %s20 = sphi 0, %s17
    %s21 = sphi 0, %s18
    %s22 = sphi 0, %s19
    %s23 = sphi 0, %s20
    %s24 = sphi 0, %s21
    %s40 = sphi 0, %s42
    %s43 = sphi 0, %s40
    %s44 = sphi 0, %s43
    %s60 = sphi 0, %s44
    %s66 = sphi 0, %s68
    %s69 = sphi 0, %s66
    %s70 = sphi 0, %s69
    %s86 = sphi 0, %s70
    %s92 = sphi 0, %s94
    %s95 = sphi 0, %s92
    %s96 = sphi 0, %s95
    %s112 = sphi 0, %s96
    %s122 = sphi 0, %s124
    %s125 = sphi 0, %s122
    %s126 = sphi 0, %s125
    %s142 = sphi 0, %s126
  $region4: #{conv2d_same.1} parent=0 // loop_header_branch
    %12 = sbr.rel (%p10) target = $region8
  $region5: #{conv2d_same.1} parent=0 // loop_body
    %s14 = ssub.s32 %s9, 1
    %s15 = ssub.s32 %s9, 2
    %s25 = sadd.s32 1, %s18
    %p26 = scmp.ge.s32.totalorder %s25, 1
    %s27 = scalar_select %p26, 0, %s25
    %s28 = sadd.s32 1, %s17
    %s29 = scalar_select %p26, %s28, %s17
    %p30 = scmp.ge.s32.totalorder %s29, 1
    %s31 = scalar_select %p30, 0, %s29
    %s32 = sadd.s32 1, %s16
    %s33 = scalar_select %p30, %s32, %s16
    %p34 = scmp.ge.s32.totalorder %s33, 2
    %s35 = scalar_select %p34, 0, %s33
    %s36 = ssub.s32 %s16, %s35
    %s37 = ssub.s32 %s17, %s31
    %s38 = sor.u32 %s36, %s37
    %p39 = scmp.eq.s32.totalorder %s38, 0
    %s41 = sadd.s32 %s40, 1
    %s42 = scalar_select %p39, %s40, %s41
    %p45 = pneg %p39
    %p46 = scmp.eq.s32.totalorder %s9, 1
    %p47 = por %p45, %p46
    %p48 = scmp.ne.s32.totalorder %s40, %s43
    %p49 = scmp.eq.s32.totalorder %s9, 0
    %p50 = por %p48, %p49
    %p51 = scmp.ne.s32.totalorder %s40, %s43
    %p52 = scmp.eq.s32.totalorder %s14, 1
    %p53 = por %p51, %p52
    %p54 = scmp.ne.s32.totalorder %s43, %s44
    %p55 = scmp.eq.s32.totalorder %s14, 0
    %p56 = por %p54, %p55
    %p57 = scmp.ne.s32.totalorder %s43, %s44
    %p58 = scmp.eq.s32.totalorder %s15, 1
    %p59 = por %p57, %p58
    %p61 = scmp.ne.s32.totalorder %s44, %s60
    %p62 = scmp.eq.s32.totalorder %s15, 0
    %p63 = por %p61, %p62
    %s64 = ssub.s32 %s18, %s27
    %p65 = scmp.eq.s32.totalorder %s64, 0
    %s67 = sadd.s32 %s66, 1
    %s68 = scalar_select %p65, %s66, %s67
    %p71 = pneg %p65
    %p72 = scmp.eq.s32.totalorder %s9, 1
    %p73 = por %p71, %p72
    %p74 = scmp.ne.s32.totalorder %s66, %s69
    %p75 = scmp.eq.s32.totalorder %s9, 0
    %p76 = por %p74, %p75
    %p77 = scmp.ne.s32.totalorder %s66, %s69
    %p78 = scmp.eq.s32.totalorder %s14, 1
    %p79 = por %p77, %p78
    %p80 = scmp.ne.s32.totalorder %s69, %s70
    %p81 = scmp.eq.s32.totalorder %s14, 0
    %p82 = por %p80, %p81
    %p83 = scmp.ne.s32.totalorder %s69, %s70
    %p84 = scmp.eq.s32.totalorder %s15, 1
    %p85 = por %p83, %p84
    %p87 = scmp.ne.s32.totalorder %s70, %s86
    %p88 = scmp.eq.s32.totalorder %s15, 0
    %p89 = por %p87, %p88
    %s90 = ssub.s32 %s18, %s27
    %p91 = scmp.eq.s32.totalorder %s90, 0
    %s93 = sadd.s32 %s92, 1
    %s94 = scalar_select %p91, %s92, %s93
    %p97 = pneg %p91
    %p98 = scmp.eq.s32.totalorder %s9, 1
    %p99 = por %p97, %p98
    %p100 = scmp.ne.s32.totalorder %s92, %s95
    %p101 = scmp.eq.s32.totalorder %s9, 0
    %p102 = por %p100, %p101
    %p103 = scmp.ne.s32.totalorder %s92, %s95
    %p104 = scmp.eq.s32.totalorder %s14, 1
    %p105 = por %p103, %p104
    %p106 = scmp.ne.s32.totalorder %s95, %s96
    %p107 = scmp.eq.s32.totalorder %s14, 0
    %p108 = por %p106, %p107
    %p109 = scmp.ne.s32.totalorder %s95, %s96
    %p110 = scmp.eq.s32.totalorder %s15, 1
    %p111 = por %p109, %p110
    %p113 = scmp.ne.s32.totalorder %s96, %s112
    %p114 = scmp.eq.s32.totalorder %s15, 0
    %p115 = por %p113, %p114
    %s116 = ssub.s32 %s16, %s35
    %s117 = ssub.s32 %s17, %s31
    %s118 = sor.u32 %s116, %s117
    %s119 = ssub.s32 %s18, %s27
    %s120 = sor.u32 %s118, %s119
    %p121 = scmp.eq.s32.totalorder %s120, 0
    %s123 = sadd.s32 %s122, 1
    %s124 = scalar_select %p121, %s122, %s123
    %p127 = pneg %p121
    %p128 = scmp.eq.s32.totalorder %s9, 1
    %p129 = por %p127, %p128
    %p130 = scmp.ne.s32.totalorder %s122, %s125
    %p131 = scmp.eq.s32.totalorder %s9, 0
    %p132 = por %p130, %p131
    %p133 = scmp.ne.s32.totalorder %s122, %s125
    %p134 = scmp.eq.s32.totalorder %s14, 1
    %p135 = por %p133, %p134
    %p136 = scmp.ne.s32.totalorder %s125, %s126
    %p137 = scmp.eq.s32.totalorder %s14, 0
    %p138 = por %p136, %p137
    %p139 = scmp.ne.s32.totalorder %s125, %s126
    %p140 = scmp.eq.s32.totalorder %s15, 1
    %p141 = por %p139, %p140
    %p143 = scmp.ne.s32.totalorder %s126, %s142
    %p144 = scmp.eq.s32.totalorder %s15, 0
    %p145 = por %p143, %p144
    %p146 = scmp.le.s32.totalorder 1, %s9
    %p147 = scmp.lt.s32.totalorder %s9, 3
    %p148 = pnand %p146, %p147
    %p149 = pneg %p148
    // Predicated region
    $region9: #{conv2d_same.1} parent=5 // pred_check
      _
    $region10: #{conv2d_same.1} parent=5 // pred_check_branch
      %151 = sbr.rel (%p148) target = $region12
    $region11: #{conv2d_same.1} parent=5 // pred_region
      %s152 = ssub.s32 %s9, 1
      // Predicated region
      $region13: #{conv2d_same.1} parent=11 // pred_check
        %p153 = pneg %p82
      $region14: #{conv2d_same.1} parent=11 // pred_check_branch
        %155 = sbr.rel (%p153) target = $region16
      $region15: #{conv2d_same.1} parent=11 // pred_region
        %p156 = scmp.lt.s32.totalorder %s21, 0
        %s157 = scalar_select %p156, %s21, 0
        %s158 = smul.addr %s157, 2
        %s159 = scalar_lea.vmem %s1, %s158
      $region16: #{conv2d_same.1} parent=11 // pred_fallthru
        _
      // Predicated region
      $region17: #{conv2d_same.1} parent=11 // pred_check
        %p160 = pneg %p108
      $region18: #{conv2d_same.1} parent=11 // pred_check_branch
        %162 = sbr.rel (%p160) target = $region20
      $region19: #{conv2d_same.1} parent=11 // pred_region
        %p163 = scmp.lt.s32.totalorder %s21, 0
        %s164 = scalar_select %p163, %s21, 0
        %s165 = scalar_lea.vmem %s2, %s164
      $region20: #{conv2d_same.1} parent=11 // pred_fallthru
        _
    $region12: #{conv2d_same.1} parent=5 // pred_fallthru
      _
    %p166 = scmp.lt.s32.totalorder %s9, 2
    // Predicated region
    $region21: #{conv2d_same.1} parent=5 // pred_check
      %p167 = pneg %p166
    $region22: #{conv2d_same.1} parent=5 // pred_check_branch
      %169 = sbr.rel (%p167) target = $region24
    $region23: #{conv2d_same.1} parent=5 // pred_region
      // Predicated region
      $region25: #{conv2d_same.1} parent=23 // pred_check
        %p170 = pneg %p50
      $region26: #{conv2d_same.1} parent=23 // pred_check_branch
        %172 = sbr.rel (%p170) target = $region28
      $region27: #{conv2d_same.1} parent=23 // pred_region
        %p173 = scmp.lt.s32.totalorder %s16, 1
        %s174 = scalar_select %p173, %s16, 1
        %p175 = scmp.lt.s32.totalorder %s17, 0
        %s176 = scalar_select %p175, %s17, 0
        %s177 = smul.addr %s176, 43
        %s178 = smul.addr %s174, 43
        %s179 = sadd.s32 %s177, %s178
        %s180 = smul.addr %s179, 4
        %s181 = scalar_lea.vmem %s0, %s180
      $region28: #{conv2d_same.1} parent=23 // pred_fallthru
        _
    $region24: #{conv2d_same.1} parent=5 // pred_fallthru
      _
    %p182 = scmp.le.s32.totalorder 1, %s9
    %p183 = scmp.lt.s32.totalorder %s9, 3
    %p184 = pnand %p182, %p183
    %p185 = pneg %p184
    // Predicated region
    $region29: #{conv2d_same.1} parent=5 // pred_check
      _
    $region30: #{conv2d_same.1} parent=5 // pred_check_branch
      %187 = sbr.rel (%p184) target = $region32
    $region31: #{conv2d_same.1} parent=5 // pred_region
      %s188 = ssub.s32 %s9, 1
      %p189 = scmp.lt.s32.totalorder %s19, 1
      %s190 = scalar_select %p189, %s19, 1
      %p191 = scmp.lt.s32.totalorder %s20, 0
      %s192 = scalar_select %p191, %s20, 0
      %s193 = smul.addr %s192, 43
      %s194 = smul.addr %s190, 43
      %s195 = sadd.s32 %s193, %s194
      %s196 = smul.addr %s195, 4
      %s197 = scalar_lea.vmem %s0, %s196
      %p198 = pneg %p56
      %p199 = pneg %p53
      %p200 = scmp.lt.s32.totalorder %s21, 0
      %s201 = scalar_select %p200, %s21, 0
      %s202 = smul.addr %s201, 2
      %s203 = scalar_lea.vmem %s1, %s202
      %p204 = pneg %p82
      %p205 = pneg %p79
      %p206 = scmp.lt.s32.totalorder %s21, 0
      %s207 = scalar_select %p206, %s21, 0
      %s208 = scalar_lea.vmem %s2, %s207
      %p209 = pneg %p108
      %p210 = pneg %p105
      %p211 = pneg %p138
      %p212 = pneg %p135
      %p213 = scmp.lt.s32.totalorder %s19, 1
      %s214 = scalar_select %p213, %s19, 1
      %p215 = scmp.lt.s32.totalorder %s20, 0
      %s216 = scalar_select %p215, %s20, 0
      %p217 = scmp.lt.s32.totalorder %s21, 0
      %s218 = scalar_select %p217, %s21, 0
      %s219 = smul.addr %s216, 36
      %s220 = sadd.s32 %s218, %s219
      %s221 = smul.addr %s214, 36
      %s222 = sadd.s32 %s220, %s221
      %s223 = smul.addr %s222, 8
      %s224 = scalar_lea.vmem %s3, %s223
      %p225 = scmp.lt.s32.totalorder %s19, 1
      %s226 = scalar_select %p225, %s19, 1
      %p227 = scmp.lt.s32.totalorder %s20, 0
      %s228 = scalar_select %p227, %s20, 0
      %s229 = smul.addr %s228, 43
      %s230 = smul.addr %s226, 43
      %s231 = sadd.s32 %s229, %s230
      %s232 = smul.addr %s231, 4
      %s233 = scalar_lea.vmem %s0, %s232
      %p234 = scmp.lt.s32.totalorder %s21, 0
      %s235 = scalar_select %p234, %s21, 0
      %s236 = smul.addr %s235, 2
      %s237 = scalar_lea.vmem %s1, %s236
      %p238 = scmp.lt.s32.totalorder %s21, 0
      %s239 = scalar_select %p238, %s21, 0
      %s240 = scalar_lea.vmem %s2, %s239
      %p241 = scmp.lt.s32.totalorder %s19, 1
      %s242 = scalar_select %p241, %s19, 1
      %p243 = scmp.lt.s32.totalorder %s20, 0
      %s244 = scalar_select %p243, %s20, 0
      %p245 = scmp.lt.s32.totalorder %s21, 0
      %s246 = scalar_select %p245, %s21, 0
      %s247 = smul.addr %s244, 36
      %s248 = sadd.s32 %s246, %s247
      %s249 = smul.addr %s242, 36
      %s250 = sadd.s32 %s248, %s249
      %s251 = smul.addr %s250, 8
      %s252 = scalar_lea.vmem %s3, %s251
      %v254 = vld [vmem:[%s233] sm:$0xf]
      %v255 = vld [vmem:[%s233 + $0x4] sm:$0xf]
      %v256 = vld [vmem:[%s233 + $0x8] sm:$0xf]
      %v257 = vld [vmem:[%s233 + $0xc] sm:$0xf]
      %v258 = vld [vmem:[%s233 + $0x10] sm:$0xf]
      %v259 = vld [vmem:[%s233 + $0x14] sm:$0xf]
      %v260 = vld [vmem:[%s233 + $0x18] sm:$0xf]
      %v261 = vld [vmem:[%s233 + $0x1c] sm:$0xf]
      %v262 = vld [vmem:[%s233 + $0x20] sm:$0xf]
      %v263 = vld [vmem:[%s233 + $0x24] sm:$0xf]
      %v264 = vld [vmem:[%s233 + $0x28] sm:$0xf]
      %v265 = vld [vmem:[%s233 + $0x2c] sm:$0xf]
      %v266 = vld [vmem:[%s233 + $0x30] sm:$0xf]
      %v267 = vld [vmem:[%s233 + $0x34] sm:$0xf]
      %v268 = vld [vmem:[%s233 + $0x38] sm:$0xf]
      %v269 = vld [vmem:[%s233 + $0x3c] sm:$0xf]
      %v270 = vld [vmem:[%s233 + $0x40] sm:$0xf]
      %v271 = vld [vmem:[%s233 + $0x44] sm:$0xf]
      %v272 = vld [vmem:[%s233 + $0x48] sm:$0xf]
      %v273 = vld [vmem:[%s233 + $0x4c] sm:$0xf]
      %v274 = vld [vmem:[%s233 + $0x50] sm:$0xf]
      %v275 = vld [vmem:[%s233 + $0x54] sm:$0xf]
      %v276 = vld [vmem:[%s233 + $0x58] sm:$0xf]
      %v277 = vld [vmem:[%s233 + $0x5c] sm:$0xf]
      %v278 = vld [vmem:[%s233 + $0x60] sm:$0xf]
      %v279 = vld [vmem:[%s233 + $0x64] sm:$0xf]
      %v280 = vld [vmem:[%s233 + $0x68] sm:$0xf]
      %v281 = vld [vmem:[%s233 + $0x6c] sm:$0xf]
      %v282 = vld [vmem:[%s233 + $0x70] sm:$0xf]
      %v283 = vld [vmem:[%s233 + $0x74] sm:$0xf]
      %v284 = vld [vmem:[%s233 + $0x78] sm:$0xf]
      %v285 = vld [vmem:[%s233 + $0x7c] sm:$0xf]
      %v286 = vld [vmem:[%s233 + $0x80] sm:$0xf]
      %v287 = vld [vmem:[%s233 + $0x84] sm:$0xf]
      %v288 = vld [vmem:[%s233 + $0x88] sm:$0xf]
      %v289 = vld [vmem:[%s233 + $0x8c] sm:$0xf]
      %v290 = vld [vmem:[%s237] sm:$0x3]
      %v327 = vunpack.c.l.b16 %v254
      %v328 = vunpack.c.l.b16 %v255
      %v329 = vunpack.c.l.b16 %v256
      %v330 = vunpack.c.l.b16 %v257
      %v331 = vunpack.c.l.b16 %v258
      %v332 = vunpack.c.l.b16 %v259
      %v333 = vunpack.c.l.b16 %v260
      %v334 = vunpack.c.l.b16 %v261
      %v335 = vunpack.c.l.b16 %v262
      %v336 = vunpack.c.l.b16 %v263
      %v337 = vunpack.c.l.b16 %v264
      %v338 = vunpack.c.l.b16 %v265
      %v339 = vunpack.c.l.b16 %v266
      %v340 = vunpack.c.l.b16 %v267
      %v341 = vunpack.c.l.b16 %v268
      %v342 = vunpack.c.l.b16 %v269
      %v343 = vunpack.c.l.b16 %v270
      %v344 = vunpack.c.l.b16 %v271
      %v345 = vunpack.c.l.b16 %v272
      %v346 = vunpack.c.l.b16 %v273
      %v347 = vunpack.c.l.b16 %v274
      %v348 = vunpack.c.l.b16 %v275
      %v349 = vunpack.c.l.b16 %v276
      %v350 = vunpack.c.l.b16 %v277
      %v351 = vunpack.c.l.b16 %v278
      %v352 = vunpack.c.l.b16 %v279
      %v353 = vunpack.c.l.b16 %v280
      %v354 = vunpack.c.l.b16 %v281
      %v355 = vunpack.c.l.b16 %v282
      %v356 = vunpack.c.l.b16 %v283
      %v357 = vunpack.c.l.b16 %v284
      %v358 = vunpack.c.l.b16 %v285
      %v359 = vunpack.c.l.b16 %v286
      %v360 = vunpack.c.l.b16 %v287
      %v361 = vunpack.c.l.b16 %v288
      %v362 = vunpack.c.l.b16 %v289
      %v363 = vpack.c.b16 %v328, %v327
      %v364 = vpack.c.b16 %v330, %v329
      %v365 = vpack.c.b16 %v332, %v331
      %v366 = vpack.c.b16 %v334, %v333
      %v367 = vpack.c.b16 %v336, %v335
      %v368 = vpack.c.b16 %v338, %v337
      %v369 = vpack.c.b16 %v340, %v339
      %v370 = vpack.c.b16 %v342, %v341
      %v371 = vpack.c.b16 %v344, %v343
      %v372 = vpack.c.b16 %v346, %v345
      %v373 = vpack.c.b16 %v348, %v347
      %v374 = vpack.c.b16 %v350, %v349
      %v375 = vpack.c.b16 %v352, %v351
      %v376 = vpack.c.b16 %v354, %v353
      %v377 = vpack.c.b16 %v356, %v355
      %v378 = vpack.c.b16 %v358, %v357
      %v379 = vpack.c.b16 %v360, %v359
      %v380 = vpack.c.b16 %v362, %v361
      %vm381 = vcmask 31744
      %v383 = vsel %vm381, %v363, 0
      %v386 = vsel %vm381, %v364, 0
      %v389 = vsel %vm381, %v365, 0
      %v392 = vsel %vm381, %v366, 0
      %v395 = vsel %vm381, %v367, 0
      %v398 = vsel %vm381, %v368, 0
      %v401 = vsel %vm381, %v369, 0
      %v404 = vsel %vm381, %v370, 0
      %v407 = vsel %vm381, %v371, 0
      %v410 = vsel %vm381, %v372, 0
      %v413 = vsel %vm381, %v373, 0
      %v416 = vsel %vm381, %v374, 0
      %v419 = vsel %vm381, %v375, 0
      %v422 = vsel %vm381, %v376, 0
      %v425 = vsel %vm381, %v377, 0
      %v428 = vsel %vm381, %v378, 0
      %v431 = vsel %vm381, %v379, 0
      %v434 = vsel %vm381, %v380, 0
      %vm436 = vcmask 1041408
      %v438 = vsel %vm436, %v290, 0
      %440 = vmatpush.bf16.msra.mxu0 0
      %441 = vmatpush.bf16.msra.mxu0 0
      %442 = vmatpush.bf16.msra.mxu0 0
      %443 = vmatpush.bf16.msra.mxu0 0
      %444 = vmatpush.bf16.msra.mxu0 0
      %445 = vmatpush.bf16.msra.mxu0 0
      %446 = vmatpush.bf16.msra.mxu0 0
      %447 = vmatpush.bf16.msra.mxu0 %v438
      %448 = vmatmul.bf16.gmra.mxu0 %v383
      %v449 = vpop.f32.mrf.mxu0
      %v450 = vadd.f32 0.0, %v449
      %v451 = vpop.f32.mrf.mxu0
      %v452 = vadd.f32 0.0, %v451
      %453 = vmatmul.bf16.gmra.mxu0 %v386
      %v454 = vpop.f32.mrf.mxu0
      %v455 = vadd.f32 0.0, %v454
      %v456 = vpop.f32.mrf.mxu0
      %v457 = vadd.f32 0.0, %v456
      %458 = vmatmul.bf16.gmra.mxu0 %v389
      %v459 = vpop.f32.mrf.mxu0
      %v460 = vadd.f32 0.0, %v459
      %v461 = vpop.f32.mrf.mxu0
      %v462 = vadd.f32 0.0, %v461
      %463 = vmatmul.bf16.gmra.mxu0 %v392
      %v464 = vpop.f32.mrf.mxu0
      %v465 = vadd.f32 0.0, %v464
      %v466 = vpop.f32.mrf.mxu0
      %v467 = vadd.f32 0.0, %v466
      %468 = vmatmul.bf16.gmra.mxu0 %v395
      %v469 = vpop.f32.mrf.mxu0
      %v470 = vadd.f32 0.0, %v469
      %v471 = vpop.f32.mrf.mxu0
      %v472 = vadd.f32 0.0, %v471
      %473 = vmatmul.bf16.gmra.mxu0 %v398
      %v474 = vpop.f32.mrf.mxu0
      %v475 = vadd.f32 0.0, %v474
      %v476 = vpop.f32.mrf.mxu0
      %v477 = vadd.f32 0.0, %v476
      %478 = vmatmul.bf16.gmra.mxu0 %v401
      %v479 = vpop.f32.mrf.mxu0
      %v480 = vadd.f32 0.0, %v479
      %v481 = vpop.f32.mrf.mxu0
      %v482 = vadd.f32 0.0, %v481
      %483 = vmatmul.bf16.gmra.mxu0 %v404
      %v484 = vpop.f32.mrf.mxu0
      %v485 = vadd.f32 0.0, %v484
      %v486 = vpop.f32.mrf.mxu0
      %v487 = vadd.f32 0.0, %v486
      %488 = vmatmul.bf16.gmra.mxu0 %v407
      %v489 = vpop.f32.mrf.mxu0
      %v490 = vadd.f32 0.0, %v489
      %v491 = vpop.f32.mrf.mxu0
      %v492 = vadd.f32 0.0, %v491
      %493 = vmatmul.bf16.gmra.mxu0 %v410
      %v494 = vpop.f32.mrf.mxu0
      %v495 = vadd.f32 0.0, %v494
      %v496 = vpop.f32.mrf.mxu0
      %v497 = vadd.f32 0.0, %v496
      %498 = vmatmul.bf16.gmra.mxu0 %v413
      %v499 = vpop.f32.mrf.mxu0
      %v500 = vadd.f32 0.0, %v499
      %v501 = vpop.f32.mrf.mxu0
      %v502 = vadd.f32 0.0, %v501
      %503 = vmatmul.bf16.gmra.mxu0 %v416
      %v504 = vpop.f32.mrf.mxu0
      %v505 = vadd.f32 0.0, %v504
      %v506 = vpop.f32.mrf.mxu0
      %v507 = vadd.f32 0.0, %v506
      %508 = vmatmul.bf16.gmra.mxu0 %v419
      %v509 = vpop.f32.mrf.mxu0
      %v510 = vadd.f32 0.0, %v509
      %v511 = vpop.f32.mrf.mxu0
      %v512 = vadd.f32 0.0, %v511
      %513 = vmatmul.bf16.gmra.mxu0 %v422
      %v514 = vpop.f32.mrf.mxu0
      %v515 = vadd.f32 0.0, %v514
      %v516 = vpop.f32.mrf.mxu0
      %v517 = vadd.f32 0.0, %v516
      %518 = vmatmul.bf16.gmra.mxu0 %v425
      %v519 = vpop.f32.mrf.mxu0
      %v520 = vadd.f32 0.0, %v519
      %v521 = vpop.f32.mrf.mxu0
      %v522 = vadd.f32 0.0, %v521
      %523 = vmatmul.bf16.gmra.mxu0 %v428
      %v524 = vpop.f32.mrf.mxu0
      %v525 = vadd.f32 0.0, %v524
      %v526 = vpop.f32.mrf.mxu0
      %v527 = vadd.f32 0.0, %v526
      %528 = vmatmul.bf16.gmra.mxu0 %v431
      %v529 = vpop.f32.mrf.mxu0
      %v530 = vadd.f32 0.0, %v529
      %v531 = vpop.f32.mrf.mxu0
      %v532 = vadd.f32 0.0, %v531
      %533 = vmatmul.bf16.gmra.mxu0 %v434
      %v534 = vpop.f32.mrf.mxu0
      %v535 = vadd.f32 0.0, %v534
      %v536 = vpop.f32.mrf.mxu0
      %v537 = vadd.f32 0.0, %v536
      %538 = vdwg.mxu0
      %539 = vst [vmem:[#allocation2] sm:$0xff] %v450
      %540 = vst [vmem:[#allocation2 + $0x8] sm:$0xff] %v452
      %541 = vst [vmem:[#allocation2 + $0x10] sm:$0xff] %v455
      %542 = vst [vmem:[#allocation2 + $0x18] sm:$0xff] %v457
      %543 = vst [vmem:[#allocation2 + $0x20] sm:$0xff] %v460
      %544 = vst [vmem:[#allocation2 + $0x28] sm:$0xff] %v462
      %545 = vst [vmem:[#allocation2 + $0x30] sm:$0xff] %v465
      %546 = vst [vmem:[#allocation2 + $0x38] sm:$0xff] %v467
      %547 = vst [vmem:[#allocation2 + $0x40] sm:$0xff] %v470
      %548 = vst [vmem:[#allocation2 + $0x48] sm:$0xff] %v472
      %549 = vst [vmem:[#allocation2 + $0x50] sm:$0xff] %v475
      %550 = vst [vmem:[#allocation2 + $0x58] sm:$0xff] %v477
      %551 = vst [vmem:[#allocation2 + $0x60] sm:$0xff] %v480
      %552 = vst [vmem:[#allocation2 + $0x68] sm:$0xff] %v482
      %553 = vst [vmem:[#allocation2 + $0x70] sm:$0xff] %v485
      %554 = vst [vmem:[#allocation2 + $0x78] sm:$0xff] %v487
      %555 = vst [vmem:[#allocation2 + $0x80] sm:$0xff] %v490
      %556 = vst [vmem:[#allocation2 + $0x88] sm:$0xff] %v492
      %557 = vst [vmem:[#allocation2 + $0x90] sm:$0xff] %v495
      %558 = vst [vmem:[#allocation2 + $0x98] sm:$0xff] %v497
      %559 = vst [vmem:[#allocation2 + $0xa0] sm:$0xff] %v500
      %560 = vst [vmem:[#allocation2 + $0xa8] sm:$0xff] %v502
      %561 = vst [vmem:[#allocation2 + $0xb0] sm:$0xff] %v505
      %562 = vst [vmem:[#allocation2 + $0xb8] sm:$0xff] %v507
      %563 = vst [vmem:[#allocation2 + $0xc0] sm:$0xff] %v510
      %564 = vst [vmem:[#allocation2 + $0xc8] sm:$0xff] %v512
      %565 = vst [vmem:[#allocation2 + $0xd0] sm:$0xff] %v515
      %566 = vst [vmem:[#allocation2 + $0xd8] sm:$0xff] %v517
      %567 = vst [vmem:[#allocation2 + $0xe0] sm:$0xff] %v520
      %568 = vst [vmem:[#allocation2 + $0xe8] sm:$0xff] %v522
      %569 = vst [vmem:[#allocation2 + $0xf0] sm:$0xff] %v525
      %570 = vst [vmem:[#allocation2 + $0xf8] sm:$0xff] %v527
      %571 = vst [vmem:[#allocation2 + $0x100] sm:$0xff] %v530
      %572 = vst [vmem:[#allocation2 + $0x108] sm:$0xff] %v532
      %573 = vst [vmem:[#allocation2 + $0x110] sm:$0xff] %v535
      %574 = vst [vmem:[#allocation2 + $0x118] sm:$0xff] %v537
      %v575 = vld [vmem:[%s233] sm:$0xf]
      %v576 = vld [vmem:[%s233 + $0x4] sm:$0xf]
      %v577 = vld [vmem:[%s233 + $0x8] sm:$0xf]
      %v578 = vld [vmem:[%s233 + $0xc] sm:$0xf]
      %v579 = vld [vmem:[%s233 + $0x10] sm:$0xf]
      %v580 = vld [vmem:[%s233 + $0x14] sm:$0xf]
      %v581 = vld [vmem:[%s233 + $0x18] sm:$0xf]
      %v582 = vld [vmem:[%s233 + $0x1c] sm:$0xf]
      %v583 = vld [vmem:[%s233 + $0x20] sm:$0xf]
      %v584 = vld [vmem:[%s233 + $0x24] sm:$0xf]
      %v585 = vld [vmem:[%s233 + $0x28] sm:$0xf]
      %v586 = vld [vmem:[%s233 + $0x2c] sm:$0xf]
      %v587 = vld [vmem:[%s233 + $0x30] sm:$0xf]
      %v588 = vld [vmem:[%s233 + $0x34] sm:$0xf]
      %v589 = vld [vmem:[%s233 + $0x38] sm:$0xf]
      %v590 = vld [vmem:[%s233 + $0x3c] sm:$0xf]
      %v591 = vld [vmem:[%s233 + $0x40] sm:$0xf]
      %v592 = vld [vmem:[%s233 + $0x44] sm:$0xf]
      %v593 = vld [vmem:[%s233 + $0x48] sm:$0xf]
      %v594 = vld [vmem:[%s233 + $0x4c] sm:$0xf]
      %v595 = vld [vmem:[%s233 + $0x50] sm:$0xf]
      %v596 = vld [vmem:[%s233 + $0x54] sm:$0xf]
      %v597 = vld [vmem:[%s233 + $0x58] sm:$0xf]
      %v598 = vld [vmem:[%s233 + $0x5c] sm:$0xf]
      %v599 = vld [vmem:[%s233 + $0x60] sm:$0xf]
      %v600 = vld [vmem:[%s233 + $0x64] sm:$0xf]
      %v601 = vld [vmem:[%s233 + $0x68] sm:$0xf]
      %v602 = vld [vmem:[%s233 + $0x6c] sm:$0xf]
      %v603 = vld [vmem:[%s233 + $0x70] sm:$0xf]
      %v604 = vld [vmem:[%s233 + $0x74] sm:$0xf]
      %v605 = vld [vmem:[%s233 + $0x78] sm:$0xf]
      %v606 = vld [vmem:[%s233 + $0x7c] sm:$0xf]
      %v607 = vld [vmem:[%s233 + $0x80] sm:$0xf]
      %v608 = vld [vmem:[%s233 + $0x84] sm:$0xf]
      %v609 = vld [vmem:[%s233 + $0x88] sm:$0xf]
      %v610 = vld [vmem:[%s233 + $0x8c] sm:$0xf]
      %v611 = vld [vmem:[%s233 + $0x90] sm:$0x1]
      %s612 = scalar_lea.vmem %s237, 2
      %v613 = vld [vmem:[%s612] sm:$0x3]
      %v651 = vunpack.c.l.b16 %v575
      %v652 = vunpack.c.l.b16 %v576
      %v653 = vunpack.c.l.b16 %v577
      %v654 = vunpack.c.l.b16 %v578
      %v655 = vunpack.c.l.b16 %v579
      %v656 = vunpack.c.l.b16 %v580
      %v657 = vunpack.c.l.b16 %v581
      %v658 = vunpack.c.l.b16 %v582
      %v659 = vunpack.c.l.b16 %v583
      %v660 = vunpack.c.l.b16 %v584
      %v661 = vunpack.c.l.b16 %v585
      %v662 = vunpack.c.l.b16 %v586
      %v663 = vunpack.c.l.b16 %v587
      %v664 = vunpack.c.l.b16 %v588
      %v665 = vunpack.c.l.b16 %v589
      %v666 = vunpack.c.l.b16 %v590
      %v667 = vunpack.c.l.b16 %v591
      %v668 = vunpack.c.l.b16 %v592
      %v669 = vunpack.c.l.b16 %v593
      %v670 = vunpack.c.l.b16 %v594
      %v671 = vunpack.c.l.b16 %v595
      %v672 = vunpack.c.l.b16 %v596
      %v673 = vunpack.c.l.b16 %v597
      %v674 = vunpack.c.l.b16 %v598
      %v675 = vunpack.c.l.b16 %v599
      %v676 = vunpack.c.l.b16 %v600
      %v677 = vunpack.c.l.b16 %v601
      %v678 = vunpack.c.l.b16 %v602
      %v679 = vunpack.c.l.b16 %v603
      %v680 = vunpack.c.l.b16 %v604
      %v681 = vunpack.c.l.b16 %v605
      %v682 = vunpack.c.l.b16 %v606
      %v683 = vunpack.c.l.b16 %v607
      %v684 = vunpack.c.l.b16 %v608
      %v685 = vunpack.c.l.b16 %v609
      %v686 = vunpack.c.l.b16 %v610
      %v687 = vunpack.c.l.b16 %v611
      %v688 = vpack.c.b16 %v652, %v651
      %v689 = vpack.c.b16 %v654, %v653
      %v690 = vpack.c.b16 %v656, %v655
      %v691 = vpack.c.b16 %v658, %v657
      %v692 = vpack.c.b16 %v660, %v659
      %v693 = vpack.c.b16 %v662, %v661
      %v694 = vpack.c.b16 %v664, %v663
      %v695 = vpack.c.b16 %v666, %v665
      %v696 = vpack.c.b16 %v668, %v667
      %v697 = vpack.c.b16 %v670, %v669
      %v698 = vpack.c.b16 %v672, %v671
      %v699 = vpack.c.b16 %v674, %v673
      %v700 = vpack.c.b16 %v676, %v675
      %v701 = vpack.c.b16 %v678, %v677
      %v702 = vpack.c.b16 %v680, %v679
      %v703 = vpack.c.b16 %v682, %v681
      %v704 = vpack.c.b16 %v684, %v683
      %v705 = vpack.c.b16 %v686, %v685
      %v706 = vpack.c.b16 %v687, %v687
      %vm707 = vsmask.f32 7424
      %v709 = vshrl.u32 %v688, 16
      %v711 = vshll.u32 %v688, 16
      %v713 = vrot.slane %v711, 1
      %v714 = vor.u32 %v709, %v713
      %v716 = vshll.u32 %v689, 16
      %v718 = vrot.slane %v716, 1
      %v719 = vsel %vm707, %v714, %v718
      %v720 = vshrl.u32 %v689, 16
      %v722 = vor.u32 %v720, %v718
      %v724 = vshll.u32 %v690, 16
      %v726 = vrot.slane %v724, 1
      %v727 = vsel %vm707, %v722, %v726
      %v728 = vshrl.u32 %v690, 16
      %v730 = vor.u32 %v728, %v726
      %v732 = vshll.u32 %v691, 16
      %v734 = vrot.slane %v732, 1
      %v735 = vsel %vm707, %v730, %v734
      %v736 = vshrl.u32 %v691, 16
      %v738 = vor.u32 %v736, %v734
      %v740 = vshll.u32 %v692, 16
      %v742 = vrot.slane %v740, 1
      %v743 = vsel %vm707, %v738, %v742
      %v744 = vshrl.u32 %v692, 16
      %v746 = vor.u32 %v744, %v742
      %v748 = vshll.u32 %v693, 16
      %v750 = vrot.slane %v748, 1
      %v751 = vsel %vm707, %v746, %v750
      %v752 = vshrl.u32 %v693, 16
      %v754 = vor.u32 %v752, %v750
      %v756 = vshll.u32 %v694, 16
      %v758 = vrot.slane %v756, 1
      %v759 = vsel %vm707, %v754, %v758
      %v760 = vshrl.u32 %v694, 16
      %v762 = vor.u32 %v760, %v758
      %v764 = vshll.u32 %v695, 16
      %v766 = vrot.slane %v764, 1
      %v767 = vsel %vm707, %v762, %v766
      %v768 = vshrl.u32 %v695, 16
      %v770 = vor.u32 %v768, %v766
      %v772 = vshll.u32 %v696, 16
      %v774 = vrot.slane %v772, 1
      %v775 = vsel %vm707, %v770, %v774
      %v776 = vshrl.u32 %v696, 16
      %v778 = vor.u32 %v776, %v774
      %v780 = vshll.u32 %v697, 16
      %v782 = vrot.slane %v780, 1
      %v783 = vsel %vm707, %v778, %v782
      %v784 = vshrl.u32 %v697, 16
      %v786 = vor.u32 %v784, %v782
      %v788 = vshll.u32 %v698, 16
      %v790 = vrot.slane %v788, 1
      %v791 = vsel %vm707, %v786, %v790
      %v792 = vshrl.u32 %v698, 16
      %v794 = vor.u32 %v792, %v790
      %v796 = vshll.u32 %v699, 16
      %v798 = vrot.slane %v796, 1
      %v799 = vsel %vm707, %v794, %v798
      %v800 = vshrl.u32 %v699, 16
      %v802 = vor.u32 %v800, %v798
      %v804 = vshll.u32 %v700, 16
      %v806 = vrot.slane %v804, 1
      %v807 = vsel %vm707, %v802, %v806
      %v808 = vshrl.u32 %v700, 16
      %v810 = vor.u32 %v808, %v806
      %v812 = vshll.u32 %v701, 16
      %v814 = vrot.slane %v812, 1
      %v815 = vsel %vm707, %v810, %v814
      %v816 = vshrl.u32 %v701, 16
      %v818 = vor.u32 %v816, %v814
      %v820 = vshll.u32 %v702, 16
      %v822 = vrot.slane %v820, 1
      %v823 = vsel %vm707, %v818, %v822
      %v824 = vshrl.u32 %v702, 16
      %v826 = vor.u32 %v824, %v822
      %v828 = vshll.u32 %v703, 16
      %v830 = vrot.slane %v828, 1
      %v831 = vsel %vm707, %v826, %v830
      %v832 = vshrl.u32 %v703, 16
      %v834 = vor.u32 %v832, %v830
      %v836 = vshll.u32 %v704, 16
      %v838 = vrot.slane %v836, 1
      %v839 = vsel %vm707, %v834, %v838
      %v840 = vshrl.u32 %v704, 16
      %v842 = vor.u32 %v840, %v838
      %v844 = vshll.u32 %v705, 16
      %v846 = vrot.slane %v844, 1
      %v847 = vsel %vm707, %v842, %v846
      %v848 = vshrl.u32 %v705, 16
      %v850 = vor.u32 %v848, %v846
      %v852 = vshll.u32 %v706, 16
      %v854 = vrot.slane %v852, 1
      %v855 = vsel %vm707, %v850, %v854
      %v857 = vsel %vm381, %v719, 0
      %v860 = vsel %vm381, %v727, 0
      %v863 = vsel %vm381, %v735, 0
      %v866 = vsel %vm381, %v743, 0
      %v869 = vsel %vm381, %v751, 0
      %v872 = vsel %vm381, %v759, 0
      %v875 = vsel %vm381, %v767, 0
      %v878 = vsel %vm381, %v775, 0
      %v881 = vsel %vm381, %v783, 0
      %v884 = vsel %vm381, %v791, 0
      %v887 = vsel %vm381, %v799, 0
      %v890 = vsel %vm381, %v807, 0
      %v893 = vsel %vm381, %v815, 0
      %v896 = vsel %vm381, %v823, 0
      %v899 = vsel %vm381, %v831, 0
      %v902 = vsel %vm381, %v839, 0
      %v905 = vsel %vm381, %v847, 0
      %v908 = vsel %vm381, %v855, 0
      %v911 = vsel %vm436, %v613, 0
      %913 = vmatpush.bf16.msra.mxu0 0
      %914 = vmatpush.bf16.msra.mxu0 0
      %915 = vmatpush.bf16.msra.mxu0 0
      %916 = vmatpush.bf16.msra.mxu0 0
      %917 = vmatpush.bf16.msra.mxu0 0
      %918 = vmatpush.bf16.msra.mxu0 0
      %919 = vmatpush.bf16.msra.mxu0 0
      %920 = vmatpush.bf16.msra.mxu0 %v911
      %921 = vmatmul.bf16.gmra.mxu0 %v857
      %v922 = vpop.f32.mrf.mxu0
      %v923 = vadd.f32 0.0, %v922
      %v924 = vpop.f32.mrf.mxu0
      %v925 = vadd.f32 0.0, %v924
      %926 = vmatmul.bf16.gmra.mxu0 %v860
      %v927 = vpop.f32.mrf.mxu0
      %v928 = vadd.f32 0.0, %v927
      %v929 = vpop.f32.mrf.mxu0
      %v930 = vadd.f32 0.0, %v929
      %931 = vmatmul.bf16.gmra.mxu0 %v863
      %v932 = vpop.f32.mrf.mxu0
      %v933 = vadd.f32 0.0, %v932
      %v934 = vpop.f32.mrf.mxu0
      %v935 = vadd.f32 0.0, %v934
      %936 = vmatmul.bf16.gmra.mxu0 %v866
      %v937 = vpop.f32.mrf.mxu0
      %v938 = vadd.f32 0.0, %v937
      %v939 = vpop.f32.mrf.mxu0
      %v940 = vadd.f32 0.0, %v939
      %941 = vmatmul.bf16.gmra.mxu0 %v869
      %v942 = vpop.f32.mrf.mxu0
      %v943 = vadd.f32 0.0, %v942
      %v944 = vpop.f32.mrf.mxu0
      %v945 = vadd.f32 0.0, %v944
      %946 = vmatmul.bf16.gmra.mxu0 %v872
      %v947 = vpop.f32.mrf.mxu0
      %v948 = vadd.f32 0.0, %v947
      %v949 = vpop.f32.mrf.mxu0
      %v950 = vadd.f32 0.0, %v949
      %951 = vmatmul.bf16.gmra.mxu0 %v875
      %v952 = vpop.f32.mrf.mxu0
      %v953 = vadd.f32 0.0, %v952
      %v954 = vpop.f32.mrf.mxu0
      %v955 = vadd.f32 0.0, %v954
      %956 = vmatmul.bf16.gmra.mxu0 %v878
      %v957 = vpop.f32.mrf.mxu0
      %v958 = vadd.f32 0.0, %v957
      %v959 = vpop.f32.mrf.mxu0
      %v960 = vadd.f32 0.0, %v959
      %961 = vmatmul.bf16.gmra.mxu0 %v881
      %v962 = vpop.f32.mrf.mxu0
      %v963 = vadd.f32 0.0, %v962
      %v964 = vpop.f32.mrf.mxu0
      %v965 = vadd.f32 0.0, %v964
      %966 = vmatmul.bf16.gmra.mxu0 %v884
      %v967 = vpop.f32.mrf.mxu0
      %v968 = vadd.f32 0.0, %v967
      %v969 = vpop.f32.mrf.mxu0
      %v970 = vadd.f32 0.0, %v969
      %971 = vmatmul.bf16.gmra.mxu0 %v887
      %v972 = vpop.f32.mrf.mxu0
      %v973 = vadd.f32 0.0, %v972
      %v974 = vpop.f32.mrf.mxu0
      %v975 = vadd.f32 0.0, %v974
      %976 = vmatmul.bf16.gmra.mxu0 %v890
      %v977 = vpop.f32.mrf.mxu0
      %v978 = vadd.f32 0.0, %v977
      %v979 = vpop.f32.mrf.mxu0
      %v980 = vadd.f32 0.0, %v979
      %981 = vmatmul.bf16.gmra.mxu0 %v893
      %v982 = vpop.f32.mrf.mxu0
      %v983 = vadd.f32 0.0, %v982
      %v984 = vpop.f32.mrf.mxu0
      %v985 = vadd.f32 0.0, %v984
      %986 = vmatmul.bf16.gmra.mxu0 %v896
      %v987 = vpop.f32.mrf.mxu0
      %v988 = vadd.f32 0.0, %v987
      %v989 = vpop.f32.mrf.mxu0
      %v990 = vadd.f32 0.0, %v989
      %991 = vmatmul.bf16.gmra.mxu0 %v899
      %v992 = vpop.f32.mrf.mxu0
      %v993 = vadd.f32 0.0, %v992
      %v994 = vpop.f32.mrf.mxu0
      %v995 = vadd.f32 0.0, %v994
      %996 = vmatmul.bf16.gmra.mxu0 %v902
      %v997 = vpop.f32.mrf.mxu0
      %v998 = vadd.f32 0.0, %v997
      %v999 = vpop.f32.mrf.mxu0
      %v1000 = vadd.f32 0.0, %v999
      %1001 = vmatmul.bf16.gmra.mxu0 %v905
      %v1002 = vpop.f32.mrf.mxu0
      %v1003 = vadd.f32 0.0, %v1002
      %v1004 = vpop.f32.mrf.mxu0
      %v1005 = vadd.f32 0.0, %v1004
      %1006 = vmatmul.bf16.gmra.mxu0 %v908
      %v1007 = vpop.f32.mrf.mxu0
      %v1008 = vadd.f32 0.0, %v1007
      %v1009 = vpop.f32.mrf.mxu0
      %v1010 = vadd.f32 0.0, %v1009
      %1011 = vdwg.mxu0
      %v1012 = vld [vmem:[#allocation2] sm:$0xff]
      %v1013 = vld [vmem:[#allocation2 + $0x8] sm:$0xff]
      %v1014 = vld [vmem:[#allocation2 + $0x10] sm:$0xff]
      %v1015 = vld [vmem:[#allocation2 + $0x18] sm:$0xff]
      %v1016 = vld [vmem:[#allocation2 + $0x20] sm:$0xff]
      %v1017 = vld [vmem:[#allocation2 + $0x28] sm:$0xff]
      %v1018 = vld [vmem:[#allocation2 + $0x30] sm:$0xff]
      %v1019 = vld [vmem:[#allocation2 + $0x38] sm:$0xff]
      %v1020 = vld [vmem:[#allocation2 + $0x40] sm:$0xff]
      %v1021 = vld [vmem:[#allocation2 + $0x48] sm:$0xff]
      %v1022 = vld [vmem:[#allocation2 + $0x50] sm:$0xff]
      %v1023 = vld [vmem:[#allocation2 + $0x58] sm:$0xff]
      %v1024 = vld [vmem:[#allocation2 + $0x60] sm:$0xff]
      %v1025 = vld [vmem:[#allocation2 + $0x68] sm:$0xff]
      %v1026 = vld [vmem:[#allocation2 + $0x70] sm:$0xff]
      %v1027 = vld [vmem:[#allocation2 + $0x78] sm:$0xff]
      %v1028 = vld [vmem:[#allocation2 + $0x80] sm:$0xff]
      %v1029 = vld [vmem:[#allocation2 + $0x88] sm:$0xff]
      %v1030 = vld [vmem:[#allocation2 + $0x90] sm:$0xff]
      %v1031 = vld [vmem:[#allocation2 + $0x98] sm:$0xff]
      %v1032 = vld [vmem:[#allocation2 + $0xa0] sm:$0xff]
      %v1033 = vld [vmem:[#allocation2 + $0xa8] sm:$0xff]
      %v1034 = vld [vmem:[#allocation2 + $0xb0] sm:$0xff]
      %v1035 = vld [vmem:[#allocation2 + $0xb8] sm:$0xff]
      %v1036 = vld [vmem:[#allocation2 + $0xc0] sm:$0xff]
      %v1037 = vld [vmem:[#allocation2 + $0xc8] sm:$0xff]
      %v1038 = vld [vmem:[#allocation2 + $0xd0] sm:$0xff]
      %v1039 = vld [vmem:[#allocation2 + $0xd8] sm:$0xff]
      %v1040 = vld [vmem:[#allocation2 + $0xe0] sm:$0xff]
      %v1041 = vld [vmem:[#allocation2 + $0xe8] sm:$0xff]
      %v1042 = vld [vmem:[#allocation2 + $0xf0] sm:$0xff]
      %v1043 = vld [vmem:[#allocation2 + $0xf8] sm:$0xff]
      %v1044 = vld [vmem:[#allocation2 + $0x100] sm:$0xff]
      %v1045 = vld [vmem:[#allocation2 + $0x108] sm:$0xff]
      %v1046 = vld [vmem:[#allocation2 + $0x110] sm:$0xff]
      %v1047 = vld [vmem:[#allocation2 + $0x118] sm:$0xff]
      %v1048 = vadd.f32 %v1012, %v923
      %v1049 = vadd.f32 %v1013, %v925
      %v1050 = vadd.f32 %v1014, %v928
      %v1051 = vadd.f32 %v1015, %v930
      %v1052 = vadd.f32 %v1016, %v933
      %v1053 = vadd.f32 %v1017, %v935
      %v1054 = vadd.f32 %v1018, %v938
      %v1055 = vadd.f32 %v1019, %v940
      %v1056 = vadd.f32 %v1020, %v943
      %v1057 = vadd.f32 %v1021, %v945
      %v1058 = vadd.f32 %v1022, %v948
      %v1059 = vadd.f32 %v1023, %v950
      %v1060 = vadd.f32 %v1024, %v953
      %v1061 = vadd.f32 %v1025, %v955
      %v1062 = vadd.f32 %v1026, %v958
      %v1063 = vadd.f32 %v1027, %v960
      %v1064 = vadd.f32 %v1028, %v963
      %v1065 = vadd.f32 %v1029, %v965
      %v1066 = vadd.f32 %v1030, %v968
      %v1067 = vadd.f32 %v1031, %v970
      %v1068 = vadd.f32 %v1032, %v973
      %v1069 = vadd.f32 %v1033, %v975
      %v1070 = vadd.f32 %v1034, %v978
      %v1071 = vadd.f32 %v1035, %v980
      %v1072 = vadd.f32 %v1036, %v983
      %v1073 = vadd.f32 %v1037, %v985
      %v1074 = vadd.f32 %v1038, %v988
      %v1075 = vadd.f32 %v1039, %v990
      %v1076 = vadd.f32 %v1040, %v993
      %v1077 = vadd.f32 %v1041, %v995
      %v1078 = vadd.f32 %v1042, %v998
      %v1079 = vadd.f32 %v1043, %v1000
      %v1080 = vadd.f32 %v1044, %v1003
      %v1081 = vadd.f32 %v1045, %v1005
      %v1082 = vadd.f32 %v1046, %v1008
      %v1083 = vadd.f32 %v1047, %v1010
      %1084 = vst [vmem:[#allocation2] sm:$0xff] %v1048
      %1085 = vst [vmem:[#allocation2 + $0x8] sm:$0xff] %v1049
      %1086 = vst [vmem:[#allocation2 + $0x10] sm:$0xff] %v1050
      %1087 = vst [vmem:[#allocation2 + $0x18] sm:$0xff] %v1051
      %1088 = vst [vmem:[#allocation2 + $0x20] sm:$0xff] %v1052
      %1089 = vst [vmem:[#allocation2 + $0x28] sm:$0xff] %v1053
      %1090 = vst [vmem:[#allocation2 + $0x30] sm:$0xff] %v1054
      %1091 = vst [vmem:[#allocation2 + $0x38] sm:$0xff] %v1055
      %1092 = vst [vmem:[#allocation2 + $0x40] sm:$0xff] %v1056
      %1093 = vst [vmem:[#allocation2 + $0x48] sm:$0xff] %v1057
      %1094 = vst [vmem:[#allocation2 + $0x50] sm:$0xff] %v1058
      %1095 = vst [vmem:[#allocation2 + $0x58] sm:$0xff] %v1059
      %1096 = vst [vmem:[#allocation2 + $0x60] sm:$0xff] %v1060
      %1097 = vst [vmem:[#allocation2 + $0x68] sm:$0xff] %v1061
      %1098 = vst [vmem:[#allocation2 + $0x70] sm:$0xff] %v1062
      %1099 = vst [vmem:[#allocation2 + $0x78] sm:$0xff] %v1063
      %1100 = vst [vmem:[#allocation2 + $0x80] sm:$0xff] %v1064
      %1101 = vst [vmem:[#allocation2 + $0x88] sm:$0xff] %v1065
      %1102 = vst [vmem:[#allocation2 + $0x90] sm:$0xff] %v1066
      %1103 = vst [vmem:[#allocation2 + $0x98] sm:$0xff] %v1067
      %1104 = vst [vmem:[#allocation2 + $0xa0] sm:$0xff] %v1068
      %1105 = vst [vmem:[#allocation2 + $0xa8] sm:$0xff] %v1069
      %1106 = vst [vmem:[#allocation2 + $0xb0] sm:$0xff] %v1070
      %1107 = vst [vmem:[#allocation2 + $0xb8] sm:$0xff] %v1071
      %1108 = vst [vmem:[#allocation2 + $0xc0] sm:$0xff] %v1072
      %1109 = vst [vmem:[#allocation2 + $0xc8] sm:$0xff] %v1073
      %1110 = vst [vmem:[#allocation2 + $0xd0] sm:$0xff] %v1074
      %1111 = vst [vmem:[#allocation2 + $0xd8] sm:$0xff] %v1075
      %1112 = vst [vmem:[#allocation2 + $0xe0] sm:$0xff] %v1076
      %1113 = vst [vmem:[#allocation2 + $0xe8] sm:$0xff] %v1077
      %1114 = vst [vmem:[#allocation2 + $0xf0] sm:$0xff] %v1078
      %1115 = vst [vmem:[#allocation2 + $0xf8] sm:$0xff] %v1079
      %1116 = vst [vmem:[#allocation2 + $0x100] sm:$0xff] %v1080
      %1117 = vst [vmem:[#allocation2 + $0x108] sm:$0xff] %v1081
      %1118 = vst [vmem:[#allocation2 + $0x110] sm:$0xff] %v1082
      %1119 = vst [vmem:[#allocation2 + $0x118] sm:$0xff] %v1083
      %v1120 = vld [vmem:[%s233] sm:$0xe]
      %v1121 = vld [vmem:[%s233 + $0x4] sm:$0xf]
      %v1122 = vld [vmem:[%s233 + $0x8] sm:$0xf]
      %v1123 = vld [vmem:[%s233 + $0xc] sm:$0xf]
      %v1124 = vld [vmem:[%s233 + $0x10] sm:$0xf]
      %v1125 = vld [vmem:[%s233 + $0x14] sm:$0xf]
      %v1126 = vld [vmem:[%s233 + $0x18] sm:$0xf]
      %v1127 = vld [vmem:[%s233 + $0x1c] sm:$0xf]
      %v1128 = vld [vmem:[%s233 + $0x20] sm:$0xf]
      %v1129 = vld [vmem:[%s233 + $0x24] sm:$0xf]
      %v1130 = vld [vmem:[%s233 + $0x28] sm:$0xf]
      %v1131 = vld [vmem:[%s233 + $0x2c] sm:$0xf]
      %v1132 = vld [vmem:[%s233 + $0x30] sm:$0xf]
      %v1133 = vld [vmem:[%s233 + $0x34] sm:$0xf]
      %v1134 = vld [vmem:[%s233 + $0x38] sm:$0xf]
      %v1135 = vld [vmem:[%s233 + $0x3c] sm:$0xf]
      %v1136 = vld [vmem:[%s233 + $0x40] sm:$0xf]
      %v1137 = vld [vmem:[%s233 + $0x44] sm:$0xf]
      %v1138 = vld [vmem:[%s233 + $0x48] sm:$0xf]
      %v1139 = vld [vmem:[%s233 + $0x4c] sm:$0xf]
      %v1140 = vld [vmem:[%s233 + $0x50] sm:$0xf]
      %v1141 = vld [vmem:[%s233 + $0x54] sm:$0xf]
      %v1142 = vld [vmem:[%s233 + $0x58] sm:$0xf]
      %v1143 = vld [vmem:[%s233 + $0x5c] sm:$0xf]
      %v1144 = vld [vmem:[%s233 + $0x60] sm:$0xf]
      %v1145 = vld [vmem:[%s233 + $0x64] sm:$0xf]
      %v1146 = vld [vmem:[%s233 + $0x68] sm:$0xf]
      %v1147 = vld [vmem:[%s233 + $0x6c] sm:$0xf]
      %v1148 = vld [vmem:[%s233 + $0x70] sm:$0xf]
      %v1149 = vld [vmem:[%s233 + $0x74] sm:$0xf]
      %v1150 = vld [vmem:[%s233 + $0x78] sm:$0xf]
      %v1151 = vld [vmem:[%s233 + $0x7c] sm:$0xf]
      %v1152 = vld [vmem:[%s233 + $0x80] sm:$0xf]
      %v1153 = vld [vmem:[%s233 + $0x84] sm:$0xf]
      %v1154 = vld [vmem:[%s233 + $0x88] sm:$0xf]
      %v1155 = vld [vmem:[%s233 + $0x8c] sm:$0xf]
      %v1156 = vld [vmem:[%s233 + $0x90] sm:$0x1]
      %s1157 = scalar_lea.vmem %s237, 4
      %v1158 = vld [vmem:[%s1157] sm:$0x3]
      %v1196 = vunpack.c.l.b16 %v1120
      %v1197 = vunpack.c.l.b16 %v1121
      %v1198 = vunpack.c.l.b16 %v1122
      %v1199 = vunpack.c.l.b16 %v1123
      %v1200 = vunpack.c.l.b16 %v1124
      %v1201 = vunpack.c.l.b16 %v1125
      %v1202 = vunpack.c.l.b16 %v1126
      %v1203 = vunpack.c.l.b16 %v1127
      %v1204 = vunpack.c.l.b16 %v1128
      %v1205 = vunpack.c.l.b16 %v1129
      %v1206 = vunpack.c.l.b16 %v1130
      %v1207 = vunpack.c.l.b16 %v1131
      %v1208 = vunpack.c.l.b16 %v1132
      %v1209 = vunpack.c.l.b16 %v1133
      %v1210 = vunpack.c.l.b16 %v1134
      %v1211 = vunpack.c.l.b16 %v1135
      %v1212 = vunpack.c.l.b16 %v1136
      %v1213 = vunpack.c.l.b16 %v1137
      %v1214 = vunpack.c.l.b16 %v1138
      %v1215 = vunpack.c.l.b16 %v1139
      %v1216 = vunpack.c.l.b16 %v1140
      %v1217 = vunpack.c.l.b16 %v1141
      %v1218 = vunpack.c.l.b16 %v1142
      %v1219 = vunpack.c.l.b16 %v1143
      %v1220 = vunpack.c.l.b16 %v1144
      %v1221 = vunpack.c.l.b16 %v1145
      %v1222 = vunpack.c.l.b16 %v1146
      %v1223 = vunpack.c.l.b16 %v1147
      %v1224 = vunpack.c.l.b16 %v1148
      %v1225 = vunpack.c.l.b16 %v1149
      %v1226 = vunpack.c.l.b16 %v1150
      %v1227 = vunpack.c.l.b16 %v1151
      %v1228 = vunpack.c.l.b16 %v1152
      %v1229 = vunpack.c.l.b16 %v1153
      %v1230 = vunpack.c.l.b16 %v1154
      %v1231 = vunpack.c.l.b16 %v1155
      %v1232 = vunpack.c.l.b16 %v1156
      %v1233 = vpack.c.b16 %v1197, %v1196
      %v1234 = vpack.c.b16 %v1199, %v1198
      %v1235 = vpack.c.b16 %v1201, %v1200
      %v1236 = vpack.c.b16 %v1203, %v1202
      %v1237 = vpack.c.b16 %v1205, %v1204
      %v1238 = vpack.c.b16 %v1207, %v1206
      %v1239 = vpack.c.b16 %v1209, %v1208
      %v1240 = vpack.c.b16 %v1211, %v1210
      %v1241 = vpack.c.b16 %v1213, %v1212
      %v1242 = vpack.c.b16 %v1215, %v1214
      %v1243 = vpack.c.b16 %v1217, %v1216
      %v1244 = vpack.c.b16 %v1219, %v1218
      %v1245 = vpack.c.b16 %v1221, %v1220
      %v1246 = vpack.c.b16 %v1223, %v1222
      %v1247 = vpack.c.b16 %v1225, %v1224
      %v1248 = vpack.c.b16 %v1227, %v1226
      %v1249 = vpack.c.b16 %v1229, %v1228
      %v1250 = vpack.c.b16 %v1231, %v1230
      %v1251 = vpack.c.b16 %v1232, %v1232
      %vm1252 = vcmask 1046528
      %v1253 = vrot.slane %v1233, 1
      %v1254 = vrot.slane %v1234, 1
      %v1255 = vsel %vm1252, %v1253, %v1254
      %v1256 = vrot.slane %v1235, 1
      %v1257 = vsel %vm1252, %v1254, %v1256
      %v1258 = vrot.slane %v1236, 1
      %v1259 = vsel %vm1252, %v1256, %v1258
      %v1260 = vrot.slane %v1237, 1
      %v1261 = vsel %vm1252, %v1258, %v1260
      %v1262 = vrot.slane %v1238, 1
      %v1263 = vsel %vm1252, %v1260, %v1262
      %v1264 = vrot.slane %v1239, 1
      %v1265 = vsel %vm1252, %v1262, %v1264
      %v1266 = vrot.slane %v1240, 1
      %v1267 = vsel %vm1252, %v1264, %v1266
      %v1268 = vrot.slane %v1241, 1
      %v1269 = vsel %vm1252, %v1266, %v1268
      %v1270 = vrot.slane %v1242, 1
      %v1271 = vsel %vm1252, %v1268, %v1270
      %v1272 = vrot.slane %v1243, 1
      %v1273 = vsel %vm1252, %v1270, %v1272
      %v1274 = vrot.slane %v1244, 1
      %v1275 = vsel %vm1252, %v1272, %v1274
      %v1276 = vrot.slane %v1245, 1
      %v1277 = vsel %vm1252, %v1274, %v1276
      %v1278 = vrot.slane %v1246, 1
      %v1279 = vsel %vm1252, %v1276, %v1278
      %v1280 = vrot.slane %v1247, 1
      %v1281 = vsel %vm1252, %v1278, %v1280
      %v1282 = vrot.slane %v1248, 1
      %v1283 = vsel %vm1252, %v1280, %v1282
      %v1284 = vrot.slane %v1249, 1
      %v1285 = vsel %vm1252, %v1282, %v1284
      %v1286 = vrot.slane %v1250, 1
      %v1287 = vsel %vm1252, %v1284, %v1286
      %v1288 = vrot.slane %v1251, 1
      %v1289 = vsel %vm1252, %v1286, %v1288
      %v1291 = vsel %vm381, %v1255, 0
      %v1294 = vsel %vm381, %v1257, 0
      %v1297 = vsel %vm381, %v1259, 0
      %v1300 = vsel %vm381, %v1261, 0
      %v1303 = vsel %vm381, %v1263, 0
      %v1306 = vsel %vm381, %v1265, 0
      %v1309 = vsel %vm381, %v1267, 0
      %v1312 = vsel %vm381, %v1269, 0
      %v1315 = vsel %vm381, %v1271, 0
      %v1318 = vsel %vm381, %v1273, 0
      %v1321 = vsel %vm381, %v1275, 0
      %v1324 = vsel %vm381, %v1277, 0
      %v1327 = vsel %vm381, %v1279, 0
      %v1330 = vsel %vm381, %v1281, 0
      %v1333 = vsel %vm381, %v1283, 0
      %v1336 = vsel %vm381, %v1285, 0
      %v1339 = vsel %vm381, %v1287, 0
      %v1342 = vsel %vm381, %v1289, 0
      %v1345 = vsel %vm436, %v1158, 0
      %1347 = vmatpush.bf16.msra.mxu0 0
      %1348 = vmatpush.bf16.msra.mxu0 0
      %1349 = vmatpush.bf16.msra.mxu0 0
      %1350 = vmatpush.bf16.msra.mxu0 0
      %1351 = vmatpush.bf16.msra.mxu0 0
      %1352 = vmatpush.bf16.msra.mxu0 0
      %1353 = vmatpush.bf16.msra.mxu0 0
      %1354 = vmatpush.bf16.msra.mxu0 %v1345
      %1355 = vmatmul.bf16.gmra.mxu0 %v1291
      %v1356 = vpop.f32.mrf.mxu0
      %v1357 = vadd.f32 0.0, %v1356
      %v1358 = vpop.f32.mrf.mxu0
      %v1359 = vadd.f32 0.0, %v1358
      %1360 = vmatmul.bf16.gmra.mxu0 %v1294
      %v1361 = vpop.f32.mrf.mxu0
      %v1362 = vadd.f32 0.0, %v1361
      %v1363 = vpop.f32.mrf.mxu0
      %v1364 = vadd.f32 0.0, %v1363
      %1365 = vmatmul.bf16.gmra.mxu0 %v1297
      %v1366 = vpop.f32.mrf.mxu0
      %v1367 = vadd.f32 0.0, %v1366
      %v1368 = vpop.f32.mrf.mxu0
      %v1369 = vadd.f32 0.0, %v1368
      %1370 = vmatmul.bf16.gmra.mxu0 %v1300
      %v1371 = vpop.f32.mrf.mxu0
      %v1372 = vadd.f32 0.0, %v1371
      %v1373 = vpop.f32.mrf.mxu0
      %v1374 = vadd.f32 0.0, %v1373
      %1375 = vmatmul.bf16.gmra.mxu0 %v1303
      %v1376 = vpop.f32.mrf.mxu0
      %v1377 = vadd.f32 0.0, %v1376
      %v1378 = vpop.f32.mrf.mxu0
      %v1379 = vadd.f32 0.0, %v1378
      %1380 = vmatmul.bf16.gmra.mxu0 %v1306
      %v1381 = vpop.f32.mrf.mxu0
      %v1382 = vadd.f32 0.0, %v1381
      %v1383 = vpop.f32.mrf.mxu0
      %v1384 = vadd.f32 0.0, %v1383
      %1385 = vmatmul.bf16.gmra.mxu0 %v1309
      %v1386 = vpop.f32.mrf.mxu0
      %v1387 = vadd.f32 0.0, %v1386
      %v1388 = vpop.f32.mrf.mxu0
      %v1389 = vadd.f32 0.0, %v1388
      %1390 = vmatmul.bf16.gmra.mxu0 %v1312
      %v1391 = vpop.f32.mrf.mxu0
      %v1392 = vadd.f32 0.0, %v1391
      %v1393 = vpop.f32.mrf.mxu0
      %v1394 = vadd.f32 0.0, %v1393
      %1395 = vmatmul.bf16.gmra.mxu0 %v1315
      %v1396 = vpop.f32.mrf.mxu0
      %v1397 = vadd.f32 0.0, %v1396
      %v1398 = vpop.f32.mrf.mxu0
      %v1399 = vadd.f32 0.0, %v1398
      %1400 = vmatmul.bf16.gmra.mxu0 %v1318
      %v1401 = vpop.f32.mrf.mxu0
      %v1402 = vadd.f32 0.0, %v1401
      %v1403 = vpop.f32.mrf.mxu0
      %v1404 = vadd.f32 0.0, %v1403
      %1405 = vmatmul.bf16.gmra.mxu0 %v1321
      %v1406 = vpop.f32.mrf.mxu0
      %v1407 = vadd.f32 0.0, %v1406
      %v1408 = vpop.f32.mrf.mxu0
      %v1409 = vadd.f32 0.0, %v1408
      %1410 = vmatmul.bf16.gmra.mxu0 %v1324
      %v1411 = vpop.f32.mrf.mxu0
      %v1412 = vadd.f32 0.0, %v1411
      %v1413 = vpop.f32.mrf.mxu0
      %v1414 = vadd.f32 0.0, %v1413
      %1415 = vmatmul.bf16.gmra.mxu0 %v1327
      %v1416 = vpop.f32.mrf.mxu0
      %v1417 = vadd.f32 0.0, %v1416
      %v1418 = vpop.f32.mrf.mxu0
      %v1419 = vadd.f32 0.0, %v1418
      %1420 = vmatmul.bf16.gmra.mxu0 %v1330
      %v1421 = vpop.f32.mrf.mxu0
      %v1422 = vadd.f32 0.0, %v1421
      %v1423 = vpop.f32.mrf.mxu0
      %v1424 = vadd.f32 0.0, %v1423
      %1425 = vmatmul.bf16.gmra.mxu0 %v1333
      %v1426 = vpop.f32.mrf.mxu0
      %v1427 = vadd.f32 0.0, %v1426
      %v1428 = vpop.f32.mrf.mxu0
      %v1429 = vadd.f32 0.0, %v1428
      %1430 = vmatmul.bf16.gmra.mxu0 %v1336
      %v1431 = vpop.f32.mrf.mxu0
      %v1432 = vadd.f32 0.0, %v1431
      %v1433 = vpop.f32.mrf.mxu0
      %v1434 = vadd.f32 0.0, %v1433
      %1435 = vmatmul.bf16.gmra.mxu0 %v1339
      %v1436 = vpop.f32.mrf.mxu0
      %v1437 = vadd.f32 0.0, %v1436
      %v1438 = vpop.f32.mrf.mxu0
      %v1439 = vadd.f32 0.0, %v1438
      %1440 = vmatmul.bf16.gmra.mxu0 %v1342
      %v1441 = vpop.f32.mrf.mxu0
      %v1442 = vadd.f32 0.0, %v1441
      %v1443 = vpop.f32.mrf.mxu0
      %v1444 = vadd.f32 0.0, %v1443
      %1445 = vdwg.mxu0
      %v1446 = vld [vmem:[#allocation2] sm:$0xff]
      %v1447 = vld [vmem:[#allocation2 + $0x8] sm:$0xff]
      %v1448 = vld [vmem:[#allocation2 + $0x10] sm:$0xff]
      %v1449 = vld [vmem:[#allocation2 + $0x18] sm:$0xff]
      %v1450 = vld [vmem:[#allocation2 + $0x20] sm:$0xff]
      %v1451 = vld [vmem:[#allocation2 + $0x28] sm:$0xff]
      %v1452 = vld [vmem:[#allocation2 + $0x30] sm:$0xff]
      %v1453 = vld [vmem:[#allocation2 + $0x38] sm:$0xff]
      %v1454 = vld [vmem:[#allocation2 + $0x40] sm:$0xff]
      %v1455 = vld [vmem:[#allocation2 + $0x48] sm:$0xff]
      %v1456 = vld [vmem:[#allocation2 + $0x50] sm:$0xff]
      %v1457 = vld [vmem:[#allocation2 + $0x58] sm:$0xff]
      %v1458 = vld [vmem:[#allocation2 + $0x60] sm:$0xff]
      %v1459 = vld [vmem:[#allocation2 + $0x68] sm:$0xff]
      %v1460 = vld [vmem:[#allocation2 + $0x70] sm:$0xff]
      %v1461 = vld [vmem:[#allocation2 + $0x78] sm:$0xff]
      %v1462 = vld [vmem:[#allocation2 + $0x80] sm:$0xff]
      %v1463 = vld [vmem:[#allocation2 + $0x88] sm:$0xff]
      %v1464 = vld [vmem:[#allocation2 + $0x90] sm:$0xff]
      %v1465 = vld [vmem:[#allocation2 + $0x98] sm:$0xff]
      %v1466 = vld [vmem:[#allocation2 + $0xa0] sm:$0xff]
      %v1467 = vld [vmem:[#allocation2 + $0xa8] sm:$0xff]
      %v1468 = vld [vmem:[#allocation2 + $0xb0] sm:$0xff]
      %v1469 = vld [vmem:[#allocation2 + $0xb8] sm:$0xff]
      %v1470 = vld [vmem:[#allocation2 + $0xc0] sm:$0xff]
      %v1471 = vld [vmem:[#allocation2 + $0xc8] sm:$0xff]
      %v1472 = vld [vmem:[#allocation2 + $0xd0] sm:$0xff]
      %v1473 = vld [vmem:[#allocation2 + $0xd8] sm:$0xff]
      %v1474 = vld [vmem:[#allocation2 + $0xe0] sm:$0xff]
      %v1475 = vld [vmem:[#allocation2 + $0xe8] sm:$0xff]
      %v1476 = vld [vmem:[#allocation2 + $0xf0] sm:$0xff]
      %v1477 = vld [vmem:[#allocation2 + $0xf8] sm:$0xff]
      %v1478 = vld [vmem:[#allocation2 + $0x100] sm:$0xff]
      %v1479 = vld [vmem:[#allocation2 + $0x108] sm:$0xff]
      %v1480 = vld [vmem:[#allocation2 + $0x110] sm:$0xff]
      %v1481 = vld [vmem:[#allocation2 + $0x118] sm:$0xff]
      %v1482 = vadd.f32 %v1446, %v1357
      %v1483 = vadd.f32 %v1447, %v1359
      %v1484 = vadd.f32 %v1448, %v1362
      %v1485 = vadd.f32 %v1449, %v1364
      %v1486 = vadd.f32 %v1450, %v1367
      %v1487 = vadd.f32 %v1451, %v1369
      %v1488 = vadd.f32 %v1452, %v1372
      %v1489 = vadd.f32 %v1453, %v1374
      %v1490 = vadd.f32 %v1454, %v1377
      %v1491 = vadd.f32 %v1455, %v1379
      %v1492 = vadd.f32 %v1456, %v1382
      %v1493 = vadd.f32 %v1457, %v1384
      %v1494 = vadd.f32 %v1458, %v1387
      %v1495 = vadd.f32 %v1459, %v1389
      %v1496 = vadd.f32 %v1460, %v1392
      %v1497 = vadd.f32 %v1461, %v1394
      %v1498 = vadd.f32 %v1462, %v1397
      %v1499 = vadd.f32 %v1463, %v1399
      %v1500 = vadd.f32 %v1464, %v1402
      %v1501 = vadd.f32 %v1465, %v1404
      %v1502 = vadd.f32 %v1466, %v1407
      %v1503 = vadd.f32 %v1467, %v1409
      %v1504 = vadd.f32 %v1468, %v1412
      %v1505 = vadd.f32 %v1469, %v1414
      %v1506 = vadd.f32 %v1470, %v1417
      %v1507 = vadd.f32 %v1471, %v1419
      %v1508 = vadd.f32 %v1472, %v1422
      %v1509 = vadd.f32 %v1473, %v1424
      %v1510 = vadd.f32 %v1474, %v1427
      %v1511 = vadd.f32 %v1475, %v1429
      %v1512 = vadd.f32 %v1476, %v1432
      %v1513 = vadd.f32 %v1477, %v1434
      %v1514 = vadd.f32 %v1478, %v1437
      %v1515 = vadd.f32 %v1479, %v1439
      %v1516 = vadd.f32 %v1480, %v1442
      %v1517 = vadd.f32 %v1481, %v1444
      %1518 = vst [vmem:[#allocation2] sm:$0xff] %v1482
      %1519 = vst [vmem:[#allocation2 + $0x8] sm:$0xff] %v1483
      %1520 = vst [vmem:[#allocation2 + $0x10] sm:$0xff] %v1484
      %1521 = vst [vmem:[#allocation2 + $0x18] sm:$0xff] %v1485
      %1522 = vst [vmem:[#allocation2 + $0x20] sm:$0xff] %v1486
      %1523 = vst [vmem:[#allocation2 + $0x28] sm:$0xff] %v1487
      %1524 = vst [vmem:[#allocation2 + $0x30] sm:$0xff] %v1488
      %1525 = vst [vmem:[#allocation2 + $0x38] sm:$0xff] %v1489
      %1526 = vst [vmem:[#allocation2 + $0x40] sm:$0xff] %v1490
      %1527 = vst [vmem:[#allocation2 + $0x48] sm:$0xff] %v1491
      %1528 = vst [vmem:[#allocation2 + $0x50] sm:$0xff] %v1492
      %1529 = vst [vmem:[#allocation2 + $0x58] sm:$0xff] %v1493
      %1530 = vst [vmem:[#allocation2 + $0x60] sm:$0xff] %v1494
      %1531 = vst [vmem:[#allocation2 + $0x68] sm:$0xff] %v1495
      %1532 = vst [vmem:[#allocation2 + $0x70] sm:$0xff] %v1496
      %1533 = vst [vmem:[#allocation2 + $0x78] sm:$0xff] %v1497
      %1534 = vst [vmem:[#allocation2 + $0x80] sm:$0xff] %v1498
      %1535 = vst [vmem:[#allocation2 + $0x88] sm:$0xff] %v1499
      %1536 = vst [vmem:[#allocation2 + $0x90] sm:$0xff] %v1500
      %1537 = vst [vmem:[#allocation2 + $0x98] sm:$0xff] %v1501
      %1538 = vst [vmem:[#allocation2 + $0xa0] sm:$0xff] %v1502
      %1539 = vst [vmem:[#allocation2 + $0xa8] sm:$0xff] %v1503
      %1540 = vst [vmem:[#allocation2 + $0xb0] sm:$0xff] %v1504
      %1541 = vst [vmem:[#allocation2 + $0xb8] sm:$0xff] %v1505
      %1542 = vst [vmem:[#allocation2 + $0xc0] sm:$0xff] %v1506
      %1543 = vst [vmem:[#allocation2 + $0xc8] sm:$0xff] %v1507
      %1544 = vst [vmem:[#allocation2 + $0xd0] sm:$0xff] %v1508
      %1545 = vst [vmem:[#allocation2 + $0xd8] sm:$0xff] %v1509
      %1546 = vst [vmem:[#allocation2 + $0xe0] sm:$0xff] %v1510
      %1547 = vst [vmem:[#allocation2 + $0xe8] sm:$0xff] %v1511
      %1548 = vst [vmem:[#allocation2 + $0xf0] sm:$0xff] %v1512
      %1549 = vst [vmem:[#allocation2 + $0xf8] sm:$0xff] %v1513
      %1550 = vst [vmem:[#allocation2 + $0x100] sm:$0xff] %v1514
      %1551 = vst [vmem:[#allocation2 + $0x108] sm:$0xff] %v1515
      %1552 = vst [vmem:[#allocation2 + $0x110] sm:$0xff] %v1516
      %1553 = vst [vmem:[#allocation2 + $0x118] sm:$0xff] %v1517
      %v1554 = vld [vmem:[%s233 + $0x8] sm:$0xe]
      %v1555 = vld [vmem:[%s233 + $0xc] sm:$0xf]
      %v1556 = vld [vmem:[%s233 + $0x10] sm:$0xf]
      %v1557 = vld [vmem:[%s233 + $0x14] sm:$0xf]
      %v1558 = vld [vmem:[%s233 + $0x18] sm:$0xf]
      %v1559 = vld [vmem:[%s233 + $0x1c] sm:$0xf]
      %v1560 = vld [vmem:[%s233 + $0x20] sm:$0xf]
      %v1561 = vld [vmem:[%s233 + $0x24] sm:$0xf]
      %v1562 = vld [vmem:[%s233 + $0x28] sm:$0xf]
      %v1563 = vld [vmem:[%s233 + $0x2c] sm:$0xf]
      %v1564 = vld [vmem:[%s233 + $0x30] sm:$0xf]
      %v1565 = vld [vmem:[%s233 + $0x34] sm:$0xf]
      %v1566 = vld [vmem:[%s233 + $0x38] sm:$0xf]
      %v1567 = vld [vmem:[%s233 + $0x3c] sm:$0xf]
      %v1568 = vld [vmem:[%s233 + $0x40] sm:$0xf]
      %v1569 = vld [vmem:[%s233 + $0x44] sm:$0xf]
      %v1570 = vld [vmem:[%s233 + $0x48] sm:$0xf]
      %v1571 = vld [vmem:[%s233 + $0x4c] sm:$0xf]
      %v1572 = vld [vmem:[%s233 + $0x50] sm:$0xf]
      %v1573 = vld [vmem:[%s233 + $0x54] sm:$0xf]
      %v1574 = vld [vmem:[%s233 + $0x58] sm:$0xf]
      %v1575 = vld [vmem:[%s233 + $0x5c] sm:$0xf]
      %v1576 = vld [vmem:[%s233 + $0x60] sm:$0xf]
      %v1577 = vld [vmem:[%s233 + $0x64] sm:$0xf]
      %v1578 = vld [vmem:[%s233 + $0x68] sm:$0xf]
      %v1579 = vld [vmem:[%s233 + $0x6c] sm:$0xf]
      %v1580 = vld [vmem:[%s233 + $0x70] sm:$0xf]
      %v1581 = vld [vmem:[%s233 + $0x74] sm:$0xf]
      %v1582 = vld [vmem:[%s233 + $0x78] sm:$0xf]
      %v1583 = vld [vmem:[%s233 + $0x7c] sm:$0xf]
      %v1584 = vld [vmem:[%s233 + $0x80] sm:$0xf]
      %v1585 = vld [vmem:[%s233 + $0x84] sm:$0xf]
      %v1586 = vld [vmem:[%s233 + $0x88] sm:$0xf]
      %v1587 = vld [vmem:[%s233 + $0x8c] sm:$0xf]
      %v1588 = vld [vmem:[%s233 + $0x90] sm:$0xf]
      %v1589 = vld [vmem:[%s233 + $0x94] sm:$0xf]
      %v1590 = vld [vmem:[%s233 + $0x98] sm:$0x1]
      %s1591 = scalar_lea.vmem %s237, 6
      %v1592 = vld [vmem:[%s1591] sm:$0x3]
      %v1630 = vunpack.c.l.b16 %v1554
      %v1631 = vunpack.c.l.b16 %v1555
      %v1632 = vunpack.c.l.b16 %v1556
      %v1633 = vunpack.c.l.b16 %v1557
      %v1634 = vunpack.c.l.b16 %v1558
      %v1635 = vunpack.c.l.b16 %v1559
      %v1636 = vunpack.c.l.b16 %v1560
      %v1637 = vunpack.c.l.b16 %v1561
      %v1638 = vunpack.c.l.b16 %v1562
      %v1639 = vunpack.c.l.b16 %v1563
      %v1640 = vunpack.c.l.b16 %v1564
      %v1641 = vunpack.c.l.b16 %v1565
      %v1642 = vunpack.c.l.b16 %v1566
      %v1643 = vunpack.c.l.b16 %v1567
      %v1644 = vunpack.c.l.b16 %v1568
      %v1645 = vunpack.c.l.b16 %v1569
      %v1646 = vunpack.c.l.b16 %v1570
      %v1647 = vunpack.c.l.b16 %v1571
      %v1648 = vunpack.c.l.b16 %v1572
      %v1649 = vunpack.c.l.b16 %v1573
      %v1650 = vunpack.c.l.b16 %v1574
      %v1651 = vunpack.c.l.b16 %v1575
      %v1652 = vunpack.c.l.b16 %v1576
      %v1653 = vunpack.c.l.b16 %v1577
      %v1654 = vunpack.c.l.b16 %v1578
      %v1655 = vunpack.c.l.b16 %v1579
      %v1656 = vunpack.c.l.b16 %v1580
      %v1657 = vunpack.c.l.b16 %v1581
      %v1658 = vunpack.c.l.b16 %v1582
      %v1659 = vunpack.c.l.b16 %v1583
      %v1660 = vunpack.c.l.b16 %v1584
      %v1661 = vunpack.c.l.b16 %v1585
      %v1662 = vunpack.c.l.b16 %v1586
      %v1663 = vunpack.c.l.b16 %v1587
      %v1664 = vunpack.c.l.b16 %v1588
      %v1665 = vunpack.c.l.b16 %v1589
      %v1666 = vunpack.c.l.b16 %v1590
      %v1667 = vpack.c.b16 %v1631, %v1630
      %v1668 = vpack.c.b16 %v1633, %v1632
      %v1669 = vpack.c.b16 %v1635, %v1634
      %v1670 = vpack.c.b16 %v1637, %v1636
      %v1671 = vpack.c.b16 %v1639, %v1638
      %v1672 = vpack.c.b16 %v1641, %v1640
      %v1673 = vpack.c.b16 %v1643, %v1642
      %v1674 = vpack.c.b16 %v1645, %v1644
      %v1675 = vpack.c.b16 %v1647, %v1646
      %v1676 = vpack.c.b16 %v1649, %v1648
      %v1677 = vpack.c.b16 %v1651, %v1650
      %v1678 = vpack.c.b16 %v1653, %v1652
      %v1679 = vpack.c.b16 %v1655, %v1654
      %v1680 = vpack.c.b16 %v1657, %v1656
      %v1681 = vpack.c.b16 %v1659, %v1658
      %v1682 = vpack.c.b16 %v1661, %v1660
      %v1683 = vpack.c.b16 %v1663, %v1662
      %v1684 = vpack.c.b16 %v1665, %v1664
      %v1685 = vpack.c.b16 %v1666, %v1666
      %v1686 = vrot.slane %v1667, 1
      %v1687 = vrot.slane %v1668, 1
      %v1688 = vsel %vm1252, %v1686, %v1687
      %v1689 = vrot.slane %v1669, 1
      %v1690 = vsel %vm1252, %v1687, %v1689
      %v1691 = vrot.slane %v1670, 1
      %v1692 = vsel %vm1252, %v1689, %v1691
      %v1693 = vrot.slane %v1671, 1
      %v1694 = vsel %vm1252, %v1691, %v1693
      %v1695 = vrot.slane %v1672, 1
      %v1696 = vsel %vm1252, %v1693, %v1695
      %v1697 = vrot.slane %v1673, 1
      %v1698 = vsel %vm1252, %v1695, %v1697
      %v1699 = vrot.slane %v1674, 1
      %v1700 = vsel %vm1252, %v1697, %v1699
      %v1701 = vrot.slane %v1675, 1
      %v1702 = vsel %vm1252, %v1699, %v1701
      %v1703 = vrot.slane %v1676, 1
      %v1704 = vsel %vm1252, %v1701, %v1703
      %v1705 = vrot.slane %v1677, 1
      %v1706 = vsel %vm1252, %v1703, %v1705
      %v1707 = vrot.slane %v1678, 1
      %v1708 = vsel %vm1252, %v1705, %v1707
      %v1709 = vrot.slane %v1679, 1
      %v1710 = vsel %vm1252, %v1707, %v1709
      %v1711 = vrot.slane %v1680, 1
      %v1712 = vsel %vm1252, %v1709, %v1711
      %v1713 = vrot.slane %v1681, 1
      %v1714 = vsel %vm1252, %v1711, %v1713
      %v1715 = vrot.slane %v1682, 1
      %v1716 = vsel %vm1252, %v1713, %v1715
      %v1717 = vrot.slane %v1683, 1
      %v1718 = vsel %vm1252, %v1715, %v1717
      %v1719 = vrot.slane %v1684, 1
      %v1720 = vsel %vm1252, %v1717, %v1719
      %v1721 = vrot.slane %v1685, 1
      %v1722 = vsel %vm1252, %v1719, %v1721
      %v1724 = vsel %vm381, %v1688, 0
      %v1727 = vsel %vm381, %v1690, 0
      %v1730 = vsel %vm381, %v1692, 0
      %v1733 = vsel %vm381, %v1694, 0
      %v1736 = vsel %vm381, %v1696, 0
      %v1739 = vsel %vm381, %v1698, 0
      %v1742 = vsel %vm381, %v1700, 0
      %v1745 = vsel %vm381, %v1702, 0
      %v1748 = vsel %vm381, %v1704, 0
      %v1751 = vsel %vm381, %v1706, 0
      %v1754 = vsel %vm381, %v1708, 0
      %v1757 = vsel %vm381, %v1710, 0
      %v1760 = vsel %vm381, %v1712, 0
      %v1763 = vsel %vm381, %v1714, 0
      %v1766 = vsel %vm381, %v1716, 0
      %v1769 = vsel %vm381, %v1718, 0
      %v1772 = vsel %vm381, %v1720, 0
      %v1775 = vsel %vm381, %v1722, 0
      %v1778 = vsel %vm436, %v1592, 0
      %1780 = vmatpush.bf16.msra.mxu0 0
      %1781 = vmatpush.bf16.msra.mxu0 0
      %1782 = vmatpush.bf16.msra.mxu0 0
      %1783 = vmatpush.bf16.msra.mxu0 0
      %1784 = vmatpush.bf16.msra.mxu0 0
      %1785 = vmatpush.bf16.msra.mxu0 0
      %1786 = vmatpush.bf16.msra.mxu0 0
      %1787 = vmatpush.bf16.msra.mxu0 %v1778
      %1788 = vmatmul.bf16.gmra.mxu0 %v1724
      %v1789 = vpop.f32.mrf.mxu0
      %v1790 = vadd.f32 0.0, %v1789
      %v1791 = vpop.f32.mrf.mxu0
      %v1792 = vadd.f32 0.0, %v1791
      %1793 = vmatmul.bf16.gmra.mxu0 %v1727
      %v1794 = vpop.f32.mrf.mxu0
      %v1795 = vadd.f32 0.0, %v1794
      %v1796 = vpop.f32.mrf.mxu0
      %v1797 = vadd.f32 0.0, %v1796
      %1798 = vmatmul.bf16.gmra.mxu0 %v1730
      %v1799 = vpop.f32.mrf.mxu0
      %v1800 = vadd.f32 0.0, %v1799
      %v1801 = vpop.f32.mrf.mxu0
      %v1802 = vadd.f32 0.0, %v1801
      %1803 = vmatmul.bf16.gmra.mxu0 %v1733
      %v1804 = vpop.f32.mrf.mxu0
      %v1805 = vadd.f32 0.0, %v1804
      %v1806 = vpop.f32.mrf.mxu0
      %v1807 = vadd.f32 0.0, %v1806
      %1808 = vmatmul.bf16.gmra.mxu0 %v1736
      %v1809 = vpop.f32.mrf.mxu0
      %v1810 = vadd.f32 0.0, %v1809
      %v1811 = vpop.f32.mrf.mxu0
      %v1812 = vadd.f32 0.0, %v1811
      %1813 = vmatmul.bf16.gmra.mxu0 %v1739
      %v1814 = vpop.f32.mrf.mxu0
      %v1815 = vadd.f32 0.0, %v1814
      %v1816 = vpop.f32.mrf.mxu0
      %v1817 = vadd.f32 0.0, %v1816
      %1818 = vmatmul.bf16.gmra.mxu0 %v1742
      %v1819 = vpop.f32.mrf.mxu0
      %v1820 = vadd.f32 0.0, %v1819
      %v1821 = vpop.f32.mrf.mxu0
      %v1822 = vadd.f32 0.0, %v1821
      %1823 = vmatmul.bf16.gmra.mxu0 %v1745
      %v1824 = vpop.f32.mrf.mxu0
      %v1825 = vadd.f32 0.0, %v1824
      %v1826 = vpop.f32.mrf.mxu0
      %v1827 = vadd.f32 0.0, %v1826
      %1828 = vmatmul.bf16.gmra.mxu0 %v1748
      %v1829 = vpop.f32.mrf.mxu0
      %v1830 = vadd.f32 0.0, %v1829
      %v1831 = vpop.f32.mrf.mxu0
      %v1832 = vadd.f32 0.0, %v1831
      %1833 = vmatmul.bf16.gmra.mxu0 %v1751
      %v1834 = vpop.f32.mrf.mxu0
      %v1835 = vadd.f32 0.0, %v1834
      %v1836 = vpop.f32.mrf.mxu0
      %v1837 = vadd.f32 0.0, %v1836
      %1838 = vmatmul.bf16.gmra.mxu0 %v1754
      %v1839 = vpop.f32.mrf.mxu0
      %v1840 = vadd.f32 0.0, %v1839
      %v1841 = vpop.f32.mrf.mxu0
      %v1842 = vadd.f32 0.0, %v1841
      %1843 = vmatmul.bf16.gmra.mxu0 %v1757
      %v1844 = vpop.f32.mrf.mxu0
      %v1845 = vadd.f32 0.0, %v1844
      %v1846 = vpop.f32.mrf.mxu0
      %v1847 = vadd.f32 0.0, %v1846
      %1848 = vmatmul.bf16.gmra.mxu0 %v1760
      %v1849 = vpop.f32.mrf.mxu0
      %v1850 = vadd.f32 0.0, %v1849
      %v1851 = vpop.f32.mrf.mxu0
      %v1852 = vadd.f32 0.0, %v1851
      %1853 = vmatmul.bf16.gmra.mxu0 %v1763
      %v1854 = vpop.f32.mrf.mxu0
      %v1855 = vadd.f32 0.0, %v1854
      %v1856 = vpop.f32.mrf.mxu0
      %v1857 = vadd.f32 0.0, %v1856
      %1858 = vmatmul.bf16.gmra.mxu0 %v1766
      %v1859 = vpop.f32.mrf.mxu0
      %v1860 = vadd.f32 0.0, %v1859
      %v1861 = vpop.f32.mrf.mxu0
      %v1862 = vadd.f32 0.0, %v1861
      %1863 = vmatmul.bf16.gmra.mxu0 %v1769
      %v1864 = vpop.f32.mrf.mxu0
      %v1865 = vadd.f32 0.0, %v1864
      %v1866 = vpop.f32.mrf.mxu0
      %v1867 = vadd.f32 0.0, %v1866
      %1868 = vmatmul.bf16.gmra.mxu0 %v1772
      %v1869 = vpop.f32.mrf.mxu0
      %v1870 = vadd.f32 0.0, %v1869
      %v1871 = vpop.f32.mrf.mxu0
      %v1872 = vadd.f32 0.0, %v1871
      %1873 = vmatmul.bf16.gmra.mxu0 %v1775
      %v1874 = vpop.f32.mrf.mxu0
      %v1875 = vadd.f32 0.0, %v1874
      %v1876 = vpop.f32.mrf.mxu0
      %v1877 = vadd.f32 0.0, %v1876
      %1878 = vdwg.mxu0
      %v1879 = vld [vmem:[#allocation2] sm:$0xff]
      %v1880 = vld [vmem:[#allocation2 + $0x8] sm:$0xff]
      %v1881 = vld [vmem:[#allocation2 + $0x10] sm:$0xff]
      %v1882 = vld [vmem:[#allocation2 + $0x18] sm:$0xff]
      %v1883 = vld [vmem:[#allocation2 + $0x20] sm:$0xff]
      %v1884 = vld [vmem:[#allocation2 + $0x28] sm:$0xff]
      %v1885 = vld [vmem:[#allocation2 + $0x30] sm:$0xff]
      %v1886 = vld [vmem:[#allocation2 + $0x38] sm:$0xff]
      %v1887 = vld [vmem:[#allocation2 + $0x40] sm:$0xff]
      %v1888 = vld [vmem:[#allocation2 + $0x48] sm:$0xff]
      %v1889 = vld [vmem:[#allocation2 + $0x50] sm:$0xff]
      %v1890 = vld [vmem:[#allocation2 + $0x58] sm:$0xff]
      %v1891 = vld [vmem:[#allocation2 + $0x60] sm:$0xff]
      %v1892 = vld [vmem:[#allocation2 + $0x68] sm:$0xff]
      %v1893 = vld [vmem:[#allocation2 + $0x70] sm:$0xff]
      %v1894 = vld [vmem:[#allocation2 + $0x78] sm:$0xff]
      %v1895 = vld [vmem:[#allocation2 + $0x80] sm:$0xff]
      %v1896 = vld [vmem:[#allocation2 + $0x88] sm:$0xff]
      %v1897 = vld [vmem:[#allocation2 + $0x90] sm:$0xff]
      %v1898 = vld [vmem:[#allocation2 + $0x98] sm:$0xff]
      %v1899 = vld [vmem:[#allocation2 + $0xa0] sm:$0xff]
      %v1900 = vld [vmem:[#allocation2 + $0xa8] sm:$0xff]
      %v1901 = vld [vmem:[#allocation2 + $0xb0] sm:$0xff]
      %v1902 = vld [vmem:[#allocation2 + $0xb8] sm:$0xff]
      %v1903 = vld [vmem:[#allocation2 + $0xc0] sm:$0xff]
      %v1904 = vld [vmem:[#allocation2 + $0xc8] sm:$0xff]
      %v1905 = vld [vmem:[#allocation2 + $0xd0] sm:$0xff]
      %v1906 = vld [vmem:[#allocation2 + $0xd8] sm:$0xff]
      %v1907 = vld [vmem:[#allocation2 + $0xe0] sm:$0xff]
      %v1908 = vld [vmem:[#allocation2 + $0xe8] sm:$0xff]
      %v1909 = vld [vmem:[#allocation2 + $0xf0] sm:$0xff]
      %v1910 = vld [vmem:[#allocation2 + $0xf8] sm:$0xff]
      %v1911 = vld [vmem:[#allocation2 + $0x100] sm:$0xff]
      %v1912 = vld [vmem:[#allocation2 + $0x108] sm:$0xff]
      %v1913 = vld [vmem:[#allocation2 + $0x110] sm:$0xff]
      %v1914 = vld [vmem:[#allocation2 + $0x118] sm:$0xff]
      %v1915 = vadd.f32 %v1879, %v1790
      %v1916 = vadd.f32 %v1880, %v1792
      %v1917 = vadd.f32 %v1881, %v1795
      %v1918 = vadd.f32 %v1882, %v1797
      %v1919 = vadd.f32 %v1883, %v1800
      %v1920 = vadd.f32 %v1884, %v1802
      %v1921 = vadd.f32 %v1885, %v1805
      %v1922 = vadd.f32 %v1886, %v1807
      %v1923 = vadd.f32 %v1887, %v1810
      %v1924 = vadd.f32 %v1888, %v1812
      %v1925 = vadd.f32 %v1889, %v1815
      %v1926 = vadd.f32 %v1890, %v1817
      %v1927 = vadd.f32 %v1891, %v1820
      %v1928 = vadd.f32 %v1892, %v1822
      %v1929 = vadd.f32 %v1893, %v1825
      %v1930 = vadd.f32 %v1894, %v1827
      %v1931 = vadd.f32 %v1895, %v1830
      %v1932 = vadd.f32 %v1896, %v1832
      %v1933 = vadd.f32 %v1897, %v1835
      %v1934 = vadd.f32 %v1898, %v1837
      %v1935 = vadd.f32 %v1899, %v1840
      %v1936 = vadd.f32 %v1900, %v1842
      %v1937 = vadd.f32 %v1901, %v1845
      %v1938 = vadd.f32 %v1902, %v1847
      %v1939 = vadd.f32 %v1903, %v1850
      %v1940 = vadd.f32 %v1904, %v1852
      %v1941 = vadd.f32 %v1905, %v1855
      %v1942 = vadd.f32 %v1906, %v1857
      %v1943 = vadd.f32 %v1907, %v1860
      %v1944 = vadd.f32 %v1908, %v1862
      %v1945 = vadd.f32 %v1909, %v1865
      %v1946 = vadd.f32 %v1910, %v1867
      %v1947 = vadd.f32 %v1911, %v1870
      %v1948 = vadd.f32 %v1912, %v1872
      %v1949 = vadd.f32 %v1913, %v1875
      %v1950 = vadd.f32 %v1914, %v1877
      %1951 = vst [vmem:[#allocation2] sm:$0xff] %v1915
      %1952 = vst [vmem:[#allocation2 + $0x8] sm:$0xff] %v1916
      %1953 = vst [vmem:[#allocation2 + $0x10] sm:$0xff] %v1917
      %1954 = vst [vmem:[#allocation2 + $0x18] sm:$0xff] %v1918
      %1955 = vst [vmem:[#allocation2 + $0x20] sm:$0xff] %v1919
      %1956 = vst [vmem:[#allocation2 + $0x28] sm:$0xff] %v1920
      %1957 = vst [vmem:[#allocation2 + $0x30] sm:$0xff] %v1921
      %1958 = vst [vmem:[#allocation2 + $0x38] sm:$0xff] %v1922
      %1959 = vst [vmem:[#allocation2 + $0x40] sm:$0xff] %v1923
      %1960 = vst [vmem:[#allocation2 + $0x48] sm:$0xff] %v1924
      %1961 = vst [vmem:[#allocation2 + $0x50] sm:$0xff] %v1925
      %1962 = vst [vmem:[#allocation2 + $0x58] sm:$0xff] %v1926
      %1963 = vst [vmem:[#allocation2 + $0x60] sm:$0xff] %v1927
      %1964 = vst [vmem:[#allocation2 + $0x68] sm:$0xff] %v1928
      %1965 = vst [vmem:[#allocation2 + $0x70] sm:$0xff] %v1929
      %1966 = vst [vmem:[#allocation2 + $0x78] sm:$0xff] %v1930
      %1967 = vst [vmem:[#allocation2 + $0x80] sm:$0xff] %v1931
      %1968 = vst [vmem:[#allocation2 + $0x88] sm:$0xff] %v1932
      %1969 = vst [vmem:[#allocation2 + $0x90] sm:$0xff] %v1933
      %1970 = vst [vmem:[#allocation2 + $0x98] sm:$0xff] %v1934
      %1971 = vst [vmem:[#allocation2 + $0xa0] sm:$0xff] %v1935
      %1972 = vst [vmem:[#allocation2 + $0xa8] sm:$0xff] %v1936
      %1973 = vst [vmem:[#allocation2 + $0xb0] sm:$0xff] %v1937
      %1974 = vst [vmem:[#allocation2 + $0xb8] sm:$0xff] %v1938
      %1975 = vst [vmem:[#allocation2 + $0xc0] sm:$0xff] %v1939
      %1976 = vst [vmem:[#allocation2 + $0xc8] sm:$0xff] %v1940
      %1977 = vst [vmem:[#allocation2 + $0xd0] sm:$0xff] %v1941
      %1978 = vst [vmem:[#allocation2 + $0xd8] sm:$0xff] %v1942
      %1979 = vst [vmem:[#allocation2 + $0xe0] sm:$0xff] %v1943
      %1980 = vst [vmem:[#allocation2 + $0xe8] sm:$0xff] %v1944
      %1981 = vst [vmem:[#allocation2 + $0xf0] sm:$0xff] %v1945
      %1982 = vst [vmem:[#allocation2 + $0xf8] sm:$0xff] %v1946
      %1983 = vst [vmem:[#allocation2 + $0x100] sm:$0xff] %v1947
      %1984 = vst [vmem:[#allocation2 + $0x108] sm:$0xff] %v1948
      %1985 = vst [vmem:[#allocation2 + $0x110] sm:$0xff] %v1949
      %1986 = vst [vmem:[#allocation2 + $0x118] sm:$0xff] %v1950
      %v1987 = vld [vmem:[%s233 + $0x8] sm:$0xe]
      %v1988 = vld [vmem:[%s233 + $0xc] sm:$0xf]
      %v1989 = vld [vmem:[%s233 + $0x10] sm:$0xf]
      %v1990 = vld [vmem:[%s233 + $0x14] sm:$0xf]
      %v1991 = vld [vmem:[%s233 + $0x18] sm:$0xf]
      %v1992 = vld [vmem:[%s233 + $0x1c] sm:$0xf]
      %v1993 = vld [vmem:[%s233 + $0x20] sm:$0xf]
      %v1994 = vld [vmem:[%s233 + $0x24] sm:$0xf]
      %v1995 = vld [vmem:[%s233 + $0x28] sm:$0xf]
      %v1996 = vld [vmem:[%s233 + $0x2c] sm:$0xf]
      %v1997 = vld [vmem:[%s233 + $0x30] sm:$0xf]
      %v1998 = vld [vmem:[%s233 + $0x34] sm:$0xf]
      %v1999 = vld [vmem:[%s233 + $0x38] sm:$0xf]
      %v2000 = vld [vmem:[%s233 + $0x3c] sm:$0xf]
      %v2001 = vld [vmem:[%s233 + $0x40] sm:$0xf]
      %v2002 = vld [vmem:[%s233 + $0x44] sm:$0xf]
      %v2003 = vld [vmem:[%s233 + $0x48] sm:$0xf]
      %v2004 = vld [vmem:[%s233 + $0x4c] sm:$0xf]
      %v2005 = vld [vmem:[%s233 + $0x50] sm:$0xf]
      %v2006 = vld [vmem:[%s233 + $0x54] sm:$0xf]
      %v2007 = vld [vmem:[%s233 + $0x58] sm:$0xf]
      %v2008 = vld [vmem:[%s233 + $0x5c] sm:$0xf]
      %v2009 = vld [vmem:[%s233 + $0x60] sm:$0xf]
      %v2010 = vld [vmem:[%s233 + $0x64] sm:$0xf]
      %v2011 = vld [vmem:[%s233 + $0x68] sm:$0xf]
      %v2012 = vld [vmem:[%s233 + $0x6c] sm:$0xf]
      %v2013 = vld [vmem:[%s233 + $0x70] sm:$0xf]
      %v2014 = vld [vmem:[%s233 + $0x74] sm:$0xf]
      %v2015 = vld [vmem:[%s233 + $0x78] sm:$0xf]
      %v2016 = vld [vmem:[%s233 + $0x7c] sm:$0xf]
      %v2017 = vld [vmem:[%s233 + $0x80] sm:$0xf]
      %v2018 = vld [vmem:[%s233 + $0x84] sm:$0xf]
      %v2019 = vld [vmem:[%s233 + $0x88] sm:$0xf]
      %v2020 = vld [vmem:[%s233 + $0x8c] sm:$0xf]
      %v2021 = vld [vmem:[%s233 + $0x90] sm:$0xf]
      %v2022 = vld [vmem:[%s233 + $0x94] sm:$0xf]
      %v2023 = vld [vmem:[%s233 + $0x98] sm:$0x3]
      %s2024 = scalar_lea.vmem %s237, 8
      %v2025 = vld [vmem:[%s2024] sm:$0x3]
      %v2063 = vunpack.c.l.b16 %v1987
      %v2064 = vunpack.c.l.b16 %v1988
      %v2065 = vunpack.c.l.b16 %v1989
      %v2066 = vunpack.c.l.b16 %v1990
      %v2067 = vunpack.c.l.b16 %v1991
      %v2068 = vunpack.c.l.b16 %v1992
      %v2069 = vunpack.c.l.b16 %v1993
      %v2070 = vunpack.c.l.b16 %v1994
      %v2071 = vunpack.c.l.b16 %v1995
      %v2072 = vunpack.c.l.b16 %v1996
      %v2073 = vunpack.c.l.b16 %v1997
      %v2074 = vunpack.c.l.b16 %v1998
      %v2075 = vunpack.c.l.b16 %v1999
      %v2076 = vunpack.c.l.b16 %v2000
      %v2077 = vunpack.c.l.b16 %v2001
      %v2078 = vunpack.c.l.b16 %v2002
      %v2079 = vunpack.c.l.b16 %v2003
      %v2080 = vunpack.c.l.b16 %v2004
      %v2081 = vunpack.c.l.b16 %v2005
      %v2082 = vunpack.c.l.b16 %v2006
      %v2083 = vunpack.c.l.b16 %v2007
      %v2084 = vunpack.c.l.b16 %v2008
      %v2085 = vunpack.c.l.b16 %v2009
      %v2086 = vunpack.c.l.b16 %v2010
      %v2087 = vunpack.c.l.b16 %v2011
      %v2088 = vunpack.c.l.b16 %v2012
      %v2089 = vunpack.c.l.b16 %v2013
      %v2090 = vunpack.c.l.b16 %v2014
      %v2091 = vunpack.c.l.b16 %v2015
      %v2092 = vunpack.c.l.b16 %v2016
      %v2093 = vunpack.c.l.b16 %v2017
      %v2094 = vunpack.c.l.b16 %v2018
      %v2095 = vunpack.c.l.b16 %v2019
      %v2096 = vunpack.c.l.b16 %v2020
      %v2097 = vunpack.c.l.b16 %v2021
      %v2098 = vunpack.c.l.b16 %v2022
      %v2099 = vunpack.c.l.b16 %v2023
      %v2100 = vpack.c.b16 %v2064, %v2063
      %v2101 = vpack.c.b16 %v2066, %v2065
      %v2102 = vpack.c.b16 %v2068, %v2067
      %v2103 = vpack.c.b16 %v2070, %v2069
      %v2104 = vpack.c.b16 %v2072, %v2071
      %v2105 = vpack.c.b16 %v2074, %v2073
      %v2106 = vpack.c.b16 %v2076, %v2075
      %v2107 = vpack.c.b16 %v2078, %v2077
      %v2108 = vpack.c.b16 %v2080, %v2079
      %v2109 = vpack.c.b16 %v2082, %v2081
      %v2110 = vpack.c.b16 %v2084, %v2083
      %v2111 = vpack.c.b16 %v2086, %v2085
      %v2112 = vpack.c.b16 %v2088, %v2087
      %v2113 = vpack.c.b16 %v2090, %v2089
      %v2114 = vpack.c.b16 %v2092, %v2091
      %v2115 = vpack.c.b16 %v2094, %v2093
      %v2116 = vpack.c.b16 %v2096, %v2095
      %v2117 = vpack.c.b16 %v2098, %v2097
      %v2118 = vpack.c.b16 %v2099, %v2099
      %vm2119 = vsmask.f32 6400
      %v2121 = vshrl.u32 %v2100, 16
      %v2123 = vrot.slane %v2121, 1
      %v2124 = vshll.u32 %v2100, 16
      %v2126 = vrot.slane %v2124, 2
      %v2127 = vor.u32 %v2123, %v2126
      %v2129 = vshrl.u32 %v2101, 16
      %v2131 = vrot.slane %v2129, 1
      %v2132 = vshll.u32 %v2101, 16
      %v2134 = vrot.slane %v2132, 2
      %v2135 = vor.u32 %v2131, %v2134
      %v2136 = vsel %vm2119, %v2127, %v2135
      %v2138 = vshrl.u32 %v2102, 16
      %v2140 = vrot.slane %v2138, 1
      %v2141 = vshll.u32 %v2102, 16
      %v2143 = vrot.slane %v2141, 2
      %v2144 = vor.u32 %v2140, %v2143
      %v2145 = vsel %vm2119, %v2135, %v2144
      %v2147 = vshrl.u32 %v2103, 16
      %v2149 = vrot.slane %v2147, 1
      %v2150 = vshll.u32 %v2103, 16
      %v2152 = vrot.slane %v2150, 2
      %v2153 = vor.u32 %v2149, %v2152
      %v2154 = vsel %vm2119, %v2144, %v2153
      %v2156 = vshrl.u32 %v2104, 16
      %v2158 = vrot.slane %v2156, 1
      %v2159 = vshll.u32 %v2104, 16
      %v2161 = vrot.slane %v2159, 2
      %v2162 = vor.u32 %v2158, %v2161
      %v2163 = vsel %vm2119, %v2153, %v2162
      %v2165 = vshrl.u32 %v2105, 16
      %v2167 = vrot.slane %v2165, 1
      %v2168 = vshll.u32 %v2105, 16
      %v2170 = vrot.slane %v2168, 2
      %v2171 = vor.u32 %v2167, %v2170
      %v2172 = vsel %vm2119, %v2162, %v2171
      %v2174 = vshrl.u32 %v2106, 16
      %v2176 = vrot.slane %v2174, 1
      %v2177 = vshll.u32 %v2106, 16
      %v2179 = vrot.slane %v2177, 2
      %v2180 = vor.u32 %v2176, %v2179
      %v2181 = vsel %vm2119, %v2171, %v2180
      %v2183 = vshrl.u32 %v2107, 16
      %v2185 = vrot.slane %v2183, 1
      %v2186 = vshll.u32 %v2107, 16
      %v2188 = vrot.slane %v2186, 2
      %v2189 = vor.u32 %v2185, %v2188
      %v2190 = vsel %vm2119, %v2180, %v2189
      %v2192 = vshrl.u32 %v2108, 16
      %v2194 = vrot.slane %v2192, 1
      %v2195 = vshll.u32 %v2108, 16
      %v2197 = vrot.slane %v2195, 2
      %v2198 = vor.u32 %v2194, %v2197
      %v2199 = vsel %vm2119, %v2189, %v2198
      %v2201 = vshrl.u32 %v2109, 16
      %v2203 = vrot.slane %v2201, 1
      %v2204 = vshll.u32 %v2109, 16
      %v2206 = vrot.slane %v2204, 2
      %v2207 = vor.u32 %v2203, %v2206
      %v2208 = vsel %vm2119, %v2198, %v2207
      %v2210 = vshrl.u32 %v2110, 16
      %v2212 = vrot.slane %v2210, 1
      %v2213 = vshll.u32 %v2110, 16
      %v2215 = vrot.slane %v2213, 2
      %v2216 = vor.u32 %v2212, %v2215
      %v2217 = vsel %vm2119, %v2207, %v2216
      %v2219 = vshrl.u32 %v2111, 16
      %v2221 = vrot.slane %v2219, 1
      %v2222 = vshll.u32 %v2111, 16
      %v2224 = vrot.slane %v2222, 2
      %v2225 = vor.u32 %v2221, %v2224
      %v2226 = vsel %vm2119, %v2216, %v2225
      %v2228 = vshrl.u32 %v2112, 16
      %v2230 = vrot.slane %v2228, 1
      %v2231 = vshll.u32 %v2112, 16
      %v2233 = vrot.slane %v2231, 2
      %v2234 = vor.u32 %v2230, %v2233
      %v2235 = vsel %vm2119, %v2225, %v2234
      %v2237 = vshrl.u32 %v2113, 16
      %v2239 = vrot.slane %v2237, 1
      %v2240 = vshll.u32 %v2113, 16
      %v2242 = vrot.slane %v2240, 2
      %v2243 = vor.u32 %v2239, %v2242
      %v2244 = vsel %vm2119, %v2234, %v2243
      %v2246 = vshrl.u32 %v2114, 16
      %v2248 = vrot.slane %v2246, 1
      %v2249 = vshll.u32 %v2114, 16
      %v2251 = vrot.slane %v2249, 2
      %v2252 = vor.u32 %v2248, %v2251
      %v2253 = vsel %vm2119, %v2243, %v2252
      %v2255 = vshrl.u32 %v2115, 16
      %v2257 = vrot.slane %v2255, 1
      %v2258 = vshll.u32 %v2115, 16
      %v2260 = vrot.slane %v2258, 2
      %v2261 = vor.u32 %v2257, %v2260
      %v2262 = vsel %vm2119, %v2252, %v2261
      %v2264 = vshrl.u32 %v2116, 16
      %v2266 = vrot.slane %v2264, 1
      %v2267 = vshll.u32 %v2116, 16
      %v2269 = vrot.slane %v2267, 2
      %v2270 = vor.u32 %v2266, %v2269
      %v2271 = vsel %vm2119, %v2261, %v2270
      %v2273 = vshrl.u32 %v2117, 16
      %v2275 = vrot.slane %v2273, 1
      %v2276 = vshll.u32 %v2117, 16
      %v2278 = vrot.slane %v2276, 2
      %v2279 = vor.u32 %v2275, %v2278
      %v2280 = vsel %vm2119, %v2270, %v2279
      %v2282 = vshrl.u32 %v2118, 16
      %v2284 = vrot.slane %v2282, 1
      %v2285 = vshll.u32 %v2118, 16
      %v2287 = vrot.slane %v2285, 2
      %v2288 = vor.u32 %v2284, %v2287
      %v2289 = vsel %vm2119, %v2279, %v2288
      %v2291 = vsel %vm381, %v2136, 0
      %v2294 = vsel %vm381, %v2145, 0
      %v2297 = vsel %vm381, %v2154, 0
      %v2300 = vsel %vm381, %v2163, 0
      %v2303 = vsel %vm381, %v2172, 0
      %v2306 = vsel %vm381, %v2181, 0
      %v2309 = vsel %vm381, %v2190, 0
      %v2312 = vsel %vm381, %v2199, 0
      %v2315 = vsel %vm381, %v2208, 0
      %v2318 = vsel %vm381, %v2217, 0
      %v2321 = vsel %vm381, %v2226, 0
      %v2324 = vsel %vm381, %v2235, 0
      %v2327 = vsel %vm381, %v2244, 0
      %v2330 = vsel %vm381, %v2253, 0
      %v2333 = vsel %vm381, %v2262, 0
      %v2336 = vsel %vm381, %v2271, 0
      %v2339 = vsel %vm381, %v2280, 0
      %v2342 = vsel %vm381, %v2289, 0
      %v2345 = vsel %vm436, %v2025, 0
      %2347 = vmatpush.bf16.msra.mxu0 0
      %2348 = vmatpush.bf16.msra.mxu0 0
      %2349 = vmatpush.bf16.msra.mxu0 0
      %2350 = vmatpush.bf16.msra.mxu0 0
      %2351 = vmatpush.bf16.msra.mxu0 0
      %2352 = vmatpush.bf16.msra.mxu0 0
      %2353 = vmatpush.bf16.msra.mxu0 0
      %2354 = vmatpush.bf16.msra.mxu0 %v2345
      %2355 = vmatmul.bf16.gmra.mxu0 %v2291
      %v2356 = vpop.f32.mrf.mxu0
      %v2357 = vadd.f32 0.0, %v2356
      %v2358 = vpop.f32.mrf.mxu0
      %v2359 = vadd.f32 0.0, %v2358
      %2360 = vmatmul.bf16.gmra.mxu0 %v2294
      %v2361 = vpop.f32.mrf.mxu0
      %v2362 = vadd.f32 0.0, %v2361
      %v2363 = vpop.f32.mrf.mxu0
      %v2364 = vadd.f32 0.0, %v2363
      %2365 = vmatmul.bf16.gmra.mxu0 %v2297
      %v2366 = vpop.f32.mrf.mxu0
      %v2367 = vadd.f32 0.0, %v2366
      %v2368 = vpop.f32.mrf.mxu0
      %v2369 = vadd.f32 0.0, %v2368
      %2370 = vmatmul.bf16.gmra.mxu0 %v2300
      %v2371 = vpop.f32.mrf.mxu0
      %v2372 = vadd.f32 0.0, %v2371
      %v2373 = vpop.f32.mrf.mxu0
      %v2374 = vadd.f32 0.0, %v2373
      %2375 = vmatmul.bf16.gmra.mxu0 %v2303
      %v2376 = vpop.f32.mrf.mxu0
      %v2377 = vadd.f32 0.0, %v2376
      %v2378 = vpop.f32.mrf.mxu0
      %v2379 = vadd.f32 0.0, %v2378
      %2380 = vmatmul.bf16.gmra.mxu0 %v2306
      %v2381 = vpop.f32.mrf.mxu0
      %v2382 = vadd.f32 0.0, %v2381
      %v2383 = vpop.f32.mrf.mxu0
      %v2384 = vadd.f32 0.0, %v2383
      %2385 = vmatmul.bf16.gmra.mxu0 %v2309
      %v2386 = vpop.f32.mrf.mxu0
      %v2387 = vadd.f32 0.0, %v2386
      %v2388 = vpop.f32.mrf.mxu0
      %v2389 = vadd.f32 0.0, %v2388
      %2390 = vmatmul.bf16.gmra.mxu0 %v2312
      %v2391 = vpop.f32.mrf.mxu0
      %v2392 = vadd.f32 0.0, %v2391
      %v2393 = vpop.f32.mrf.mxu0
      %v2394 = vadd.f32 0.0, %v2393
      %2395 = vmatmul.bf16.gmra.mxu0 %v2315
      %v2396 = vpop.f32.mrf.mxu0
      %v2397 = vadd.f32 0.0, %v2396
      %v2398 = vpop.f32.mrf.mxu0
      %v2399 = vadd.f32 0.0, %v2398
      %2400 = vmatmul.bf16.gmra.mxu0 %v2318
      %v2401 = vpop.f32.mrf.mxu0
      %v2402 = vadd.f32 0.0, %v2401
      %v2403 = vpop.f32.mrf.mxu0
      %v2404 = vadd.f32 0.0, %v2403
      %2405 = vmatmul.bf16.gmra.mxu0 %v2321
      %v2406 = vpop.f32.mrf.mxu0
      %v2407 = vadd.f32 0.0, %v2406
      %v2408 = vpop.f32.mrf.mxu0
      %v2409 = vadd.f32 0.0, %v2408
      %2410 = vmatmul.bf16.gmra.mxu0 %v2324
      %v2411 = vpop.f32.mrf.mxu0
      %v2412 = vadd.f32 0.0, %v2411
      %v2413 = vpop.f32.mrf.mxu0
      %v2414 = vadd.f32 0.0, %v2413
      %2415 = vmatmul.bf16.gmra.mxu0 %v2327
      %v2416 = vpop.f32.mrf.mxu0
      %v2417 = vadd.f32 0.0, %v2416
      %v2418 = vpop.f32.mrf.mxu0
      %v2419 = vadd.f32 0.0, %v2418
      %2420 = vmatmul.bf16.gmra.mxu0 %v2330
      %v2421 = vpop.f32.mrf.mxu0
      %v2422 = vadd.f32 0.0, %v2421
      %v2423 = vpop.f32.mrf.mxu0
      %v2424 = vadd.f32 0.0, %v2423
      %2425 = vmatmul.bf16.gmra.mxu0 %v2333
      %v2426 = vpop.f32.mrf.mxu0
      %v2427 = vadd.f32 0.0, %v2426
      %v2428 = vpop.f32.mrf.mxu0
      %v2429 = vadd.f32 0.0, %v2428
      %2430 = vmatmul.bf16.gmra.mxu0 %v2336
      %v2431 = vpop.f32.mrf.mxu0
      %v2432 = vadd.f32 0.0, %v2431
      %v2433 = vpop.f32.mrf.mxu0
      %v2434 = vadd.f32 0.0, %v2433
      %2435 = vmatmul.bf16.gmra.mxu0 %v2339
      %v2436 = vpop.f32.mrf.mxu0
      %v2437 = vadd.f32 0.0, %v2436
      %v2438 = vpop.f32.mrf.mxu0
      %v2439 = vadd.f32 0.0, %v2438
      %2440 = vmatmul.bf16.gmra.mxu0 %v2342
      %v2441 = vpop.f32.mrf.mxu0
      %v2442 = vadd.f32 0.0, %v2441
      %v2443 = vpop.f32.mrf.mxu0
      %v2444 = vadd.f32 0.0, %v2443
      %2445 = vdwg.mxu0
      %v2446 = vld [vmem:[#allocation2] sm:$0xff]
      %v2447 = vld [vmem:[#allocation2 + $0x8] sm:$0xff]
      %v2448 = vld [vmem:[#allocation2 + $0x10] sm:$0xff]
      %v2449 = vld [vmem:[#allocation2 + $0x18] sm:$0xff]
      %v2450 = vld [vmem:[#allocation2 + $0x20] sm:$0xff]
      %v2451 = vld [vmem:[#allocation2 + $0x28] sm:$0xff]
      %v2452 = vld [vmem:[#allocation2 + $0x30] sm:$0xff]
      %v2453 = vld [vmem:[#allocation2 + $0x38] sm:$0xff]
      %v2454 = vld [vmem:[#allocation2 + $0x40] sm:$0xff]
      %v2455 = vld [vmem:[#allocation2 + $0x48] sm:$0xff]
      %v2456 = vld [vmem:[#allocation2 + $0x50] sm:$0xff]
      %v2457 = vld [vmem:[#allocation2 + $0x58] sm:$0xff]
      %v2458 = vld [vmem:[#allocation2 + $0x60] sm:$0xff]
      %v2459 = vld [vmem:[#allocation2 + $0x68] sm:$0xff]
      %v2460 = vld [vmem:[#allocation2 + $0x70] sm:$0xff]
      %v2461 = vld [vmem:[#allocation2 + $0x78] sm:$0xff]
      %v2462 = vld [vmem:[#allocation2 + $0x80] sm:$0xff]
      %v2463 = vld [vmem:[#allocation2 + $0x88] sm:$0xff]
      %v2464 = vld [vmem:[#allocation2 + $0x90] sm:$0xff]
      %v2465 = vld [vmem:[#allocation2 + $0x98] sm:$0xff]
      %v2466 = vld [vmem:[#allocation2 + $0xa0] sm:$0xff]
      %v2467 = vld [vmem:[#allocation2 + $0xa8] sm:$0xff]
      %v2468 = vld [vmem:[#allocation2 + $0xb0] sm:$0xff]
      %v2469 = vld [vmem:[#allocation2 + $0xb8] sm:$0xff]
      %v2470 = vld [vmem:[#allocation2 + $0xc0] sm:$0xff]
      %v2471 = vld [vmem:[#allocation2 + $0xc8] sm:$0xff]
      %v2472 = vld [vmem:[#allocation2 + $0xd0] sm:$0xff]
      %v2473 = vld [vmem:[#allocation2 + $0xd8] sm:$0xff]
      %v2474 = vld [vmem:[#allocation2 + $0xe0] sm:$0xff]
      %v2475 = vld [vmem:[#allocation2 + $0xe8] sm:$0xff]
      %v2476 = vld [vmem:[#allocation2 + $0xf0] sm:$0xff]
      %v2477 = vld [vmem:[#allocation2 + $0xf8] sm:$0xff]
      %v2478 = vld [vmem:[#allocation2 + $0x100] sm:$0xff]
      %v2479 = vld [vmem:[#allocation2 + $0x108] sm:$0xff]
      %v2480 = vld [vmem:[#allocation2 + $0x110] sm:$0xff]
      %v2481 = vld [vmem:[#allocation2 + $0x118] sm:$0xff]
      %v2482 = vadd.f32 %v2446, %v2357
      %v2483 = vadd.f32 %v2447, %v2359
      %v2484 = vadd.f32 %v2448, %v2362
      %v2485 = vadd.f32 %v2449, %v2364
      %v2486 = vadd.f32 %v2450, %v2367
      %v2487 = vadd.f32 %v2451, %v2369
      %v2488 = vadd.f32 %v2452, %v2372
      %v2489 = vadd.f32 %v2453, %v2374
      %v2490 = vadd.f32 %v2454, %v2377
      %v2491 = vadd.f32 %v2455, %v2379
      %v2492 = vadd.f32 %v2456, %v2382
      %v2493 = vadd.f32 %v2457, %v2384
      %v2494 = vadd.f32 %v2458, %v2387
      %v2495 = vadd.f32 %v2459, %v2389
      %v2496 = vadd.f32 %v2460, %v2392
      %v2497 = vadd.f32 %v2461, %v2394
      %v2498 = vadd.f32 %v2462, %v2397
      %v2499 = vadd.f32 %v2463, %v2399
      %v2500 = vadd.f32 %v2464, %v2402
      %v2501 = vadd.f32 %v2465, %v2404
      %v2502 = vadd.f32 %v2466, %v2407
      %v2503 = vadd.f32 %v2467, %v2409
      %v2504 = vadd.f32 %v2468, %v2412
      %v2505 = vadd.f32 %v2469, %v2414
      %v2506 = vadd.f32 %v2470, %v2417
      %v2507 = vadd.f32 %v2471, %v2419
      %v2508 = vadd.f32 %v2472, %v2422
      %v2509 = vadd.f32 %v2473, %v2424
      %v2510 = vadd.f32 %v2474, %v2427
      %v2511 = vadd.f32 %v2475, %v2429
      %v2512 = vadd.f32 %v2476, %v2432
      %v2513 = vadd.f32 %v2477, %v2434
      %v2514 = vadd.f32 %v2478, %v2437
      %v2515 = vadd.f32 %v2479, %v2439
      %v2516 = vadd.f32 %v2480, %v2442
      %v2517 = vadd.f32 %v2481, %v2444
      %2518 = vst [vmem:[#allocation2] sm:$0xff] %v2482
      %2519 = vst [vmem:[#allocation2 + $0x8] sm:$0xff] %v2483
      %2520 = vst [vmem:[#allocation2 + $0x10] sm:$0xff] %v2484
      %2521 = vst [vmem:[#allocation2 + $0x18] sm:$0xff] %v2485
      %2522 = vst [vmem:[#allocation2 + $0x20] sm:$0xff] %v2486
      %2523 = vst [vmem:[#allocation2 + $0x28] sm:$0xff] %v2487
      %2524 = vst [vmem:[#allocation2 + $0x30] sm:$0xff] %v2488
      %2525 = vst [vmem:[#allocation2 + $0x38] sm:$0xff] %v2489
      %2526 = vst [vmem:[#allocation2 + $0x40] sm:$0xff] %v2490
      %2527 = vst [vmem:[#allocation2 + $0x48] sm:$0xff] %v2491
      %2528 = vst [vmem:[#allocation2 + $0x50] sm:$0xff] %v2492
      %2529 = vst [vmem:[#allocation2 + $0x58] sm:$0xff] %v2493
      %2530 = vst [vmem:[#allocation2 + $0x60] sm:$0xff] %v2494
      %2531 = vst [vmem:[#allocation2 + $0x68] sm:$0xff] %v2495
      %2532 = vst [vmem:[#allocation2 + $0x70] sm:$0xff] %v2496
      %2533 = vst [vmem:[#allocation2 + $0x78] sm:$0xff] %v2497
      %2534 = vst [vmem:[#allocation2 + $0x80] sm:$0xff] %v2498
      %2535 = vst [vmem:[#allocation2 + $0x88] sm:$0xff] %v2499
      %2536 = vst [vmem:[#allocation2 + $0x90] sm:$0xff] %v2500
      %2537 = vst [vmem:[#allocation2 + $0x98] sm:$0xff] %v2501
      %2538 = vst [vmem:[#allocation2 + $0xa0] sm:$0xff] %v2502
      %2539 = vst [vmem:[#allocation2 + $0xa8] sm:$0xff] %v2503
      %2540 = vst [vmem:[#allocation2 + $0xb0] sm:$0xff] %v2504
      %2541 = vst [vmem:[#allocation2 + $0xb8] sm:$0xff] %v2505
      %2542 = vst [vmem:[#allocation2 + $0xc0] sm:$0xff] %v2506
      %2543 = vst [vmem:[#allocation2 + $0xc8] sm:$0xff] %v2507
      %2544 = vst [vmem:[#allocation2 + $0xd0] sm:$0xff] %v2508
      %2545 = vst [vmem:[#allocation2 + $0xd8] sm:$0xff] %v2509
      %2546 = vst [vmem:[#allocation2 + $0xe0] sm:$0xff] %v2510
      %2547 = vst [vmem:[#allocation2 + $0xe8] sm:$0xff] %v2511
      %2548 = vst [vmem:[#allocation2 + $0xf0] sm:$0xff] %v2512
      %2549 = vst [vmem:[#allocation2 + $0xf8] sm:$0xff] %v2513
      %2550 = vst [vmem:[#allocation2 + $0x100] sm:$0xff] %v2514
      %2551 = vst [vmem:[#allocation2 + $0x108] sm:$0xff] %v2515
      %2552 = vst [vmem:[#allocation2 + $0x110] sm:$0xff] %v2516
      %2553 = vst [vmem:[#allocation2 + $0x118] sm:$0xff] %v2517
      %v2554 = vld [vmem:[%s233 + $0x8] sm:$0xc]
      %v2555 = vld [vmem:[%s233 + $0xc] sm:$0xf]
      %v2556 = vld [vmem:[%s233 + $0x10] sm:$0xf]
      %v2557 = vld [vmem:[%s233 + $0x14] sm:$0xf]
      %v2558 = vld [vmem:[%s233 + $0x18] sm:$0xf]
      %v2559 = vld [vmem:[%s233 + $0x1c] sm:$0xf]
      %v2560 = vld [vmem:[%s233 + $0x20] sm:$0xf]
      %v2561 = vld [vmem:[%s233 + $0x24] sm:$0xf]
      %v2562 = vld [vmem:[%s233 + $0x28] sm:$0xf]
      %v2563 = vld [vmem:[%s233 + $0x2c] sm:$0xf]
      %v2564 = vld [vmem:[%s233 + $0x30] sm:$0xf]
      %v2565 = vld [vmem:[%s233 + $0x34] sm:$0xf]
      %v2566 = vld [vmem:[%s233 + $0x38] sm:$0xf]
      %v2567 = vld [vmem:[%s233 + $0x3c] sm:$0xf]
      %v2568 = vld [vmem:[%s233 + $0x40] sm:$0xf]
      %v2569 = vld [vmem:[%s233 + $0x44] sm:$0xf]
      %v2570 = vld [vmem:[%s233 + $0x48] sm:$0xf]
      %v2571 = vld [vmem:[%s233 + $0x4c] sm:$0xf]
      %v2572 = vld [vmem:[%s233 + $0x50] sm:$0xf]
      %v2573 = vld [vmem:[%s233 + $0x54] sm:$0xf]
      %v2574 = vld [vmem:[%s233 + $0x58] sm:$0xf]
      %v2575 = vld [vmem:[%s233 + $0x5c] sm:$0xf]
      %v2576 = vld [vmem:[%s233 + $0x60] sm:$0xf]
      %v2577 = vld [vmem:[%s233 + $0x64] sm:$0xf]
      %v2578 = vld [vmem:[%s233 + $0x68] sm:$0xf]
      %v2579 = vld [vmem:[%s233 + $0x6c] sm:$0xf]
      %v2580 = vld [vmem:[%s233 + $0x70] sm:$0xf]
      %v2581 = vld [vmem:[%s233 + $0x74] sm:$0xf]
      %v2582 = vld [vmem:[%s233 + $0x78] sm:$0xf]
      %v2583 = vld [vmem:[%s233 + $0x7c] sm:$0xf]
      %v2584 = vld [vmem:[%s233 + $0x80] sm:$0xf]
      %v2585 = vld [vmem:[%s233 + $0x84] sm:$0xf]
      %v2586 = vld [vmem:[%s233 + $0x88] sm:$0xf]
      %v2587 = vld [vmem:[%s233 + $0x8c] sm:$0xf]
      %v2588 = vld [vmem:[%s233 + $0x90] sm:$0xf]
      %v2589 = vld [vmem:[%s233 + $0x94] sm:$0xf]
      %v2590 = vld [vmem:[%s233 + $0x98] sm:$0x3]
      %s2591 = scalar_lea.vmem %s237, 10
      %v2592 = vld [vmem:[%s2591] sm:$0x3]
      %v2630 = vunpack.c.l.b16 %v2554
      %v2631 = vunpack.c.l.b16 %v2555
      %v2632 = vunpack.c.l.b16 %v2556
      %v2633 = vunpack.c.l.b16 %v2557
      %v2634 = vunpack.c.l.b16 %v2558
      %v2635 = vunpack.c.l.b16 %v2559
      %v2636 = vunpack.c.l.b16 %v2560
      %v2637 = vunpack.c.l.b16 %v2561
      %v2638 = vunpack.c.l.b16 %v2562
      %v2639 = vunpack.c.l.b16 %v2563
      %v2640 = vunpack.c.l.b16 %v2564
      %v2641 = vunpack.c.l.b16 %v2565
      %v2642 = vunpack.c.l.b16 %v2566
      %v2643 = vunpack.c.l.b16 %v2567
      %v2644 = vunpack.c.l.b16 %v2568
      %v2645 = vunpack.c.l.b16 %v2569
      %v2646 = vunpack.c.l.b16 %v2570
      %v2647 = vunpack.c.l.b16 %v2571
      %v2648 = vunpack.c.l.b16 %v2572
      %v2649 = vunpack.c.l.b16 %v2573
      %v2650 = vunpack.c.l.b16 %v2574
      %v2651 = vunpack.c.l.b16 %v2575
      %v2652 = vunpack.c.l.b16 %v2576
      %v2653 = vunpack.c.l.b16 %v2577
      %v2654 = vunpack.c.l.b16 %v2578
      %v2655 = vunpack.c.l.b16 %v2579
      %v2656 = vunpack.c.l.b16 %v2580
      %v2657 = vunpack.c.l.b16 %v2581
      %v2658 = vunpack.c.l.b16 %v2582
      %v2659 = vunpack.c.l.b16 %v2583
      %v2660 = vunpack.c.l.b16 %v2584
      %v2661 = vunpack.c.l.b16 %v2585
      %v2662 = vunpack.c.l.b16 %v2586
      %v2663 = vunpack.c.l.b16 %v2587
      %v2664 = vunpack.c.l.b16 %v2588
      %v2665 = vunpack.c.l.b16 %v2589
      %v2666 = vunpack.c.l.b16 %v2590
      %v2667 = vpack.c.b16 %v2631, %v2630
      %v2668 = vpack.c.b16 %v2633, %v2632
      %v2669 = vpack.c.b16 %v2635, %v2634
      %v2670 = vpack.c.b16 %v2637, %v2636
      %v2671 = vpack.c.b16 %v2639, %v2638
      %v2672 = vpack.c.b16 %v2641, %v2640
      %v2673 = vpack.c.b16 %v2643, %v2642
      %v2674 = vpack.c.b16 %v2645, %v2644
      %v2675 = vpack.c.b16 %v2647, %v2646
      %v2676 = vpack.c.b16 %v2649, %v2648
      %v2677 = vpack.c.b16 %v2651, %v2650
      %v2678 = vpack.c.b16 %v2653, %v2652
      %v2679 = vpack.c.b16 %v2655, %v2654
      %v2680 = vpack.c.b16 %v2657, %v2656
      %v2681 = vpack.c.b16 %v2659, %v2658
      %v2682 = vpack.c.b16 %v2661, %v2660
      %v2683 = vpack.c.b16 %v2663, %v2662
      %v2684 = vpack.c.b16 %v2665, %v2664
      %v2685 = vpack.c.b16 %v2666, %v2666
      %vm2686 = vcmask 1045504
      %v2687 = vrot.slane %v2667, 2
      %v2688 = vrot.slane %v2668, 2
      %v2689 = vsel %vm2686, %v2687, %v2688
      %v2690 = vrot.slane %v2669, 2
      %v2691 = vsel %vm2686, %v2688, %v2690
      %v2692 = vrot.slane %v2670, 2
      %v2693 = vsel %vm2686, %v2690, %v2692
      %v2694 = vrot.slane %v2671, 2
      %v2695 = vsel %vm2686, %v2692, %v2694
      %v2696 = vrot.slane %v2672, 2
      %v2697 = vsel %vm2686, %v2694, %v2696
      %v2698 = vrot.slane %v2673, 2
      %v2699 = vsel %vm2686, %v2696, %v2698
      %v2700 = vrot.slane %v2674, 2
      %v2701 = vsel %vm2686, %v2698, %v2700
      %v2702 = vrot.slane %v2675, 2
      %v2703 = vsel %vm2686, %v2700, %v2702
      %v2704 = vrot.slane %v2676, 2
      %v2705 = vsel %vm2686, %v2702, %v2704
      %v2706 = vrot.slane %v2677, 2
      %v2707 = vsel %vm2686, %v2704, %v2706
      %v2708 = vrot.slane %v2678, 2
      %v2709 = vsel %vm2686, %v2706, %v2708
      %v2710 = vrot.slane %v2679, 2
      %v2711 = vsel %vm2686, %v2708, %v2710
      %v2712 = vrot.slane %v2680, 2
      %v2713 = vsel %vm2686, %v2710, %v2712
      %v2714 = vrot.slane %v2681, 2
      %v2715 = vsel %vm2686, %v2712, %v2714
      %v2716 = vrot.slane %v2682, 2
      %v2717 = vsel %vm2686, %v2714, %v2716
      %v2718 = vrot.slane %v2683, 2
      %v2719 = vsel %vm2686, %v2716, %v2718
      %v2720 = vrot.slane %v2684, 2
      %v2721 = vsel %vm2686, %v2718, %v2720
      %v2722 = vrot.slane %v2685, 2
      %v2723 = vsel %vm2686, %v2720, %v2722
      %v2725 = vsel %vm381, %v2689, 0
      %v2728 = vsel %vm381, %v2691, 0
      %v2731 = vsel %vm381, %v2693, 0
      %v2734 = vsel %vm381, %v2695, 0
      %v2737 = vsel %vm381, %v2697, 0
      %v2740 = vsel %vm381, %v2699, 0
      %v2743 = vsel %vm381, %v2701, 0
      %v2746 = vsel %vm381, %v2703, 0
      %v2749 = vsel %vm381, %v2705, 0
      %v2752 = vsel %vm381, %v2707, 0
      %v2755 = vsel %vm381, %v2709, 0
      %v2758 = vsel %vm381, %v2711, 0
      %v2761 = vsel %vm381, %v2713, 0
      %v2764 = vsel %vm381, %v2715, 0
      %v2767 = vsel %vm381, %v2717, 0
      %v2770 = vsel %vm381, %v2719, 0
      %v2773 = vsel %vm381, %v2721, 0
      %v2776 = vsel %vm381, %v2723, 0
      %v2779 = vsel %vm436, %v2592, 0
      %2781 = vmatpush.bf16.msra.mxu0 0
      %2782 = vmatpush.bf16.msra.mxu0 0
      %2783 = vmatpush.bf16.msra.mxu0 0
      %2784 = vmatpush.bf16.msra.mxu0 0
      %2785 = vmatpush.bf16.msra.mxu0 0
      %2786 = vmatpush.bf16.msra.mxu0 0
      %2787 = vmatpush.bf16.msra.mxu0 0
      %2788 = vmatpush.bf16.msra.mxu0 %v2779
      %2789 = vmatmul.bf16.gmra.mxu0 %v2725
      %v2790 = vpop.f32.mrf.mxu0
      %v2791 = vadd.f32 0.0, %v2790
      %v2792 = vpop.f32.mrf.mxu0
      %v2793 = vadd.f32 0.0, %v2792
      %2794 = vmatmul.bf16.gmra.mxu0 %v2728
      %v2795 = vpop.f32.mrf.mxu0
      %v2796 = vadd.f32 0.0, %v2795
      %v2797 = vpop.f32.mrf.mxu0
      %v2798 = vadd.f32 0.0, %v2797
      %2799 = vmatmul.bf16.gmra.mxu0 %v2731
      %v2800 = vpop.f32.mrf.mxu0
      %v2801 = vadd.f32 0.0, %v2800
      %v2802 = vpop.f32.mrf.mxu0
      %v2803 = vadd.f32 0.0, %v2802
      %2804 = vmatmul.bf16.gmra.mxu0 %v2734
      %v2805 = vpop.f32.mrf.mxu0
      %v2806 = vadd.f32 0.0, %v2805
      %v2807 = vpop.f32.mrf.mxu0
      %v2808 = vadd.f32 0.0, %v2807
      %2809 = vmatmul.bf16.gmra.mxu0 %v2737
      %v2810 = vpop.f32.mrf.mxu0
      %v2811 = vadd.f32 0.0, %v2810
      %v2812 = vpop.f32.mrf.mxu0
      %v2813 = vadd.f32 0.0, %v2812
      %2814 = vmatmul.bf16.gmra.mxu0 %v2740
      %v2815 = vpop.f32.mrf.mxu0
      %v2816 = vadd.f32 0.0, %v2815
      %v2817 = vpop.f32.mrf.mxu0
      %v2818 = vadd.f32 0.0, %v2817
      %2819 = vmatmul.bf16.gmra.mxu0 %v2743
      %v2820 = vpop.f32.mrf.mxu0
      %v2821 = vadd.f32 0.0, %v2820
      %v2822 = vpop.f32.mrf.mxu0
      %v2823 = vadd.f32 0.0, %v2822
      %2824 = vmatmul.bf16.gmra.mxu0 %v2746
      %v2825 = vpop.f32.mrf.mxu0
      %v2826 = vadd.f32 0.0, %v2825
      %v2827 = vpop.f32.mrf.mxu0
      %v2828 = vadd.f32 0.0, %v2827
      %2829 = vmatmul.bf16.gmra.mxu0 %v2749
      %v2830 = vpop.f32.mrf.mxu0
      %v2831 = vadd.f32 0.0, %v2830
      %v2832 = vpop.f32.mrf.mxu0
      %v2833 = vadd.f32 0.0, %v2832
      %2834 = vmatmul.bf16.gmra.mxu0 %v2752
      %v2835 = vpop.f32.mrf.mxu0
      %v2836 = vadd.f32 0.0, %v2835
      %v2837 = vpop.f32.mrf.mxu0
      %v2838 = vadd.f32 0.0, %v2837
      %2839 = vmatmul.bf16.gmra.mxu0 %v2755
      %v2840 = vpop.f32.mrf.mxu0
      %v2841 = vadd.f32 0.0, %v2840
      %v2842 = vpop.f32.mrf.mxu0
      %v2843 = vadd.f32 0.0, %v2842
      %2844 = vmatmul.bf16.gmra.mxu0 %v2758
      %v2845 = vpop.f32.mrf.mxu0
      %v2846 = vadd.f32 0.0, %v2845
      %v2847 = vpop.f32.mrf.mxu0
      %v2848 = vadd.f32 0.0, %v2847
      %2849 = vmatmul.bf16.gmra.mxu0 %v2761
      %v2850 = vpop.f32.mrf.mxu0
      %v2851 = vadd.f32 0.0, %v2850
      %v2852 = vpop.f32.mrf.mxu0
      %v2853 = vadd.f32 0.0, %v2852
      %2854 = vmatmul.bf16.gmra.mxu0 %v2764
      %v2855 = vpop.f32.mrf.mxu0
      %v2856 = vadd.f32 0.0, %v2855
      %v2857 = vpop.f32.mrf.mxu0
      %v2858 = vadd.f32 0.0, %v2857
      %2859 = vmatmul.bf16.gmra.mxu0 %v2767
      %v2860 = vpop.f32.mrf.mxu0
      %v2861 = vadd.f32 0.0, %v2860
      %v2862 = vpop.f32.mrf.mxu0
      %v2863 = vadd.f32 0.0, %v2862
      %2864 = vmatmul.bf16.gmra.mxu0 %v2770
      %v2865 = vpop.f32.mrf.mxu0
      %v2866 = vadd.f32 0.0, %v2865
      %v2867 = vpop.f32.mrf.mxu0
      %v2868 = vadd.f32 0.0, %v2867
      %2869 = vmatmul.bf16.gmra.mxu0 %v2773
      %v2870 = vpop.f32.mrf.mxu0
      %v2871 = vadd.f32 0.0, %v2870
      %v2872 = vpop.f32.mrf.mxu0
      %v2873 = vadd.f32 0.0, %v2872
      %2874 = vmatmul.bf16.gmra.mxu0 %v2776
      %v2875 = vpop.f32.mrf.mxu0
      %v2876 = vadd.f32 0.0, %v2875
      %v2877 = vpop.f32.mrf.mxu0
      %v2878 = vadd.f32 0.0, %v2877
      %2879 = vdwg.mxu0
      %v2880 = vld [vmem:[#allocation2] sm:$0xff]
      %v2881 = vld [vmem:[#allocation2 + $0x8] sm:$0xff]
      %v2882 = vld [vmem:[#allocation2 + $0x10] sm:$0xff]
      %v2883 = vld [vmem:[#allocation2 + $0x18] sm:$0xff]
      %v2884 = vld [vmem:[#allocation2 + $0x20] sm:$0xff]
      %v2885 = vld [vmem:[#allocation2 + $0x28] sm:$0xff]
      %v2886 = vld [vmem:[#allocation2 + $0x30] sm:$0xff]
      %v2887 = vld [vmem:[#allocation2 + $0x38] sm:$0xff]
      %v2888 = vld [vmem:[#allocation2 + $0x40] sm:$0xff]
      %v2889 = vld [vmem:[#allocation2 + $0x48] sm:$0xff]
      %v2890 = vld [vmem:[#allocation2 + $0x50] sm:$0xff]
      %v2891 = vld [vmem:[#allocation2 + $0x58] sm:$0xff]
      %v2892 = vld [vmem:[#allocation2 + $0x60] sm:$0xff]
      %v2893 = vld [vmem:[#allocation2 + $0x68] sm:$0xff]
      %v2894 = vld [vmem:[#allocation2 + $0x70] sm:$0xff]
      %v2895 = vld [vmem:[#allocation2 + $0x78] sm:$0xff]
      %v2896 = vld [vmem:[#allocation2 + $0x80] sm:$0xff]
      %v2897 = vld [vmem:[#allocation2 + $0x88] sm:$0xff]
      %v2898 = vld [vmem:[#allocation2 + $0x90] sm:$0xff]
      %v2899 = vld [vmem:[#allocation2 + $0x98] sm:$0xff]
      %v2900 = vld [vmem:[#allocation2 + $0xa0] sm:$0xff]
      %v2901 = vld [vmem:[#allocation2 + $0xa8] sm:$0xff]
      %v2902 = vld [vmem:[#allocation2 + $0xb0] sm:$0xff]
      %v2903 = vld [vmem:[#allocation2 + $0xb8] sm:$0xff]
      %v2904 = vld [vmem:[#allocation2 + $0xc0] sm:$0xff]
      %v2905 = vld [vmem:[#allocation2 + $0xc8] sm:$0xff]
      %v2906 = vld [vmem:[#allocation2 + $0xd0] sm:$0xff]
      %v2907 = vld [vmem:[#allocation2 + $0xd8] sm:$0xff]
      %v2908 = vld [vmem:[#allocation2 + $0xe0] sm:$0xff]
      %v2909 = vld [vmem:[#allocation2 + $0xe8] sm:$0xff]
      %v2910 = vld [vmem:[#allocation2 + $0xf0] sm:$0xff]
      %v2911 = vld [vmem:[#allocation2 + $0xf8] sm:$0xff]
      %v2912 = vld [vmem:[#allocation2 + $0x100] sm:$0xff]
      %v2913 = vld [vmem:[#allocation2 + $0x108] sm:$0xff]
      %v2914 = vld [vmem:[#allocation2 + $0x110] sm:$0xff]
      %v2915 = vld [vmem:[#allocation2 + $0x118] sm:$0xff]
      %v2916 = vadd.f32 %v2880, %v2791
      %v2917 = vadd.f32 %v2881, %v2793
      %v2918 = vadd.f32 %v2882, %v2796
      %v2919 = vadd.f32 %v2883, %v2798
      %v2920 = vadd.f32 %v2884, %v2801
      %v2921 = vadd.f32 %v2885, %v2803
      %v2922 = vadd.f32 %v2886, %v2806
      %v2923 = vadd.f32 %v2887, %v2808
      %v2924 = vadd.f32 %v2888, %v2811
      %v2925 = vadd.f32 %v2889, %v2813
      %v2926 = vadd.f32 %v2890, %v2816
      %v2927 = vadd.f32 %v2891, %v2818
      %v2928 = vadd.f32 %v2892, %v2821
      %v2929 = vadd.f32 %v2893, %v2823
      %v2930 = vadd.f32 %v2894, %v2826
      %v2931 = vadd.f32 %v2895, %v2828
      %v2932 = vadd.f32 %v2896, %v2831
      %v2933 = vadd.f32 %v2897, %v2833
      %v2934 = vadd.f32 %v2898, %v2836
      %v2935 = vadd.f32 %v2899, %v2838
      %v2936 = vadd.f32 %v2900, %v2841
      %v2937 = vadd.f32 %v2901, %v2843
      %v2938 = vadd.f32 %v2902, %v2846
      %v2939 = vadd.f32 %v2903, %v2848
      %v2940 = vadd.f32 %v2904, %v2851
      %v2941 = vadd.f32 %v2905, %v2853
      %v2942 = vadd.f32 %v2906, %v2856
      %v2943 = vadd.f32 %v2907, %v2858
      %v2944 = vadd.f32 %v2908, %v2861
      %v2945 = vadd.f32 %v2909, %v2863
      %v2946 = vadd.f32 %v2910, %v2866
      %v2947 = vadd.f32 %v2911, %v2868
      %v2948 = vadd.f32 %v2912, %v2871
      %v2949 = vadd.f32 %v2913, %v2873
      %v2950 = vadd.f32 %v2914, %v2876
      %v2951 = vadd.f32 %v2915, %v2878
      %2952 = vst [vmem:[#allocation2] sm:$0xff] %v2916
      %2953 = vst [vmem:[#allocation2 + $0x8] sm:$0xff] %v2917
      %2954 = vst [vmem:[#allocation2 + $0x10] sm:$0xff] %v2918
      %2955 = vst [vmem:[#allocation2 + $0x18] sm:$0xff] %v2919
      %2956 = vst [vmem:[#allocation2 + $0x20] sm:$0xff] %v2920
      %2957 = vst [vmem:[#allocation2 + $0x28] sm:$0xff] %v2921
      %2958 = vst [vmem:[#allocation2 + $0x30] sm:$0xff] %v2922
      %2959 = vst [vmem:[#allocation2 + $0x38] sm:$0xff] %v2923
      %2960 = vst [vmem:[#allocation2 + $0x40] sm:$0xff] %v2924
      %2961 = vst [vmem:[#allocation2 + $0x48] sm:$0xff] %v2925
      %2962 = vst [vmem:[#allocation2 + $0x50] sm:$0xff] %v2926
      %2963 = vst [vmem:[#allocation2 + $0x58] sm:$0xff] %v2927
      %2964 = vst [vmem:[#allocation2 + $0x60] sm:$0xff] %v2928
      %2965 = vst [vmem:[#allocation2 + $0x68] sm:$0xff] %v2929
      %2966 = vst [vmem:[#allocation2 + $0x70] sm:$0xff] %v2930
      %2967 = vst [vmem:[#allocation2 + $0x78] sm:$0xff] %v2931
      %2968 = vst [vmem:[#allocation2 + $0x80] sm:$0xff] %v2932
      %2969 = vst [vmem:[#allocation2 + $0x88] sm:$0xff] %v2933
      %2970 = vst [vmem:[#allocation2 + $0x90] sm:$0xff] %v2934
      %2971 = vst [vmem:[#allocation2 + $0x98] sm:$0xff] %v2935
      %2972 = vst [vmem:[#allocation2 + $0xa0] sm:$0xff] %v2936
      %2973 = vst [vmem:[#allocation2 + $0xa8] sm:$0xff] %v2937
      %2974 = vst [vmem:[#allocation2 + $0xb0] sm:$0xff] %v2938
      %2975 = vst [vmem:[#allocation2 + $0xb8] sm:$0xff] %v2939
      %2976 = vst [vmem:[#allocation2 + $0xc0] sm:$0xff] %v2940
      %2977 = vst [vmem:[#allocation2 + $0xc8] sm:$0xff] %v2941
      %2978 = vst [vmem:[#allocation2 + $0xd0] sm:$0xff] %v2942
      %2979 = vst [vmem:[#allocation2 + $0xd8] sm:$0xff] %v2943
      %2980 = vst [vmem:[#allocation2 + $0xe0] sm:$0xff] %v2944
      %2981 = vst [vmem:[#allocation2 + $0xe8] sm:$0xff] %v2945
      %2982 = vst [vmem:[#allocation2 + $0xf0] sm:$0xff] %v2946
      %2983 = vst [vmem:[#allocation2 + $0xf8] sm:$0xff] %v2947
      %2984 = vst [vmem:[#allocation2 + $0x100] sm:$0xff] %v2948
      %2985 = vst [vmem:[#allocation2 + $0x108] sm:$0xff] %v2949
      %2986 = vst [vmem:[#allocation2 + $0x110] sm:$0xff] %v2950
      %2987 = vst [vmem:[#allocation2 + $0x118] sm:$0xff] %v2951
      %v2988 = vld [vmem:[%s233 + $0x10] sm:$0xc]
      %v2989 = vld [vmem:[%s233 + $0x14] sm:$0xf]
      %v2990 = vld [vmem:[%s233 + $0x18] sm:$0xf]
      %v2991 = vld [vmem:[%s233 + $0x1c] sm:$0xf]
      %v2992 = vld [vmem:[%s233 + $0x20] sm:$0xf]
      %v2993 = vld [vmem:[%s233 + $0x24] sm:$0xf]
      %v2994 = vld [vmem:[%s233 + $0x28] sm:$0xf]
      %v2995 = vld [vmem:[%s233 + $0x2c] sm:$0xf]
      %v2996 = vld [vmem:[%s233 + $0x30] sm:$0xf]
      %v2997 = vld [vmem:[%s233 + $0x34] sm:$0xf]
      %v2998 = vld [vmem:[%s233 + $0x38] sm:$0xf]
      %v2999 = vld [vmem:[%s233 + $0x3c] sm:$0xf]
      %v3000 = vld [vmem:[%s233 + $0x40] sm:$0xf]
      %v3001 = vld [vmem:[%s233 + $0x44] sm:$0xf]
      %v3002 = vld [vmem:[%s233 + $0x48] sm:$0xf]
      %v3003 = vld [vmem:[%s233 + $0x4c] sm:$0xf]
      %v3004 = vld [vmem:[%s233 + $0x50] sm:$0xf]
      %v3005 = vld [vmem:[%s233 + $0x54] sm:$0xf]
      %v3006 = vld [vmem:[%s233 + $0x58] sm:$0xf]
      %v3007 = vld [vmem:[%s233 + $0x5c] sm:$0xf]
      %v3008 = vld [vmem:[%s233 + $0x60] sm:$0xf]
      %v3009 = vld [vmem:[%s233 + $0x64] sm:$0xf]
      %v3010 = vld [vmem:[%s233 + $0x68] sm:$0xf]
      %v3011 = vld [vmem:[%s233 + $0x6c] sm:$0xf]
      %v3012 = vld [vmem:[%s233 + $0x70] sm:$0xf]
      %v3013 = vld [vmem:[%s233 + $0x74] sm:$0xf]
      %v3014 = vld [vmem:[%s233 + $0x78] sm:$0xf]
      %v3015 = vld [vmem:[%s233 + $0x7c] sm:$0xf]
      %v3016 = vld [vmem:[%s233 + $0x80] sm:$0xf]
      %v3017 = vld [vmem:[%s233 + $0x84] sm:$0xf]
      %v3018 = vld [vmem:[%s233 + $0x88] sm:$0xf]
      %v3019 = vld [vmem:[%s233 + $0x8c] sm:$0xf]
      %v3020 = vld [vmem:[%s233 + $0x90] sm:$0xf]
      %v3021 = vld [vmem:[%s233 + $0x94] sm:$0xf]
      %v3022 = vld [vmem:[%s233 + $0x98] sm:$0xf]
      %v3023 = vld [vmem:[%s233 + $0x9c] sm:$0xf]
      %v3024 = vld [vmem:[%s233 + $0xa0] sm:$0x3]
      %s3025 = scalar_lea.vmem %s237, 12
      %v3026 = vld [vmem:[%s3025] sm:$0x3]
      %v3064 = vunpack.c.l.b16 %v2988
      %v3065 = vunpack.c.l.b16 %v2989
      %v3066 = vunpack.c.l.b16 %v2990
      %v3067 = vunpack.c.l.b16 %v2991
      %v3068 = vunpack.c.l.b16 %v2992
      %v3069 = vunpack.c.l.b16 %v2993
      %v3070 = vunpack.c.l.b16 %v2994
      %v3071 = vunpack.c.l.b16 %v2995
      %v3072 = vunpack.c.l.b16 %v2996
      %v3073 = vunpack.c.l.b16 %v2997
      %v3074 = vunpack.c.l.b16 %v2998
      %v3075 = vunpack.c.l.b16 %v2999
      %v3076 = vunpack.c.l.b16 %v3000
      %v3077 = vunpack.c.l.b16 %v3001
      %v3078 = vunpack.c.l.b16 %v3002
      %v3079 = vunpack.c.l.b16 %v3003
      %v3080 = vunpack.c.l.b16 %v3004
      %v3081 = vunpack.c.l.b16 %v3005
      %v3082 = vunpack.c.l.b16 %v3006
      %v3083 = vunpack.c.l.b16 %v3007
      %v3084 = vunpack.c.l.b16 %v3008
      %v3085 = vunpack.c.l.b16 %v3009
      %v3086 = vunpack.c.l.b16 %v3010
      %v3087 = vunpack.c.l.b16 %v3011
      %v3088 = vunpack.c.l.b16 %v3012
      %v3089 = vunpack.c.l.b16 %v3013
      %v3090 = vunpack.c.l.b16 %v3014
      %v3091 = vunpack.c.l.b16 %v3015
      %v3092 = vunpack.c.l.b16 %v3016
      %v3093 = vunpack.c.l.b16 %v3017
      %v3094 = vunpack.c.l.b16 %v3018
      %v3095 = vunpack.c.l.b16 %v3019
      %v3096 = vunpack.c.l.b16 %v3020
      %v3097 = vunpack.c.l.b16 %v3021
      %v3098 = vunpack.c.l.b16 %v3022
      %v3099 = vunpack.c.l.b16 %v3023
      %v3100 = vunpack.c.l.b16 %v3024
      %v3101 = vpack.c.b16 %v3065, %v3064
      %v3102 = vpack.c.b16 %v3067, %v3066
      %v3103 = vpack.c.b16 %v3069, %v3068
      %v3104 = vpack.c.b16 %v3071, %v3070
      %v3105 = vpack.c.b16 %v3073, %v3072
      %v3106 = vpack.c.b16 %v3075, %v3074
      %v3107 = vpack.c.b16 %v3077, %v3076
      %v3108 = vpack.c.b16 %v3079, %v3078
      %v3109 = vpack.c.b16 %v3081, %v3080
      %v3110 = vpack.c.b16 %v3083, %v3082
      %v3111 = vpack.c.b16 %v3085, %v3084
      %v3112 = vpack.c.b16 %v3087, %v3086
      %v3113 = vpack.c.b16 %v3089, %v3088
      %v3114 = vpack.c.b16 %v3091, %v3090
      %v3115 = vpack.c.b16 %v3093, %v3092
      %v3116 = vpack.c.b16 %v3095, %v3094
      %v3117 = vpack.c.b16 %v3097, %v3096
      %v3118 = vpack.c.b16 %v3099, %v3098
      %v3119 = vpack.c.b16 %v3100, %v3100
      %v3120 = vrot.slane %v3101, 2
      %v3121 = vrot.slane %v3102, 2
      %v3122 = vsel %vm2686, %v3120, %v3121
      %v3123 = vrot.slane %v3103, 2
      %v3124 = vsel %vm2686, %v3121, %v3123
      %v3125 = vrot.slane %v3104, 2
      %v3126 = vsel %vm2686, %v3123, %v3125
      %v3127 = vrot.slane %v3105, 2
      %v3128 = vsel %vm2686, %v3125, %v3127
      %v3129 = vrot.slane %v3106, 2
      %v3130 = vsel %vm2686, %v3127, %v3129
      %v3131 = vrot.slane %v3107, 2
      %v3132 = vsel %vm2686, %v3129, %v3131
      %v3133 = vrot.slane %v3108, 2
      %v3134 = vsel %vm2686, %v3131, %v3133
      %v3135 = vrot.slane %v3109, 2
      %v3136 = vsel %vm2686, %v3133, %v3135
      %v3137 = vrot.slane %v3110, 2
      %v3138 = vsel %vm2686, %v3135, %v3137
      %v3139 = vrot.slane %v3111, 2
      %v3140 = vsel %vm2686, %v3137, %v3139
      %v3141 = vrot.slane %v3112, 2
      %v3142 = vsel %vm2686, %v3139, %v3141
      %v3143 = vrot.slane %v3113, 2
      %v3144 = vsel %vm2686, %v3141, %v3143
      %v3145 = vrot.slane %v3114, 2
      %v3146 = vsel %vm2686, %v3143, %v3145
      %v3147 = vrot.slane %v3115, 2
      %v3148 = vsel %vm2686, %v3145, %v3147
      %v3149 = vrot.slane %v3116, 2
      %v3150 = vsel %vm2686, %v3147, %v3149
      %v3151 = vrot.slane %v3117, 2
      %v3152 = vsel %vm2686, %v3149, %v3151
      %v3153 = vrot.slane %v3118, 2
      %v3154 = vsel %vm2686, %v3151, %v3153
      %v3155 = vrot.slane %v3119, 2
      %v3156 = vsel %vm2686, %v3153, %v3155
      %v3158 = vsel %vm381, %v3122, 0
      %v3161 = vsel %vm381, %v3124, 0
      %v3164 = vsel %vm381, %v3126, 0
      %v3167 = vsel %vm381, %v3128, 0
      %v3170 = vsel %vm381, %v3130, 0
      %v3173 = vsel %vm381, %v3132, 0
      %v3176 = vsel %vm381, %v3134, 0
      %v3179 = vsel %vm381, %v3136, 0
      %v3182 = vsel %vm381, %v3138, 0
      %v3185 = vsel %vm381, %v3140, 0
      %v3188 = vsel %vm381, %v3142, 0
      %v3191 = vsel %vm381, %v3144, 0
      %v3194 = vsel %vm381, %v3146, 0
      %v3197 = vsel %vm381, %v3148, 0
      %v3200 = vsel %vm381, %v3150, 0
      %v3203 = vsel %vm381, %v3152, 0
      %v3206 = vsel %vm381, %v3154, 0
      %v3209 = vsel %vm381, %v3156, 0
      %v3212 = vsel %vm436, %v3026, 0
      %3214 = vmatpush.bf16.msra.mxu0 0
      %3215 = vmatpush.bf16.msra.mxu0 0
      %3216 = vmatpush.bf16.msra.mxu0 0
      %3217 = vmatpush.bf16.msra.mxu0 0
      %3218 = vmatpush.bf16.msra.mxu0 0
      %3219 = vmatpush.bf16.msra.mxu0 0
      %3220 = vmatpush.bf16.msra.mxu0 0
      %3221 = vmatpush.bf16.msra.mxu0 %v3212
      %3222 = vmatmul.bf16.gmra.mxu0 %v3158
      %v3223 = vpop.f32.mrf.mxu0
      %v3224 = vadd.f32 0.0, %v3223
      %v3225 = vpop.f32.mrf.mxu0
      %v3226 = vadd.f32 0.0, %v3225
      %3227 = vmatmul.bf16.gmra.mxu0 %v3161
      %v3228 = vpop.f32.mrf.mxu0
      %v3229 = vadd.f32 0.0, %v3228
      %v3230 = vpop.f32.mrf.mxu0
      %v3231 = vadd.f32 0.0, %v3230
      %3232 = vmatmul.bf16.gmra.mxu0 %v3164
      %v3233 = vpop.f32.mrf.mxu0
      %v3234 = vadd.f32 0.0, %v3233
      %v3235 = vpop.f32.mrf.mxu0
      %v3236 = vadd.f32 0.0, %v3235
      %3237 = vmatmul.bf16.gmra.mxu0 %v3167
      %v3238 = vpop.f32.mrf.mxu0
      %v3239 = vadd.f32 0.0, %v3238
      %v3240 = vpop.f32.mrf.mxu0
      %v3241 = vadd.f32 0.0, %v3240
      %3242 = vmatmul.bf16.gmra.mxu0 %v3170
      %v3243 = vpop.f32.mrf.mxu0
      %v3244 = vadd.f32 0.0, %v3243
      %v3245 = vpop.f32.mrf.mxu0
      %v3246 = vadd.f32 0.0, %v3245
      %3247 = vmatmul.bf16.gmra.mxu0 %v3173
      %v3248 = vpop.f32.mrf.mxu0
      %v3249 = vadd.f32 0.0, %v3248
      %v3250 = vpop.f32.mrf.mxu0
      %v3251 = vadd.f32 0.0, %v3250
      %3252 = vmatmul.bf16.gmra.mxu0 %v3176
      %v3253 = vpop.f32.mrf.mxu0
      %v3254 = vadd.f32 0.0, %v3253
      %v3255 = vpop.f32.mrf.mxu0
      %v3256 = vadd.f32 0.0, %v3255
      %3257 = vmatmul.bf16.gmra.mxu0 %v3179
      %v3258 = vpop.f32.mrf.mxu0
      %v3259 = vadd.f32 0.0, %v3258
      %v3260 = vpop.f32.mrf.mxu0
      %v3261 = vadd.f32 0.0, %v3260
      %3262 = vmatmul.bf16.gmra.mxu0 %v3182
      %v3263 = vpop.f32.mrf.mxu0
      %v3264 = vadd.f32 0.0, %v3263
      %v3265 = vpop.f32.mrf.mxu0
      %v3266 = vadd.f32 0.0, %v3265
      %3267 = vmatmul.bf16.gmra.mxu0 %v3185
      %v3268 = vpop.f32.mrf.mxu0
      %v3269 = vadd.f32 0.0, %v3268
      %v3270 = vpop.f32.mrf.mxu0
      %v3271 = vadd.f32 0.0, %v3270
      %3272 = vmatmul.bf16.gmra.mxu0 %v3188
      %v3273 = vpop.f32.mrf.mxu0
      %v3274 = vadd.f32 0.0, %v3273
      %v3275 = vpop.f32.mrf.mxu0
      %v3276 = vadd.f32 0.0, %v3275
      %3277 = vmatmul.bf16.gmra.mxu0 %v3191
      %v3278 = vpop.f32.mrf.mxu0
      %v3279 = vadd.f32 0.0, %v3278
      %v3280 = vpop.f32.mrf.mxu0
      %v3281 = vadd.f32 0.0, %v3280
      %3282 = vmatmul.bf16.gmra.mxu0 %v3194
      %v3283 = vpop.f32.mrf.mxu0
      %v3284 = vadd.f32 0.0, %v3283
      %v3285 = vpop.f32.mrf.mxu0
      %v3286 = vadd.f32 0.0, %v3285
      %3287 = vmatmul.bf16.gmra.mxu0 %v3197
      %v3288 = vpop.f32.mrf.mxu0
      %v3289 = vadd.f32 0.0, %v3288
      %v3290 = vpop.f32.mrf.mxu0
      %v3291 = vadd.f32 0.0, %v3290
      %3292 = vmatmul.bf16.gmra.mxu0 %v3200
      %v3293 = vpop.f32.mrf.mxu0
      %v3294 = vadd.f32 0.0, %v3293
      %v3295 = vpop.f32.mrf.mxu0
      %v3296 = vadd.f32 0.0, %v3295
      %3297 = vmatmul.bf16.gmra.mxu0 %v3203
      %v3298 = vpop.f32.mrf.mxu0
      %v3299 = vadd.f32 0.0, %v3298
      %v3300 = vpop.f32.mrf.mxu0
      %v3301 = vadd.f32 0.0, %v3300
      %3302 = vmatmul.bf16.gmra.mxu0 %v3206
      %v3303 = vpop.f32.mrf.mxu0
      %v3304 = vadd.f32 0.0, %v3303
      %v3305 = vpop.f32.mrf.mxu0
      %v3306 = vadd.f32 0.0, %v3305
      %3307 = vmatmul.bf16.gmra.mxu0 %v3209
      %v3308 = vpop.f32.mrf.mxu0
      %v3309 = vadd.f32 0.0, %v3308
      %v3310 = vpop.f32.mrf.mxu0
      %v3311 = vadd.f32 0.0, %v3310
      %3312 = vdwg.mxu0
      %v3313 = vld [vmem:[#allocation2] sm:$0xff]
      %v3314 = vld [vmem:[#allocation2 + $0x8] sm:$0xff]
      %v3315 = vld [vmem:[#allocation2 + $0x10] sm:$0xff]
      %v3316 = vld [vmem:[#allocation2 + $0x18] sm:$0xff]
      %v3317 = vld [vmem:[#allocation2 + $0x20] sm:$0xff]
      %v3318 = vld [vmem:[#allocation2 + $0x28] sm:$0xff]
      %v3319 = vld [vmem:[#allocation2 + $0x30] sm:$0xff]
      %v3320 = vld [vmem:[#allocation2 + $0x38] sm:$0xff]
      %v3321 = vld [vmem:[#allocation2 + $0x40] sm:$0xff]
      %v3322 = vld [vmem:[#allocation2 + $0x48] sm:$0xff]
      %v3323 = vld [vmem:[#allocation2 + $0x50] sm:$0xff]
      %v3324 = vld [vmem:[#allocation2 + $0x58] sm:$0xff]
      %v3325 = vld [vmem:[#allocation2 + $0x60] sm:$0xff]
      %v3326 = vld [vmem:[#allocation2 + $0x68] sm:$0xff]
      %v3327 = vld [vmem:[#allocation2 + $0x70] sm:$0xff]
      %v3328 = vld [vmem:[#allocation2 + $0x78] sm:$0xff]
      %v3329 = vld [vmem:[#allocation2 + $0x80] sm:$0xff]
      %v3330 = vld [vmem:[#allocation2 + $0x88] sm:$0xff]
      %v3331 = vld [vmem:[#allocation2 + $0x90] sm:$0xff]
      %v3332 = vld [vmem:[#allocation2 + $0x98] sm:$0xff]
      %v3333 = vld [vmem:[#allocation2 + $0xa0] sm:$0xff]
      %v3334 = vld [vmem:[#allocation2 + $0xa8] sm:$0xff]
      %v3335 = vld [vmem:[#allocation2 + $0xb0] sm:$0xff]
      %v3336 = vld [vmem:[#allocation2 + $0xb8] sm:$0xff]
      %v3337 = vld [vmem:[#allocation2 + $0xc0] sm:$0xff]
      %v3338 = vld [vmem:[#allocation2 + $0xc8] sm:$0xff]
      %v3339 = vld [vmem:[#allocation2 + $0xd0] sm:$0xff]
      %v3340 = vld [vmem:[#allocation2 + $0xd8] sm:$0xff]
      %v3341 = vld [vmem:[#allocation2 + $0xe0] sm:$0xff]
      %v3342 = vld [vmem:[#allocation2 + $0xe8] sm:$0xff]
      %v3343 = vld [vmem:[#allocation2 + $0xf0] sm:$0xff]
      %v3344 = vld [vmem:[#allocation2 + $0xf8] sm:$0xff]
      %v3345 = vld [vmem:[#allocation2 + $0x100] sm:$0xff]
      %v3346 = vld [vmem:[#allocation2 + $0x108] sm:$0xff]
      %v3347 = vld [vmem:[#allocation2 + $0x110] sm:$0xff]
      %v3348 = vld [vmem:[#allocation2 + $0x118] sm:$0xff]
      %v3349 = vadd.f32 %v3313, %v3224
      %v3350 = vadd.f32 %v3314, %v3226
      %v3351 = vadd.f32 %v3315, %v3229
      %v3352 = vadd.f32 %v3316, %v3231
      %v3353 = vadd.f32 %v3317, %v3234
      %v3354 = vadd.f32 %v3318, %v3236
      %v3355 = vadd.f32 %v3319, %v3239
      %v3356 = vadd.f32 %v3320, %v3241
      %v3357 = vadd.f32 %v3321, %v3244
      %v3358 = vadd.f32 %v3322, %v3246
      %v3359 = vadd.f32 %v3323, %v3249
      %v3360 = vadd.f32 %v3324, %v3251
      %v3361 = vadd.f32 %v3325, %v3254
      %v3362 = vadd.f32 %v3326, %v3256
      %v3363 = vadd.f32 %v3327, %v3259
      %v3364 = vadd.f32 %v3328, %v3261
      %v3365 = vadd.f32 %v3329, %v3264
      %v3366 = vadd.f32 %v3330, %v3266
      %v3367 = vadd.f32 %v3331, %v3269
      %v3368 = vadd.f32 %v3332, %v3271
      %v3369 = vadd.f32 %v3333, %v3274
      %v3370 = vadd.f32 %v3334, %v3276
      %v3371 = vadd.f32 %v3335, %v3279
      %v3372 = vadd.f32 %v3336, %v3281
      %v3373 = vadd.f32 %v3337, %v3284
      %v3374 = vadd.f32 %v3338, %v3286
      %v3375 = vadd.f32 %v3339, %v3289
      %v3376 = vadd.f32 %v3340, %v3291
      %v3377 = vadd.f32 %v3341, %v3294
      %v3378 = vadd.f32 %v3342, %v3296
      %v3379 = vadd.f32 %v3343, %v3299
      %v3380 = vadd.f32 %v3344, %v3301
      %v3381 = vadd.f32 %v3345, %v3304
      %v3382 = vadd.f32 %v3346, %v3306
      %v3383 = vadd.f32 %v3347, %v3309
      %v3384 = vadd.f32 %v3348, %v3311
      %3385 = vst [vmem:[#allocation2] sm:$0xff] %v3349
      %3386 = vst [vmem:[#allocation2 + $0x8] sm:$0xff] %v3350
      %3387 = vst [vmem:[#allocation2 + $0x10] sm:$0xff] %v3351
      %3388 = vst [vmem:[#allocation2 + $0x18] sm:$0xff] %v3352
      %3389 = vst [vmem:[#allocation2 + $0x20] sm:$0xff] %v3353
      %3390 = vst [vmem:[#allocation2 + $0x28] sm:$0xff] %v3354
      %3391 = vst [vmem:[#allocation2 + $0x30] sm:$0xff] %v3355
      %3392 = vst [vmem:[#allocation2 + $0x38] sm:$0xff] %v3356
      %3393 = vst [vmem:[#allocation2 + $0x40] sm:$0xff] %v3357
      %3394 = vst [vmem:[#allocation2 + $0x48] sm:$0xff] %v3358
      %3395 = vst [vmem:[#allocation2 + $0x50] sm:$0xff] %v3359
      %3396 = vst [vmem:[#allocation2 + $0x58] sm:$0xff] %v3360
      %3397 = vst [vmem:[#allocation2 + $0x60] sm:$0xff] %v3361
      %3398 = vst [vmem:[#allocation2 + $0x68] sm:$0xff] %v3362
      %3399 = vst [vmem:[#allocation2 + $0x70] sm:$0xff] %v3363
      %3400 = vst [vmem:[#allocation2 + $0x78] sm:$0xff] %v3364
      %3401 = vst [vmem:[#allocation2 + $0x80] sm:$0xff] %v3365
      %3402 = vst [vmem:[#allocation2 + $0x88] sm:$0xff] %v3366
      %3403 = vst [vmem:[#allocation2 + $0x90] sm:$0xff] %v3367
      %3404 = vst [vmem:[#allocation2 + $0x98] sm:$0xff] %v3368
      %3405 = vst [vmem:[#allocation2 + $0xa0] sm:$0xff] %v3369
      %3406 = vst [vmem:[#allocation2 + $0xa8] sm:$0xff] %v3370
      %3407 = vst [vmem:[#allocation2 + $0xb0] sm:$0xff] %v3371
      %3408 = vst [vmem:[#allocation2 + $0xb8] sm:$0xff] %v3372
      %3409 = vst [vmem:[#allocation2 + $0xc0] sm:$0xff] %v3373
      %3410 = vst [vmem:[#allocation2 + $0xc8] sm:$0xff] %v3374
      %3411 = vst [vmem:[#allocation2 + $0xd0] sm:$0xff] %v3375
      %3412 = vst [vmem:[#allocation2 + $0xd8] sm:$0xff] %v3376
      %3413 = vst [vmem:[#allocation2 + $0xe0] sm:$0xff] %v3377
      %3414 = vst [vmem:[#allocation2 + $0xe8] sm:$0xff] %v3378
      %3415 = vst [vmem:[#allocation2 + $0xf0] sm:$0xff] %v3379
      %3416 = vst [vmem:[#allocation2 + $0xf8] sm:$0xff] %v3380
      %3417 = vst [vmem:[#allocation2 + $0x100] sm:$0xff] %v3381
      %3418 = vst [vmem:[#allocation2 + $0x108] sm:$0xff] %v3382
      %3419 = vst [vmem:[#allocation2 + $0x110] sm:$0xff] %v3383
      %3420 = vst [vmem:[#allocation2 + $0x118] sm:$0xff] %v3384
      %v3421 = vld [vmem:[%s233 + $0x10] sm:$0xc]
      %v3422 = vld [vmem:[%s233 + $0x14] sm:$0xf]
      %v3423 = vld [vmem:[%s233 + $0x18] sm:$0xf]
      %v3424 = vld [vmem:[%s233 + $0x1c] sm:$0xf]
      %v3425 = vld [vmem:[%s233 + $0x20] sm:$0xf]
      %v3426 = vld [vmem:[%s233 + $0x24] sm:$0xf]
      %v3427 = vld [vmem:[%s233 + $0x28] sm:$0xf]
      %v3428 = vld [vmem:[%s233 + $0x2c] sm:$0xf]
      %v3429 = vld [vmem:[%s233 + $0x30] sm:$0xf]
      %v3430 = vld [vmem:[%s233 + $0x34] sm:$0xf]
      %v3431 = vld [vmem:[%s233 + $0x38] sm:$0xf]
      %v3432 = vld [vmem:[%s233 + $0x3c] sm:$0xf]
      %v3433 = vld [vmem:[%s233 + $0x40] sm:$0xf]
      %v3434 = vld [vmem:[%s233 + $0x44] sm:$0xf]
      %v3435 = vld [vmem:[%s233 + $0x48] sm:$0xf]
      %v3436 = vld [vmem:[%s233 + $0x4c] sm:$0xf]
      %v3437 = vld [vmem:[%s233 + $0x50] sm:$0xf]
      %v3438 = vld [vmem:[%s233 + $0x54] sm:$0xf]
      %v3439 = vld [vmem:[%s233 + $0x58] sm:$0xf]
      %v3440 = vld [vmem:[%s233 + $0x5c] sm:$0xf]
      %v3441 = vld [vmem:[%s233 + $0x60] sm:$0xf]
      %v3442 = vld [vmem:[%s233 + $0x64] sm:$0xf]
      %v3443 = vld [vmem:[%s233 + $0x68] sm:$0xf]
      %v3444 = vld [vmem:[%s233 + $0x6c] sm:$0xf]
      %v3445 = vld [vmem:[%s233 + $0x70] sm:$0xf]
      %v3446 = vld [vmem:[%s233 + $0x74] sm:$0xf]
      %v3447 = vld [vmem:[%s233 + $0x78] sm:$0xf]
      %v3448 = vld [vmem:[%s233 + $0x7c] sm:$0xf]
      %v3449 = vld [vmem:[%s233 + $0x80] sm:$0xf]
      %v3450 = vld [vmem:[%s233 + $0x84] sm:$0xf]
      %v3451 = vld [vmem:[%s233 + $0x88] sm:$0xf]
      %v3452 = vld [vmem:[%s233 + $0x8c] sm:$0xf]
      %v3453 = vld [vmem:[%s233 + $0x90] sm:$0xf]
      %v3454 = vld [vmem:[%s233 + $0x94] sm:$0xf]
      %v3455 = vld [vmem:[%s233 + $0x98] sm:$0xf]
      %v3456 = vld [vmem:[%s233 + $0x9c] sm:$0xf]
      %v3457 = vld [vmem:[%s233 + $0xa0] sm:$0x7]
      %s3458 = scalar_lea.vmem %s237, 14
      %v3459 = vld [vmem:[%s3458] sm:$0x3]
      %v3497 = vunpack.c.l.b16 %v3421
      %v3498 = vunpack.c.l.b16 %v3422
      %v3499 = vunpack.c.l.b16 %v3423
      %v3500 = vunpack.c.l.b16 %v3424
      %v3501 = vunpack.c.l.b16 %v3425
      %v3502 = vunpack.c.l.b16 %v3426
      %v3503 = vunpack.c.l.b16 %v3427
      %v3504 = vunpack.c.l.b16 %v3428
      %v3505 = vunpack.c.l.b16 %v3429
      %v3506 = vunpack.c.l.b16 %v3430
      %v3507 = vunpack.c.l.b16 %v3431
      %v3508 = vunpack.c.l.b16 %v3432
      %v3509 = vunpack.c.l.b16 %v3433
      %v3510 = vunpack.c.l.b16 %v3434
      %v3511 = vunpack.c.l.b16 %v3435
      %v3512 = vunpack.c.l.b16 %v3436
      %v3513 = vunpack.c.l.b16 %v3437
      %v3514 = vunpack.c.l.b16 %v3438
      %v3515 = vunpack.c.l.b16 %v3439
      %v3516 = vunpack.c.l.b16 %v3440
      %v3517 = vunpack.c.l.b16 %v3441
      %v3518 = vunpack.c.l.b16 %v3442
      %v3519 = vunpack.c.l.b16 %v3443
      %v3520 = vunpack.c.l.b16 %v3444
      %v3521 = vunpack.c.l.b16 %v3445
      %v3522 = vunpack.c.l.b16 %v3446
      %v3523 = vunpack.c.l.b16 %v3447
      %v3524 = vunpack.c.l.b16 %v3448
      %v3525 = vunpack.c.l.b16 %v3449
      %v3526 = vunpack.c.l.b16 %v3450
      %v3527 = vunpack.c.l.b16 %v3451
      %v3528 = vunpack.c.l.b16 %v3452
      %v3529 = vunpack.c.l.b16 %v3453
      %v3530 = vunpack.c.l.b16 %v3454
      %v3531 = vunpack.c.l.b16 %v3455
      %v3532 = vunpack.c.l.b16 %v3456
      %v3533 = vunpack.c.l.b16 %v3457
      %v3534 = vpack.c.b16 %v3498, %v3497
      %v3535 = vpack.c.b16 %v3500, %v3499
      %v3536 = vpack.c.b16 %v3502, %v3501
      %v3537 = vpack.c.b16 %v3504, %v3503
      %v3538 = vpack.c.b16 %v3506, %v3505
      %v3539 = vpack.c.b16 %v3508, %v3507
      %v3540 = vpack.c.b16 %v3510, %v3509
      %v3541 = vpack.c.b16 %v3512, %v3511
      %v3542 = vpack.c.b16 %v3514, %v3513
      %v3543 = vpack.c.b16 %v3516, %v3515
      %v3544 = vpack.c.b16 %v3518, %v3517
      %v3545 = vpack.c.b16 %v3520, %v3519
      %v3546 = vpack.c.b16 %v3522, %v3521
      %v3547 = vpack.c.b16 %v3524, %v3523
      %v3548 = vpack.c.b16 %v3526, %v3525
      %v3549 = vpack.c.b16 %v3528, %v3527
      %v3550 = vpack.c.b16 %v3530, %v3529
      %v3551 = vpack.c.b16 %v3532, %v3531
      %v3552 = vpack.c.b16 %v3533, %v3533
      %vm3553 = vsmask.f32 5376
      %v3555 = vshrl.u32 %v3534, 16
      %v3557 = vrot.slane %v3555, 2
      %v3558 = vshll.u32 %v3534, 16
      %v3560 = vrot.slane %v3558, 3
      %v3561 = vor.u32 %v3557, %v3560
      %v3563 = vshrl.u32 %v3535, 16
      %v3565 = vrot.slane %v3563, 2
      %v3566 = vshll.u32 %v3535, 16
      %v3568 = vrot.slane %v3566, 3
      %v3569 = vor.u32 %v3565, %v3568
      %v3570 = vsel %vm3553, %v3561, %v3569
      %v3572 = vshrl.u32 %v3536, 16
      %v3574 = vrot.slane %v3572, 2
      %v3575 = vshll.u32 %v3536, 16
      %v3577 = vrot.slane %v3575, 3
      %v3578 = vor.u32 %v3574, %v3577
      %v3579 = vsel %vm3553, %v3569, %v3578
      %v3581 = vshrl.u32 %v3537, 16
      %v3583 = vrot.slane %v3581, 2
      %v3584 = vshll.u32 %v3537, 16
      %v3586 = vrot.slane %v3584, 3
      %v3587 = vor.u32 %v3583, %v3586
      %v3588 = vsel %vm3553, %v3578, %v3587
      %v3590 = vshrl.u32 %v3538, 16
      %v3592 = vrot.slane %v3590, 2
      %v3593 = vshll.u32 %v3538, 16
      %v3595 = vrot.slane %v3593, 3
      %v3596 = vor.u32 %v3592, %v3595
      %v3597 = vsel %vm3553, %v3587, %v3596
      %v3599 = vshrl.u32 %v3539, 16
      %v3601 = vrot.slane %v3599, 2
      %v3602 = vshll.u32 %v3539, 16
      %v3604 = vrot.slane %v3602, 3
      %v3605 = vor.u32 %v3601, %v3604
      %v3606 = vsel %vm3553, %v3596, %v3605
      %v3608 = vshrl.u32 %v3540, 16
      %v3610 = vrot.slane %v3608, 2
      %v3611 = vshll.u32 %v3540, 16
      %v3613 = vrot.slane %v3611, 3
      %v3614 = vor.u32 %v3610, %v3613
      %v3615 = vsel %vm3553, %v3605, %v3614
      %v3617 = vshrl.u32 %v3541, 16
      %v3619 = vrot.slane %v3617, 2
      %v3620 = vshll.u32 %v3541, 16
      %v3622 = vrot.slane %v3620, 3
      %v3623 = vor.u32 %v3619, %v3622
      %v3624 = vsel %vm3553, %v3614, %v3623
      %v3626 = vshrl.u32 %v3542, 16
      %v3628 = vrot.slane %v3626, 2
      %v3629 = vshll.u32 %v3542, 16
      %v3631 = vrot.slane %v3629, 3
      %v3632 = vor.u32 %v3628, %v3631
      %v3633 = vsel %vm3553, %v3623, %v3632
      %v3635 = vshrl.u32 %v3543, 16
      %v3637 = vrot.slane %v3635, 2
      %v3638 = vshll.u32 %v3543, 16
      %v3640 = vrot.slane %v3638, 3
      %v3641 = vor.u32 %v3637, %v3640
      %v3642 = vsel %vm3553, %v3632, %v3641
      %v3644 = vshrl.u32 %v3544, 16
      %v3646 = vrot.slane %v3644, 2
      %v3647 = vshll.u32 %v3544, 16
      %v3649 = vrot.slane %v3647, 3
      %v3650 = vor.u32 %v3646, %v3649
      %v3651 = vsel %vm3553, %v3641, %v3650
      %v3653 = vshrl.u32 %v3545, 16
      %v3655 = vrot.slane %v3653, 2
      %v3656 = vshll.u32 %v3545, 16
      %v3658 = vrot.slane %v3656, 3
      %v3659 = vor.u32 %v3655, %v3658
      %v3660 = vsel %vm3553, %v3650, %v3659
      %v3662 = vshrl.u32 %v3546, 16
      %v3664 = vrot.slane %v3662, 2
      %v3665 = vshll.u32 %v3546, 16
      %v3667 = vrot.slane %v3665, 3
      %v3668 = vor.u32 %v3664, %v3667
      %v3669 = vsel %vm3553, %v3659, %v3668
      %v3671 = vshrl.u32 %v3547, 16
      %v3673 = vrot.slane %v3671, 2
      %v3674 = vshll.u32 %v3547, 16
      %v3676 = vrot.slane %v3674, 3
      %v3677 = vor.u32 %v3673, %v3676
      %v3678 = vsel %vm3553, %v3668, %v3677
      %v3680 = vshrl.u32 %v3548, 16
      %v3682 = vrot.slane %v3680, 2
      %v3683 = vshll.u32 %v3548, 16
      %v3685 = vrot.slane %v3683, 3
      %v3686 = vor.u32 %v3682, %v3685
      %v3687 = vsel %vm3553, %v3677, %v3686
      %v3689 = vshrl.u32 %v3549, 16
      %v3691 = vrot.slane %v3689, 2
      %v3692 = vshll.u32 %v3549, 16
      %v3694 = vrot.slane %v3692, 3
      %v3695 = vor.u32 %v3691, %v3694
      %v3696 = vsel %vm3553, %v3686, %v3695
      %v3698 = vshrl.u32 %v3550, 16
      %v3700 = vrot.slane %v3698, 2
      %v3701 = vshll.u32 %v3550, 16
      %v3703 = vrot.slane %v3701, 3
      %v3704 = vor.u32 %v3700, %v3703
      %v3705 = vsel %vm3553, %v3695, %v3704
      %v3707 = vshrl.u32 %v3551, 16
      %v3709 = vrot.slane %v3707, 2
      %v3710 = vshll.u32 %v3551, 16
      %v3712 = vrot.slane %v3710, 3
      %v3713 = vor.u32 %v3709, %v3712
      %v3714 = vsel %vm3553, %v3704, %v3713
      %v3716 = vshrl.u32 %v3552, 16
      %v3718 = vrot.slane %v3716, 2
      %v3719 = vshll.u32 %v3552, 16
      %v3721 = vrot.slane %v3719, 3
      %v3722 = vor.u32 %v3718, %v3721
      %v3723 = vsel %vm3553, %v3713, %v3722
      %v3725 = vsel %vm381, %v3570, 0
      %v3728 = vsel %vm381, %v3579, 0
      %v3731 = vsel %vm381, %v3588, 0
      %v3734 = vsel %vm381, %v3597, 0
      %v3737 = vsel %vm381, %v3606, 0
      %v3740 = vsel %vm381, %v3615, 0
      %v3743 = vsel %vm381, %v3624, 0
      %v3746 = vsel %vm381, %v3633, 0
      %v3749 = vsel %vm381, %v3642, 0
      %v3752 = vsel %vm381, %v3651, 0
      %v3755 = vsel %vm381, %v3660, 0
      %v3758 = vsel %vm381, %v3669, 0
      %v3761 = vsel %vm381, %v3678, 0
      %v3764 = vsel %vm381, %v3687, 0
      %v3767 = vsel %vm381, %v3696, 0
      %v3770 = vsel %vm381, %v3705, 0
      %v3773 = vsel %vm381, %v3714, 0
      %v3776 = vsel %vm381, %v3723, 0
      %v3779 = vsel %vm436, %v3459, 0
      %3781 = vmatpush.bf16.msra.mxu0 0
      %3782 = vmatpush.bf16.msra.mxu0 0
      %3783 = vmatpush.bf16.msra.mxu0 0
      %3784 = vmatpush.bf16.msra.mxu0 0
      %3785 = vmatpush.bf16.msra.mxu0 0
      %3786 = vmatpush.bf16.msra.mxu0 0
      %3787 = vmatpush.bf16.msra.mxu0 0
      %3788 = vmatpush.bf16.msra.mxu0 %v3779
      %3789 = vmatmul.bf16.gmra.mxu0 %v3725
      %v3790 = vpop.f32.mrf.mxu0
      %v3791 = vadd.f32 0.0, %v3790
      %v3792 = vpop.f32.mrf.mxu0
      %v3793 = vadd.f32 0.0, %v3792
      %3794 = vmatmul.bf16.gmra.mxu0 %v3728
      %v3795 = vpop.f32.mrf.mxu0
      %v3796 = vadd.f32 0.0, %v3795
      %v3797 = vpop.f32.mrf.mxu0
      %v3798 = vadd.f32 0.0, %v3797
      %3799 = vmatmul.bf16.gmra.mxu0 %v3731
      %v3800 = vpop.f32.mrf.mxu0
      %v3801 = vadd.f32 0.0, %v3800
      %v3802 = vpop.f32.mrf.mxu0
      %v3803 = vadd.f32 0.0, %v3802
      %3804 = vmatmul.bf16.gmra.mxu0 %v3734
      %v3805 = vpop.f32.mrf.mxu0
      %v3806 = vadd.f32 0.0, %v3805
      %v3807 = vpop.f32.mrf.mxu0
      %v3808 = vadd.f32 0.0, %v3807
      %3809 = vmatmul.bf16.gmra.mxu0 %v3737
      %v3810 = vpop.f32.mrf.mxu0
      %v3811 = vadd.f32 0.0, %v3810
      %v3812 = vpop.f32.mrf.mxu0
      %v3813 = vadd.f32 0.0, %v3812
      %3814 = vmatmul.bf16.gmra.mxu0 %v3740
      %v3815 = vpop.f32.mrf.mxu0
      %v3816 = vadd.f32 0.0, %v3815
      %v3817 = vpop.f32.mrf.mxu0
      %v3818 = vadd.f32 0.0, %v3817
      %3819 = vmatmul.bf16.gmra.mxu0 %v3743
      %v3820 = vpop.f32.mrf.mxu0
      %v3821 = vadd.f32 0.0, %v3820
      %v3822 = vpop.f32.mrf.mxu0
      %v3823 = vadd.f32 0.0, %v3822
      %3824 = vmatmul.bf16.gmra.mxu0 %v3746
      %v3825 = vpop.f32.mrf.mxu0
      %v3826 = vadd.f32 0.0, %v3825
      %v3827 = vpop.f32.mrf.mxu0
      %v3828 = vadd.f32 0.0, %v3827
      %3829 = vmatmul.bf16.gmra.mxu0 %v3749
      %v3830 = vpop.f32.mrf.mxu0
      %v3831 = vadd.f32 0.0, %v3830
      %v3832 = vpop.f32.mrf.mxu0
      %v3833 = vadd.f32 0.0, %v3832
      %3834 = vmatmul.bf16.gmra.mxu0 %v3752
      %v3835 = vpop.f32.mrf.mxu0
      %v3836 = vadd.f32 0.0, %v3835
      %v3837 = vpop.f32.mrf.mxu0
      %v3838 = vadd.f32 0.0, %v3837
      %3839 = vmatmul.bf16.gmra.mxu0 %v3755
      %v3840 = vpop.f32.mrf.mxu0
      %v3841 = vadd.f32 0.0, %v3840
      %v3842 = vpop.f32.mrf.mxu0
      %v3843 = vadd.f32 0.0, %v3842
      %3844 = vmatmul.bf16.gmra.mxu0 %v3758
      %v3845 = vpop.f32.mrf.mxu0
      %v3846 = vadd.f32 0.0, %v3845
      %v3847 = vpop.f32.mrf.mxu0
      %v3848 = vadd.f32 0.0, %v3847
      %3849 = vmatmul.bf16.gmra.mxu0 %v3761
      %v3850 = vpop.f32.mrf.mxu0
      %v3851 = vadd.f32 0.0, %v3850
      %v3852 = vpop.f32.mrf.mxu0
      %v3853 = vadd.f32 0.0, %v3852
      %3854 = vmatmul.bf16.gmra.mxu0 %v3764
      %v3855 = vpop.f32.mrf.mxu0
      %v3856 = vadd.f32 0.0, %v3855
      %v3857 = vpop.f32.mrf.mxu0
      %v3858 = vadd.f32 0.0, %v3857
      %3859 = vmatmul.bf16.gmra.mxu0 %v3767
      %v3860 = vpop.f32.mrf.mxu0
      %v3861 = vadd.f32 0.0, %v3860
      %v3862 = vpop.f32.mrf.mxu0
      %v3863 = vadd.f32 0.0, %v3862
      %3864 = vmatmul.bf16.gmra.mxu0 %v3770
      %v3865 = vpop.f32.mrf.mxu0
      %v3866 = vadd.f32 0.0, %v3865
      %v3867 = vpop.f32.mrf.mxu0
      %v3868 = vadd.f32 0.0, %v3867
      %3869 = vmatmul.bf16.gmra.mxu0 %v3773
      %v3870 = vpop.f32.mrf.mxu0
      %v3871 = vadd.f32 0.0, %v3870
      %v3872 = vpop.f32.mrf.mxu0
      %v3873 = vadd.f32 0.0, %v3872
      %3874 = vmatmul.bf16.gmra.mxu0 %v3776
      %v3875 = vpop.f32.mrf.mxu0
      %v3876 = vadd.f32 0.0, %v3875
      %v3877 = vpop.f32.mrf.mxu0
      %v3878 = vadd.f32 0.0, %v3877
      %3879 = vdwg.mxu0
      %v3880 = vld [vmem:[#allocation2] sm:$0xff]
      %v3881 = vld [vmem:[#allocation2 + $0x8] sm:$0xff]
      %v3882 = vld [vmem:[#allocation2 + $0x10] sm:$0xff]
      %v3883 = vld [vmem:[#allocation2 + $0x18] sm:$0xff]
      %v3884 = vld [vmem:[#allocation2 + $0x20] sm:$0xff]
      %v3885 = vld [vmem:[#allocation2 + $0x28] sm:$0xff]
      %v3886 = vld [vmem:[#allocation2 + $0x30] sm:$0xff]
      %v3887 = vld [vmem:[#allocation2 + $0x38] sm:$0xff]
      %v3888 = vld [vmem:[#allocation2 + $0x40] sm:$0xff]
      %v3889 = vld [vmem:[#allocation2 + $0x48] sm:$0xff]
      %v3890 = vld [vmem:[#allocation2 + $0x50] sm:$0xff]
      %v3891 = vld [vmem:[#allocation2 + $0x58] sm:$0xff]
      %v3892 = vld [vmem:[#allocation2 + $0x60] sm:$0xff]
      %v3893 = vld [vmem:[#allocation2 + $0x68] sm:$0xff]
      %v3894 = vld [vmem:[#allocation2 + $0x70] sm:$0xff]
      %v3895 = vld [vmem:[#allocation2 + $0x78] sm:$0xff]
      %v3896 = vld [vmem:[#allocation2 + $0x80] sm:$0xff]
      %v3897 = vld [vmem:[#allocation2 + $0x88] sm:$0xff]
      %v3898 = vld [vmem:[#allocation2 + $0x90] sm:$0xff]
      %v3899 = vld [vmem:[#allocation2 + $0x98] sm:$0xff]
      %v3900 = vld [vmem:[#allocation2 + $0xa0] sm:$0xff]
      %v3901 = vld [vmem:[#allocation2 + $0xa8] sm:$0xff]
      %v3902 = vld [vmem:[#allocation2 + $0xb0] sm:$0xff]
      %v3903 = vld [vmem:[#allocation2 + $0xb8] sm:$0xff]
      %v3904 = vld [vmem:[#allocation2 + $0xc0] sm:$0xff]
      %v3905 = vld [vmem:[#allocation2 + $0xc8] sm:$0xff]
      %v3906 = vld [vmem:[#allocation2 + $0xd0] sm:$0xff]
      %v3907 = vld [vmem:[#allocation2 + $0xd8] sm:$0xff]
      %v3908 = vld [vmem:[#allocation2 + $0xe0] sm:$0xff]
      %v3909 = vld [vmem:[#allocation2 + $0xe8] sm:$0xff]
      %v3910 = vld [vmem:[#allocation2 + $0xf0] sm:$0xff]
      %v3911 = vld [vmem:[#allocation2 + $0xf8] sm:$0xff]
      %v3912 = vld [vmem:[#allocation2 + $0x100] sm:$0xff]
      %v3913 = vld [vmem:[#allocation2 + $0x108] sm:$0xff]
      %v3914 = vld [vmem:[#allocation2 + $0x110] sm:$0xff]
      %v3915 = vld [vmem:[#allocation2 + $0x118] sm:$0xff]
      %v3916 = vadd.f32 %v3880, %v3791
      %v3917 = vadd.f32 %v3881, %v3793
      %v3918 = vadd.f32 %v3882, %v3796
      %v3919 = vadd.f32 %v3883, %v3798
      %v3920 = vadd.f32 %v3884, %v3801
      %v3921 = vadd.f32 %v3885, %v3803
      %v3922 = vadd.f32 %v3886, %v3806
      %v3923 = vadd.f32 %v3887, %v3808
      %v3924 = vadd.f32 %v3888, %v3811
      %v3925 = vadd.f32 %v3889, %v3813
      %v3926 = vadd.f32 %v3890, %v3816
      %v3927 = vadd.f32 %v3891, %v3818
      %v3928 = vadd.f32 %v3892, %v3821
      %v3929 = vadd.f32 %v3893, %v3823
      %v3930 = vadd.f32 %v3894, %v3826
      %v3931 = vadd.f32 %v3895, %v3828
      %v3932 = vadd.f32 %v3896, %v3831
      %v3933 = vadd.f32 %v3897, %v3833
      %v3934 = vadd.f32 %v3898, %v3836
      %v3935 = vadd.f32 %v3899, %v3838
      %v3936 = vadd.f32 %v3900, %v3841
      %v3937 = vadd.f32 %v3901, %v3843
      %v3938 = vadd.f32 %v3902, %v3846
      %v3939 = vadd.f32 %v3903, %v3848
      %v3940 = vadd.f32 %v3904, %v3851
      %v3941 = vadd.f32 %v3905, %v3853
      %v3942 = vadd.f32 %v3906, %v3856
      %v3943 = vadd.f32 %v3907, %v3858
      %v3944 = vadd.f32 %v3908, %v3861
      %v3945 = vadd.f32 %v3909, %v3863
      %v3946 = vadd.f32 %v3910, %v3866
      %v3947 = vadd.f32 %v3911, %v3868
      %v3948 = vadd.f32 %v3912, %v3871
      %v3949 = vadd.f32 %v3913, %v3873
      %v3950 = vadd.f32 %v3914, %v3876
      %v3951 = vadd.f32 %v3915, %v3878
      %3952 = vst [vmem:[#allocation2] sm:$0xff] %v3916
      %3953 = vst [vmem:[#allocation2 + $0x8] sm:$0xff] %v3917
      %3954 = vst [vmem:[#allocation2 + $0x10] sm:$0xff] %v3918
      %3955 = vst [vmem:[#allocation2 + $0x18] sm:$0xff] %v3919
      %3956 = vst [vmem:[#allocation2 + $0x20] sm:$0xff] %v3920
      %3957 = vst [vmem:[#allocation2 + $0x28] sm:$0xff] %v3921
      %3958 = vst [vmem:[#allocation2 + $0x30] sm:$0xff] %v3922
      %3959 = vst [vmem:[#allocation2 + $0x38] sm:$0xff] %v3923
      %3960 = vst [vmem:[#allocation2 + $0x40] sm:$0xff] %v3924
      %3961 = vst [vmem:[#allocation2 + $0x48] sm:$0xff] %v3925
      %3962 = vst [vmem:[#allocation2 + $0x50] sm:$0xff] %v3926
      %3963 = vst [vmem:[#allocation2 + $0x58] sm:$0xff] %v3927
      %3964 = vst [vmem:[#allocation2 + $0x60] sm:$0xff] %v3928
      %3965 = vst [vmem:[#allocation2 + $0x68] sm:$0xff] %v3929
      %3966 = vst [vmem:[#allocation2 + $0x70] sm:$0xff] %v3930
      %3967 = vst [vmem:[#allocation2 + $0x78] sm:$0xff] %v3931
      %3968 = vst [vmem:[#allocation2 + $0x80] sm:$0xff] %v3932
      %3969 = vst [vmem:[#allocation2 + $0x88] sm:$0xff] %v3933
      %3970 = vst [vmem:[#allocation2 + $0x90] sm:$0xff] %v3934
      %3971 = vst [vmem:[#allocation2 + $0x98] sm:$0xff] %v3935
      %3972 = vst [vmem:[#allocation2 + $0xa0] sm:$0xff] %v3936
      %3973 = vst [vmem:[#allocation2 + $0xa8] sm:$0xff] %v3937
      %3974 = vst [vmem:[#allocation2 + $0xb0] sm:$0xff] %v3938
      %3975 = vst [vmem:[#allocation2 + $0xb8] sm:$0xff] %v3939
      %3976 = vst [vmem:[#allocation2 + $0xc0] sm:$0xff] %v3940
      %3977 = vst [vmem:[#allocation2 + $0xc8] sm:$0xff] %v3941
      %3978 = vst [vmem:[#allocation2 + $0xd0] sm:$0xff] %v3942
      %3979 = vst [vmem:[#allocation2 + $0xd8] sm:$0xff] %v3943
      %3980 = vst [vmem:[#allocation2 + $0xe0] sm:$0xff] %v3944
      %3981 = vst [vmem:[#allocation2 + $0xe8] sm:$0xff] %v3945
      %3982 = vst [vmem:[#allocation2 + $0xf0] sm:$0xff] %v3946
      %3983 = vst [vmem:[#allocation2 + $0xf8] sm:$0xff] %v3947
      %3984 = vst [vmem:[#allocation2 + $0x100] sm:$0xff] %v3948
      %3985 = vst [vmem:[#allocation2 + $0x108] sm:$0xff] %v3949
      %3986 = vst [vmem:[#allocation2 + $0x110] sm:$0xff] %v3950
      %3987 = vst [vmem:[#allocation2 + $0x118] sm:$0xff] %v3951
      %v3988 = vld [vmem:[%s233 + $0x10] sm:$0x8]
      %v3989 = vld [vmem:[%s233 + $0x14] sm:$0xf]
      %v3990 = vld [vmem:[%s233 + $0x18] sm:$0xf]
      %v3991 = vld [vmem:[%s233 + $0x1c] sm:$0xf]
      %v3992 = vld [vmem:[%s233 + $0x20] sm:$0xf]
      %v3993 = vld [vmem:[%s233 + $0x24] sm:$0xf]
      %v3994 = vld [vmem:[%s233 + $0x28] sm:$0xf]
      %v3995 = vld [vmem:[%s233 + $0x2c] sm:$0xf]
      %v3996 = vld [vmem:[%s233 + $0x30] sm:$0xf]
      %v3997 = vld [vmem:[%s233 + $0x34] sm:$0xf]
      %v3998 = vld [vmem:[%s233 + $0x38] sm:$0xf]
      %v3999 = vld [vmem:[%s233 + $0x3c] sm:$0xf]
      %v4000 = vld [vmem:[%s233 + $0x40] sm:$0xf]
      %v4001 = vld [vmem:[%s233 + $0x44] sm:$0xf]
      %v4002 = vld [vmem:[%s233 + $0x48] sm:$0xf]
      %v4003 = vld [vmem:[%s233 + $0x4c] sm:$0xf]
      %v4004 = vld [vmem:[%s233 + $0x50] sm:$0xf]
      %v4005 = vld [vmem:[%s233 + $0x54] sm:$0xf]
      %v4006 = vld [vmem:[%s233 + $0x58] sm:$0xf]
      %v4007 = vld [vmem:[%s233 + $0x5c] sm:$0xf]
      %v4008 = vld [vmem:[%s233 + $0x60] sm:$0xf]
      %v4009 = vld [vmem:[%s233 + $0x64] sm:$0xf]
      %v4010 = vld [vmem:[%s233 + $0x68] sm:$0xf]
      %v4011 = vld [vmem:[%s233 + $0x6c] sm:$0xf]
      %v4012 = vld [vmem:[%s233 + $0x70] sm:$0xf]
      %v4013 = vld [vmem:[%s233 + $0x74] sm:$0xf]
      %v4014 = vld [vmem:[%s233 + $0x78] sm:$0xf]
      %v4015 = vld [vmem:[%s233 + $0x7c] sm:$0xf]
      %v4016 = vld [vmem:[%s233 + $0x80] sm:$0xf]
      %v4017 = vld [vmem:[%s233 + $0x84] sm:$0xf]
      %v4018 = vld [vmem:[%s233 + $0x88] sm:$0xf]
      %v4019 = vld [vmem:[%s233 + $0x8c] sm:$0xf]
      %v4020 = vld [vmem:[%s233 + $0x90] sm:$0xf]
      %v4021 = vld [vmem:[%s233 + $0x94] sm:$0xf]
      %v4022 = vld [vmem:[%s233 + $0x98] sm:$0xf]
      %v4023 = vld [vmem:[%s233 + $0x9c] sm:$0xf]
      %v4024 = vld [vmem:[%s233 + $0xa0] sm:$0x7]
      %s4025 = scalar_lea.vmem %s237, 16
      %v4026 = vld [vmem:[%s4025] sm:$0x3]
      %v4064 = vunpack.c.l.b16 %v3988
      %v4065 = vunpack.c.l.b16 %v3989
      %v4066 = vunpack.c.l.b16 %v3990
      %v4067 = vunpack.c.l.b16 %v3991
      %v4068 = vunpack.c.l.b16 %v3992
      %v4069 = vunpack.c.l.b16 %v3993
      %v4070 = vunpack.c.l.b16 %v3994
      %v4071 = vunpack.c.l.b16 %v3995
      %v4072 = vunpack.c.l.b16 %v3996
      %v4073 = vunpack.c.l.b16 %v3997
      %v4074 = vunpack.c.l.b16 %v3998
      %v4075 = vunpack.c.l.b16 %v3999
      %v4076 = vunpack.c.l.b16 %v4000
      %v4077 = vunpack.c.l.b16 %v4001
      %v4078 = vunpack.c.l.b16 %v4002
      %v4079 = vunpack.c.l.b16 %v4003
      %v4080 = vunpack.c.l.b16 %v4004
      %v4081 = vunpack.c.l.b16 %v4005
      %v4082 = vunpack.c.l.b16 %v4006
      %v4083 = vunpack.c.l.b16 %v4007
      %v4084 = vunpack.c.l.b16 %v4008
      %v4085 = vunpack.c.l.b16 %v4009
      %v4086 = vunpack.c.l.b16 %v4010
      %v4087 = vunpack.c.l.b16 %v4011
      %v4088 = vunpack.c.l.b16 %v4012
      %v4089 = vunpack.c.l.b16 %v4013
      %v4090 = vunpack.c.l.b16 %v4014
      %v4091 = vunpack.c.l.b16 %v4015
      %v4092 = vunpack.c.l.b16 %v4016
      %v4093 = vunpack.c.l.b16 %v4017
      %v4094 = vunpack.c.l.b16 %v4018
      %v4095 = vunpack.c.l.b16 %v4019
      %v4096 = vunpack.c.l.b16 %v4020
      %v4097 = vunpack.c.l.b16 %v4021
      %v4098 = vunpack.c.l.b16 %v4022
      %v4099 = vunpack.c.l.b16 %v4023
      %v4100 = vunpack.c.l.b16 %v4024
      %v4101 = vpack.c.b16 %v4065, %v4064
      %v4102 = vpack.c.b16 %v4067, %v4066
      %v4103 = vpack.c.b16 %v4069, %v4068
      %v4104 = vpack.c.b16 %v4071, %v4070
      %v4105 = vpack.c.b16 %v4073, %v4072
      %v4106 = vpack.c.b16 %v4075, %v4074
      %v4107 = vpack.c.b16 %v4077, %v4076
      %v4108 = vpack.c.b16 %v4079, %v4078
      %v4109 = vpack.c.b16 %v4081, %v4080
      %v4110 = vpack.c.b16 %v4083, %v4082
      %v4111 = vpack.c.b16 %v4085, %v4084
      %v4112 = vpack.c.b16 %v4087, %v4086
      %v4113 = vpack.c.b16 %v4089, %v4088
      %v4114 = vpack.c.b16 %v4091, %v4090
      %v4115 = vpack.c.b16 %v4093, %v4092
      %v4116 = vpack.c.b16 %v4095, %v4094
      %v4117 = vpack.c.b16 %v4097, %v4096
      %v4118 = vpack.c.b16 %v4099, %v4098
      %v4119 = vpack.c.b16 %v4100, %v4100
      %vm4120 = vcmask 1044480
      %v4121 = vrot.slane %v4101, 3
      %v4122 = vrot.slane %v4102, 3
      %v4123 = vsel %vm4120, %v4121, %v4122
      %v4124 = vrot.slane %v4103, 3
      %v4125 = vsel %vm4120, %v4122, %v4124
      %v4126 = vrot.slane %v4104, 3
      %v4127 = vsel %vm4120, %v4124, %v4126
      %v4128 = vrot.slane %v4105, 3
      %v4129 = vsel %vm4120, %v4126, %v4128
      %v4130 = vrot.slane %v4106, 3
      %v4131 = vsel %vm4120, %v4128, %v4130
      %v4132 = vrot.slane %v4107, 3
      %v4133 = vsel %vm4120, %v4130, %v4132
      %v4134 = vrot.slane %v4108, 3
      %v4135 = vsel %vm4120, %v4132, %v4134
      %v4136 = vrot.slane %v4109, 3
      %v4137 = vsel %vm4120, %v4134, %v4136
      %v4138 = vrot.slane %v4110, 3
      %v4139 = vsel %vm4120, %v4136, %v4138
      %v4140 = vrot.slane %v4111, 3
      %v4141 = vsel %vm4120, %v4138, %v4140
      %v4142 = vrot.slane %v4112, 3
      %v4143 = vsel %vm4120, %v4140, %v4142
      %v4144 = vrot.slane %v4113, 3
      %v4145 = vsel %vm4120, %v4142, %v4144
      %v4146 = vrot.slane %v4114, 3
      %v4147 = vsel %vm4120, %v4144, %v4146
      %v4148 = vrot.slane %v4115, 3
      %v4149 = vsel %vm4120, %v4146, %v4148
      %v4150 = vrot.slane %v4116, 3
      %v4151 = vsel %vm4120, %v4148, %v4150
      %v4152 = vrot.slane %v4117, 3
      %v4153 = vsel %vm4120, %v4150, %v4152
      %v4154 = vrot.slane %v4118, 3
      %v4155 = vsel %vm4120, %v4152, %v4154
      %v4156 = vrot.slane %v4119, 3
      %v4157 = vsel %vm4120, %v4154, %v4156
      %v4159 = vsel %vm381, %v4123, 0
      %v4162 = vsel %vm381, %v4125, 0
      %v4165 = vsel %vm381, %v4127, 0
      %v4168 = vsel %vm381, %v4129, 0
      %v4171 = vsel %vm381, %v4131, 0
      %v4174 = vsel %vm381, %v4133, 0
      %v4177 = vsel %vm381, %v4135, 0
      %v4180 = vsel %vm381, %v4137, 0
      %v4183 = vsel %vm381, %v4139, 0
      %v4186 = vsel %vm381, %v4141, 0
      %v4189 = vsel %vm381, %v4143, 0
      %v4192 = vsel %vm381, %v4145, 0
      %v4195 = vsel %vm381, %v4147, 0
      %v4198 = vsel %vm381, %v4149, 0
      %v4201 = vsel %vm381, %v4151, 0
      %v4204 = vsel %vm381, %v4153, 0
      %v4207 = vsel %vm381, %v4155, 0
      %v4210 = vsel %vm381, %v4157, 0
      %v4213 = vsel %vm436, %v4026, 0
      %4215 = vmatpush.bf16.msra.mxu0 0
      %4216 = vmatpush.bf16.msra.mxu0 0
      %4217 = vmatpush.bf16.msra.mxu0 0
      %4218 = vmatpush.bf16.msra.mxu0 0
      %4219 = vmatpush.bf16.msra.mxu0 0
      %4220 = vmatpush.bf16.msra.mxu0 0
      %4221 = vmatpush.bf16.msra.mxu0 0
      %4222 = vmatpush.bf16.msra.mxu0 %v4213
      %4223 = vmatmul.bf16.gmra.mxu0 %v4159
      %v4224 = vpop.f32.mrf.mxu0
      %v4225 = vadd.f32 0.0, %v4224
      %v4226 = vpop.f32.mrf.mxu0
      %v4227 = vadd.f32 0.0, %v4226
      %4228 = vmatmul.bf16.gmra.mxu0 %v4162
      %v4229 = vpop.f32.mrf.mxu0
      %v4230 = vadd.f32 0.0, %v4229
      %v4231 = vpop.f32.mrf.mxu0
      %v4232 = vadd.f32 0.0, %v4231
      %4233 = vmatmul.bf16.gmra.mxu0 %v4165
      %v4234 = vpop.f32.mrf.mxu0
      %v4235 = vadd.f32 0.0, %v4234
      %v4236 = vpop.f32.mrf.mxu0
      %v4237 = vadd.f32 0.0, %v4236
      %4238 = vmatmul.bf16.gmra.mxu0 %v4168
      %v4239 = vpop.f32.mrf.mxu0
      %v4240 = vadd.f32 0.0, %v4239
      %v4241 = vpop.f32.mrf.mxu0
      %v4242 = vadd.f32 0.0, %v4241
      %4243 = vmatmul.bf16.gmra.mxu0 %v4171
      %v4244 = vpop.f32.mrf.mxu0
      %v4245 = vadd.f32 0.0, %v4244
      %v4246 = vpop.f32.mrf.mxu0
      %v4247 = vadd.f32 0.0, %v4246
      %4248 = vmatmul.bf16.gmra.mxu0 %v4174
      %v4249 = vpop.f32.mrf.mxu0
      %v4250 = vadd.f32 0.0, %v4249
      %v4251 = vpop.f32.mrf.mxu0
      %v4252 = vadd.f32 0.0, %v4251
      %4253 = vmatmul.bf16.gmra.mxu0 %v4177
      %v4254 = vpop.f32.mrf.mxu0
      %v4255 = vadd.f32 0.0, %v4254
      %v4256 = vpop.f32.mrf.mxu0
      %v4257 = vadd.f32 0.0, %v4256
      %4258 = vmatmul.bf16.gmra.mxu0 %v4180
      %v4259 = vpop.f32.mrf.mxu0
      %v4260 = vadd.f32 0.0, %v4259
      %v4261 = vpop.f32.mrf.mxu0
      %v4262 = vadd.f32 0.0, %v4261
      %4263 = vmatmul.bf16.gmra.mxu0 %v4183
      %v4264 = vpop.f32.mrf.mxu0
      %v4265 = vadd.f32 0.0, %v4264
      %v4266 = vpop.f32.mrf.mxu0
      %v4267 = vadd.f32 0.0, %v4266
      %4268 = vmatmul.bf16.gmra.mxu0 %v4186
      %v4269 = vpop.f32.mrf.mxu0
      %v4270 = vadd.f32 0.0, %v4269
      %v4271 = vpop.f32.mrf.mxu0
      %v4272 = vadd.f32 0.0, %v4271
      %4273 = vmatmul.bf16.gmra.mxu0 %v4189
      %v4274 = vpop.f32.mrf.mxu0
      %v4275 = vadd.f32 0.0, %v4274
      %v4276 = vpop.f32.mrf.mxu0
      %v4277 = vadd.f32 0.0, %v4276
      %4278 = vmatmul.bf16.gmra.mxu0 %v4192
      %v4279 = vpop.f32.mrf.mxu0
      %v4280 = vadd.f32 0.0, %v4279
      %v4281 = vpop.f32.mrf.mxu0
      %v4282 = vadd.f32 0.0, %v4281
      %4283 = vmatmul.bf16.gmra.mxu0 %v4195
      %v4284 = vpop.f32.mrf.mxu0
      %v4285 = vadd.f32 0.0, %v4284
      %v4286 = vpop.f32.mrf.mxu0
      %v4287 = vadd.f32 0.0, %v4286
      %4288 = vmatmul.bf16.gmra.mxu0 %v4198
      %v4289 = vpop.f32.mrf.mxu0
      %v4290 = vadd.f32 0.0, %v4289
      %v4291 = vpop.f32.mrf.mxu0
      %v4292 = vadd.f32 0.0, %v4291
      %4293 = vmatmul.bf16.gmra.mxu0 %v4201
      %v4294 = vpop.f32.mrf.mxu0
      %v4295 = vadd.f32 0.0, %v4294
      %v4296 = vpop.f32.mrf.mxu0
      %v4297 = vadd.f32 0.0, %v4296
      %4298 = vmatmul.bf16.gmra.mxu0 %v4204
      %v4299 = vpop.f32.mrf.mxu0
      %v4300 = vadd.f32 0.0, %v4299
      %v4301 = vpop.f32.mrf.mxu0
      %v4302 = vadd.f32 0.0, %v4301
      %4303 = vmatmul.bf16.gmra.mxu0 %v4207
      %v4304 = vpop.f32.mrf.mxu0
      %v4305 = vadd.f32 0.0, %v4304
      %v4306 = vpop.f32.mrf.mxu0
      %v4307 = vadd.f32 0.0, %v4306
      %4308 = vmatmul.bf16.gmra.mxu0 %v4210
      %v4309 = vpop.f32.mrf.mxu0
      %v4310 = vadd.f32 0.0, %v4309
      %v4311 = vpop.f32.mrf.mxu0
      %v4312 = vadd.f32 0.0, %v4311
      %4313 = vdwg.mxu0
      %v4314 = vld [vmem:[#allocation2] sm:$0xff]
      %v4315 = vld [vmem:[#allocation2 + $0x8] sm:$0xff]
      %v4316 = vld [vmem:[#allocation2 + $0x10] sm:$0xff]
      %v4317 = vld [vmem:[#allocation2 + $0x18] sm:$0xff]
      %v4318 = vld [vmem:[#allocation2 + $0x20] sm:$0xff]
      %v4319 = vld [vmem:[#allocation2 + $0x28] sm:$0xff]
      %v4320 = vld [vmem:[#allocation2 + $0x30] sm:$0xff]
      %v4321 = vld [vmem:[#allocation2 + $0x38] sm:$0xff]
      %v4322 = vld [vmem:[#allocation2 + $0x40] sm:$0xff]
      %v4323 = vld [vmem:[#allocation2 + $0x48] sm:$0xff]
      %v4324 = vld [vmem:[#allocation2 + $0x50] sm:$0xff]
      %v4325 = vld [vmem:[#allocation2 + $0x58] sm:$0xff]
      %v4326 = vld [vmem:[#allocation2 + $0x60] sm:$0xff]
      %v4327 = vld [vmem:[#allocation2 + $0x68] sm:$0xff]
      %v4328 = vld [vmem:[#allocation2 + $0x70] sm:$0xff]
      %v4329 = vld [vmem:[#allocation2 + $0x78] sm:$0xff]
      %v4330 = vld [vmem:[#allocation2 + $0x80] sm:$0xff]
      %v4331 = vld [vmem:[#allocation2 + $0x88] sm:$0xff]
      %v4332 = vld [vmem:[#allocation2 + $0x90] sm:$0xff]
      %v4333 = vld [vmem:[#allocation2 + $0x98] sm:$0xff]
      %v4334 = vld [vmem:[#allocation2 + $0xa0] sm:$0xff]
      %v4335 = vld [vmem:[#allocation2 + $0xa8] sm:$0xff]
      %v4336 = vld [vmem:[#allocation2 + $0xb0] sm:$0xff]
      %v4337 = vld [vmem:[#allocation2 + $0xb8] sm:$0xff]
      %v4338 = vld [vmem:[#allocation2 + $0xc0] sm:$0xff]
      %v4339 = vld [vmem:[#allocation2 + $0xc8] sm:$0xff]
      %v4340 = vld [vmem:[#allocation2 + $0xd0] sm:$0xff]
      %v4341 = vld [vmem:[#allocation2 + $0xd8] sm:$0xff]
      %v4342 = vld [vmem:[#allocation2 + $0xe0] sm:$0xff]
      %v4343 = vld [vmem:[#allocation2 + $0xe8] sm:$0xff]
      %v4344 = vld [vmem:[#allocation2 + $0xf0] sm:$0xff]
      %v4345 = vld [vmem:[#allocation2 + $0xf8] sm:$0xff]
      %v4346 = vld [vmem:[#allocation2 + $0x100] sm:$0xff]
      %v4347 = vld [vmem:[#allocation2 + $0x108] sm:$0xff]
      %v4348 = vld [vmem:[#allocation2 + $0x110] sm:$0xff]
      %v4349 = vld [vmem:[#allocation2 + $0x118] sm:$0xff]
      %v4350 = vadd.f32 %v4314, %v4225
      %v4351 = vadd.f32 %v4315, %v4227
      %v4352 = vadd.f32 %v4316, %v4230
      %v4353 = vadd.f32 %v4317, %v4232
      %v4354 = vadd.f32 %v4318, %v4235
      %v4355 = vadd.f32 %v4319, %v4237
      %v4356 = vadd.f32 %v4320, %v4240
      %v4357 = vadd.f32 %v4321, %v4242
      %v4358 = vadd.f32 %v4322, %v4245
      %v4359 = vadd.f32 %v4323, %v4247
      %v4360 = vadd.f32 %v4324, %v4250
      %v4361 = vadd.f32 %v4325, %v4252
      %v4362 = vadd.f32 %v4326, %v4255
      %v4363 = vadd.f32 %v4327, %v4257
      %v4364 = vadd.f32 %v4328, %v4260
      %v4365 = vadd.f32 %v4329, %v4262
      %v4366 = vadd.f32 %v4330, %v4265
      %v4367 = vadd.f32 %v4331, %v4267
      %v4368 = vadd.f32 %v4332, %v4270
      %v4369 = vadd.f32 %v4333, %v4272
      %v4370 = vadd.f32 %v4334, %v4275
      %v4371 = vadd.f32 %v4335, %v4277
      %v4372 = vadd.f32 %v4336, %v4280
      %v4373 = vadd.f32 %v4337, %v4282
      %v4374 = vadd.f32 %v4338, %v4285
      %v4375 = vadd.f32 %v4339, %v4287
      %v4376 = vadd.f32 %v4340, %v4290
      %v4377 = vadd.f32 %v4341, %v4292
      %v4378 = vadd.f32 %v4342, %v4295
      %v4379 = vadd.f32 %v4343, %v4297
      %v4380 = vadd.f32 %v4344, %v4300
      %v4381 = vadd.f32 %v4345, %v4302
      %v4382 = vadd.f32 %v4346, %v4305
      %v4383 = vadd.f32 %v4347, %v4307
      %v4384 = vadd.f32 %v4348, %v4310
      %v4385 = vadd.f32 %v4349, %v4312
      %4386 = vst [vmem:[#allocation2] sm:$0xff] %v4350
      %4387 = vst [vmem:[#allocation2 + $0x8] sm:$0xff] %v4351
      %4388 = vst [vmem:[#allocation2 + $0x10] sm:$0xff] %v4352
      %4389 = vst [vmem:[#allocation2 + $0x18] sm:$0xff] %v4353
      %4390 = vst [vmem:[#allocation2 + $0x20] sm:$0xff] %v4354
      %4391 = vst [vmem:[#allocation2 + $0x28] sm:$0xff] %v4355
      %4392 = vst [vmem:[#allocation2 + $0x30] sm:$0xff] %v4356
      %4393 = vst [vmem:[#allocation2 + $0x38] sm:$0xff] %v4357
      %4394 = vst [vmem:[#allocation2 + $0x40] sm:$0xff] %v4358
      %4395 = vst [vmem:[#allocation2 + $0x48] sm:$0xff] %v4359
      %4396 = vst [vmem:[#allocation2 + $0x50] sm:$0xff] %v4360
      %4397 = vst [vmem:[#allocation2 + $0x58] sm:$0xff] %v4361
      %4398 = vst [vmem:[#allocation2 + $0x60] sm:$0xff] %v4362
      %4399 = vst [vmem:[#allocation2 + $0x68] sm:$0xff] %v4363
      %4400 = vst [vmem:[#allocation2 + $0x70] sm:$0xff] %v4364
      %4401 = vst [vmem:[#allocation2 + $0x78] sm:$0xff] %v4365
      %4402 = vst [vmem:[#allocation2 + $0x80] sm:$0xff] %v4366
      %4403 = vst [vmem:[#allocation2 + $0x88] sm:$0xff] %v4367
      %4404 = vst [vmem:[#allocation2 + $0x90] sm:$0xff] %v4368
      %4405 = vst [vmem:[#allocation2 + $0x98] sm:$0xff] %v4369
      %4406 = vst [vmem:[#allocation2 + $0xa0] sm:$0xff] %v4370
      %4407 = vst [vmem:[#allocation2 + $0xa8] sm:$0xff] %v4371
      %4408 = vst [vmem:[#allocation2 + $0xb0] sm:$0xff] %v4372
      %4409 = vst [vmem:[#allocation2 + $0xb8] sm:$0xff] %v4373
      %4410 = vst [vmem:[#allocation2 + $0xc0] sm:$0xff] %v4374
      %4411 = vst [vmem:[#allocation2 + $0xc8] sm:$0xff] %v4375
      %4412 = vst [vmem:[#allocation2 + $0xd0] sm:$0xff] %v4376
      %4413 = vst [vmem:[#allocation2 + $0xd8] sm:$0xff] %v4377
      %4414 = vst [vmem:[#allocation2 + $0xe0] sm:$0xff] %v4378
      %4415 = vst [vmem:[#allocation2 + $0xe8] sm:$0xff] %v4379
      %4416 = vst [vmem:[#allocation2 + $0xf0] sm:$0xff] %v4380
      %4417 = vst [vmem:[#allocation2 + $0xf8] sm:$0xff] %v4381
      %4418 = vst [vmem:[#allocation2 + $0x100] sm:$0xff] %v4382
      %4419 = vst [vmem:[#allocation2 + $0x108] sm:$0xff] %v4383
      %4420 = vst [vmem:[#allocation2 + $0x110] sm:$0xff] %v4384
      %4421 = vst [vmem:[#allocation2 + $0x118] sm:$0xff] %v4385
      %v4422 = vld [vmem:[#allocation2] sm:$0xff]
      %v4423 = vld [vmem:[#allocation2 + $0x8] sm:$0xff]
      %v4424 = vld [vmem:[#allocation2 + $0x10] sm:$0xff]
      %v4425 = vld [vmem:[#allocation2 + $0x18] sm:$0xff]
      %v4426 = vld [vmem:[#allocation2 + $0x20] sm:$0xff]
      %v4427 = vld [vmem:[#allocation2 + $0x28] sm:$0xff]
      %v4428 = vld [vmem:[#allocation2 + $0x30] sm:$0xff]
      %v4429 = vld [vmem:[#allocation2 + $0x38] sm:$0xff]
      %v4430 = vld [vmem:[#allocation2 + $0x40] sm:$0xff]
      %v4431 = vld [vmem:[#allocation2 + $0x48] sm:$0xff]
      %v4432 = vld [vmem:[#allocation2 + $0x50] sm:$0xff]
      %v4433 = vld [vmem:[#allocation2 + $0x58] sm:$0xff]
      %v4434 = vld [vmem:[#allocation2 + $0x60] sm:$0xff]
      %v4435 = vld [vmem:[#allocation2 + $0x68] sm:$0xff]
      %v4436 = vld [vmem:[#allocation2 + $0x70] sm:$0xff]
      %v4437 = vld [vmem:[#allocation2 + $0x78] sm:$0xff]
      %v4438 = vld [vmem:[#allocation2 + $0x80] sm:$0xff]
      %v4439 = vld [vmem:[#allocation2 + $0x88] sm:$0xff]
      %v4440 = vld [vmem:[#allocation2 + $0x90] sm:$0xff]
      %v4441 = vld [vmem:[#allocation2 + $0x98] sm:$0xff]
      %v4442 = vld [vmem:[#allocation2 + $0xa0] sm:$0xff]
      %v4443 = vld [vmem:[#allocation2 + $0xa8] sm:$0xff]
      %v4444 = vld [vmem:[#allocation2 + $0xb0] sm:$0xff]
      %v4445 = vld [vmem:[#allocation2 + $0xb8] sm:$0xff]
      %v4446 = vld [vmem:[#allocation2 + $0xc0] sm:$0xff]
      %v4447 = vld [vmem:[#allocation2 + $0xc8] sm:$0xff]
      %v4448 = vld [vmem:[#allocation2 + $0xd0] sm:$0xff]
      %v4449 = vld [vmem:[#allocation2 + $0xd8] sm:$0xff]
      %v4450 = vld [vmem:[#allocation2 + $0xe0] sm:$0xff]
      %v4451 = vld [vmem:[#allocation2 + $0xe8] sm:$0xff]
      %v4452 = vld [vmem:[#allocation2 + $0xf0] sm:$0xff]
      %v4453 = vld [vmem:[#allocation2 + $0xf8] sm:$0xff]
      %v4454 = vld [vmem:[#allocation2 + $0x100] sm:$0xff]
      %v4455 = vld [vmem:[#allocation2 + $0x108] sm:$0xff]
      %v4456 = vld [vmem:[#allocation2 + $0x110] sm:$0xff]
      %v4457 = vld [vmem:[#allocation2 + $0x118] sm:$0xff]
      %v4458 = vld [vmem:[%s240] sm:$0x1]
      %v4460 = vperm.slane %v4458, 0
      %v4462 = vadd.f32 %v4422, %v4460
      %v4463 = vadd.f32 %v4423, %v4460
      %v4464 = vadd.f32 %v4424, %v4460
      %v4465 = vadd.f32 %v4425, %v4460
      %v4466 = vadd.f32 %v4426, %v4460
      %v4467 = vadd.f32 %v4427, %v4460
      %v4468 = vadd.f32 %v4428, %v4460
      %v4469 = vadd.f32 %v4429, %v4460
      %v4470 = vadd.f32 %v4430, %v4460
      %v4471 = vadd.f32 %v4431, %v4460
      %v4472 = vadd.f32 %v4432, %v4460
      %v4473 = vadd.f32 %v4433, %v4460
      %v4474 = vadd.f32 %v4434, %v4460
      %v4475 = vadd.f32 %v4435, %v4460
      %v4476 = vadd.f32 %v4436, %v4460
      %v4477 = vadd.f32 %v4437, %v4460
      %v4478 = vadd.f32 %v4438, %v4460
      %v4479 = vadd.f32 %v4439, %v4460
      %v4480 = vadd.f32 %v4440, %v4460
      %v4481 = vadd.f32 %v4441, %v4460
      %v4482 = vadd.f32 %v4442, %v4460
      %v4483 = vadd.f32 %v4443, %v4460
      %v4484 = vadd.f32 %v4444, %v4460
      %v4485 = vadd.f32 %v4445, %v4460
      %v4486 = vadd.f32 %v4446, %v4460
      %v4487 = vadd.f32 %v4447, %v4460
      %v4488 = vadd.f32 %v4448, %v4460
      %v4489 = vadd.f32 %v4449, %v4460
      %v4490 = vadd.f32 %v4450, %v4460
      %v4491 = vadd.f32 %v4451, %v4460
      %v4492 = vadd.f32 %v4452, %v4460
      %v4493 = vadd.f32 %v4453, %v4460
      %v4494 = vadd.f32 %v4454, %v4460
      %v4495 = vadd.f32 %v4455, %v4460
      %v4496 = vadd.f32 %v4456, %v4460
      %v4497 = vadd.f32 %v4457, %v4460
      %4498 = vst [vmem:[%s252] sm:$0xff] %v4462
      %4499 = vst [vmem:[%s252 + $0x8] sm:$0xff] %v4463
      %4500 = vst [vmem:[%s252 + $0x10] sm:$0xff] %v4464
      %4501 = vst [vmem:[%s252 + $0x18] sm:$0xff] %v4465
      %4502 = vst [vmem:[%s252 + $0x20] sm:$0xff] %v4466
      %4503 = vst [vmem:[%s252 + $0x28] sm:$0xff] %v4467
      %4504 = vst [vmem:[%s252 + $0x30] sm:$0xff] %v4468
      %4505 = vst [vmem:[%s252 + $0x38] sm:$0xff] %v4469
      %4506 = vst [vmem:[%s252 + $0x40] sm:$0xff] %v4470
      %4507 = vst [vmem:[%s252 + $0x48] sm:$0xff] %v4471
      %4508 = vst [vmem:[%s252 + $0x50] sm:$0xff] %v4472
      %4509 = vst [vmem:[%s252 + $0x58] sm:$0xff] %v4473
      %4510 = vst [vmem:[%s252 + $0x60] sm:$0xff] %v4474
      %4511 = vst [vmem:[%s252 + $0x68] sm:$0xff] %v4475
      %4512 = vst [vmem:[%s252 + $0x70] sm:$0xff] %v4476
      %4513 = vst [vmem:[%s252 + $0x78] sm:$0xff] %v4477
      %4514 = vst [vmem:[%s252 + $0x80] sm:$0xff] %v4478
      %4515 = vst [vmem:[%s252 + $0x88] sm:$0xff] %v4479
      %4516 = vst [vmem:[%s252 + $0x90] sm:$0xff] %v4480
      %4517 = vst [vmem:[%s252 + $0x98] sm:$0xff] %v4481
      %4518 = vst [vmem:[%s252 + $0xa0] sm:$0xff] %v4482
      %4519 = vst [vmem:[%s252 + $0xa8] sm:$0xff] %v4483
      %4520 = vst [vmem:[%s252 + $0xb0] sm:$0xff] %v4484
      %4521 = vst [vmem:[%s252 + $0xb8] sm:$0xff] %v4485
      %4522 = vst [vmem:[%s252 + $0xc0] sm:$0xff] %v4486
      %4523 = vst [vmem:[%s252 + $0xc8] sm:$0xff] %v4487
      %4524 = vst [vmem:[%s252 + $0xd0] sm:$0xff] %v4488
      %4525 = vst [vmem:[%s252 + $0xd8] sm:$0xff] %v4489
      %4526 = vst [vmem:[%s252 + $0xe0] sm:$0xff] %v4490
      %4527 = vst [vmem:[%s252 + $0xe8] sm:$0xff] %v4491
      %4528 = vst [vmem:[%s252 + $0xf0] sm:$0xff] %v4492
      %4529 = vst [vmem:[%s252 + $0xf8] sm:$0xff] %v4493
      %4530 = vst [vmem:[%s252 + $0x100] sm:$0xff] %v4494
      %4531 = vst [vmem:[%s252 + $0x108] sm:$0xff] %v4495
      %4532 = vst [vmem:[%s252 + $0x110] sm:$0xff] %v4496
      %4533 = vst [vmem:[%s252 + $0x118] sm:$0xff] %v4497
      %p4534 = scmp.lt.s32.totalorder %s19, 1
      %s4535 = scalar_select %p4534, %s19, 1
      %p4536 = scmp.lt.s32.totalorder %s20, 0
      %s4537 = scalar_select %p4536, %s20, 0
      %p4538 = scmp.lt.s32.totalorder %s21, 0
      %s4539 = scalar_select %p4538, %s21, 0
      %s4540 = smul.addr %s4537, 36
      %s4541 = sadd.s32 %s4539, %s4540
      %s4542 = smul.addr %s4535, 36
      %s4543 = sadd.s32 %s4541, %s4542
      %s4544 = smul.addr %s4543, 8
      %s4545 = scalar_lea.vmem %s3, %s4544
      // Predicated region
      $region33: #{conv2d_same.1} parent=31 // pred_check
        %p4546 = pneg %p135
      $region34: #{conv2d_same.1} parent=31 // pred_check_branch
        %4548 = sbr.rel (%p4546) target = $region36
      $region35: #{conv2d_same.1} parent=31 // pred_region
        _
      $region36: #{conv2d_same.1} parent=31 // pred_fallthru
        _
    $region32: #{conv2d_same.1} parent=5 // pred_fallthru
      _
    %p4549 = scmp.le.s32.totalorder 2, %s9
    // Predicated region
    $region37: #{conv2d_same.1} parent=5 // pred_check
      %p4550 = pneg %p4549
    $region38: #{conv2d_same.1} parent=5 // pred_check_branch
      %4552 = sbr.rel (%p4550) target = $region40
    $region39: #{conv2d_same.1} parent=5 // pred_region
      %s4553 = ssub.s32 %s9, 2
      // Predicated region
      $region41: #{conv2d_same.1} parent=39 // pred_check
        %p4554 = pneg %p141
      $region42: #{conv2d_same.1} parent=39 // pred_check_branch
        %4556 = sbr.rel (%p4554) target = $region44
      $region43: #{conv2d_same.1} parent=39 // pred_region
        %p4557 = scmp.lt.s32.totalorder %s22, 1
        %s4558 = scalar_select %p4557, %s22, 1
        %p4559 = scmp.lt.s32.totalorder %s23, 0
        %s4560 = scalar_select %p4559, %s23, 0
        %p4561 = scmp.lt.s32.totalorder %s24, 0
        %s4562 = scalar_select %p4561, %s24, 0
        %s4563 = smul.addr %s4560, 36
        %s4564 = sadd.s32 %s4562, %s4563
        %s4565 = smul.addr %s4558, 36
        %s4566 = sadd.s32 %s4564, %s4565
        %s4567 = smul.addr %s4566, 8
        %s4568 = scalar_lea.vmem %s3, %s4567
      $region44: #{conv2d_same.1} parent=39 // pred_fallthru
        _
    $region40: #{conv2d_same.1} parent=5 // pred_fallthru
      _
  $region6: #{conv2d_same.1} parent=0 // loop_footer
    %s13 = sadd.s32 1, %s9
  $region7: #{conv2d_same.1} parent=0 // loop_footer_branch
    %8 = sbr.rel target = $region3
  $region8: #{conv2d_same.1} parent=0 // loop_exit
    _

</llo_original>
